<compile_context>
chip_gen: v7x
topology: tpu7x:2x2x1
jax: 0.10.0
libtpu: 0.0.40
codegen_flags: <defaults>
</compile_context>

<pallas_src>
import math
import functools

import jax
import jax.numpy as jnp
from jax.experimental import pallas as pl
from jax.experimental.pallas import tpu as pltpu


# ----------------------------------------------------------------------------
# Pallas kernels
# ----------------------------------------------------------------------------

_BF16 = jnp.bfloat16


def _gelu_exact(x):
    # PyTorch F.gelu default = exact erf GELU.
    return 0.5 * x * (1.0 + jax.lax.erf(x * (1.0 / math.sqrt(2.0))))


def _layernorm(x, gamma, beta):
    mean = jnp.mean(x, axis=-1, keepdims=True)
    xc = x - mean
    var = jnp.mean(xc * xc, axis=-1, keepdims=True)
    return xc * jax.lax.rsqrt(var + 1e-5) * gamma + beta


def _embed_kernel(xw_ref, w_ref, b_ref, pe_ref, o_ref):
    """TokenEmbedding (im2col GEMM) + PositionalEmbedding, one batch slice."""
    y = jnp.dot(xw_ref[0].astype(_BF16), w_ref[...].astype(_BF16),
                preferred_element_type=jnp.float32) + b_ref[...]
    o_ref[...] = (y + pe_ref[...])[None]


def _attn_block_kernel(x_ref, cross_ref, mask_ref, wqkv_ref, bqkv_ref,
                       wo_ref, bo_ref, g_ref, bt_ref, o_ref,
                       *, n_heads, head_dim, self_attn):
    """Fused AttnLayer + residual + LayerNorm for one batch slice.

    out = LN(x + Wo @ FullAttention(x Wq, cross Wk, cross Wv))
    """
    D = n_heads * head_dim
    x = x_ref[0]                                    # (L, D) f32
    xb = x.astype(_BF16)
    wqkv = wqkv_ref[...].astype(_BF16)              # (D, 3D)
    bqkv = bqkv_ref[...]                            # (1, 3D)

    if self_attn:
        qkv = jnp.dot(xb, wqkv, preferred_element_type=jnp.float32) + bqkv
        q, k, v = qkv[:, :D], qkv[:, D:2 * D], qkv[:, 2 * D:]
    else:
        cb = cross_ref[0].astype(_BF16)
        q = jnp.dot(xb, wqkv[:, :D],
                    preferred_element_type=jnp.float32) + bqkv[:, :D]
        kv = jnp.dot(cb, wqkv[:, D:],
                     preferred_element_type=jnp.float32) + bqkv[:, D:]
        k, v = kv[:, :D], kv[:, D:]

    mask = mask_ref[...]                            # (L, S) additive bias
    scale = 1.0 / math.sqrt(head_dim)               # FullAttn default scale

    ctx_heads = []
    for h in range(n_heads):                        # static unroll, H small
        sl = slice(h * head_dim, (h + 1) * head_dim)
        qh = q[:, sl].astype(_BF16)
        kh = k[:, sl].astype(_BF16)
        vh = v[:, sl].astype(_BF16)
        s = jax.lax.dot_general(qh, kh, (((1,), (1,)), ((), ())),
                                preferred_element_type=jnp.float32) * scale
        s = s + mask
        m = jnp.max(s, axis=-1, keepdims=True)
        p = jnp.exp(s - m)
        denom = jnp.sum(p, axis=-1, keepdims=True)
        p = p * pl.reciprocal(denom, approx=True)   # EUP, off the VALU slot
        ctx_heads.append(jnp.dot(p.astype(_BF16), vh,
                                 preferred_element_type=jnp.float32))
    ctx = jnp.concatenate(ctx_heads, axis=-1)       # (L, D) lane-dense slab

    out = jnp.dot(ctx.astype(_BF16), wo_ref[...].astype(_BF16),
                  preferred_element_type=jnp.float32) + bo_ref[...]
    o_ref[...] = _layernorm(x + out, g_ref[...], bt_ref[...])[None]


def _ffn_ln_kernel(x_ref, w1_ref, b1_ref, w2_ref, b2_ref, g_ref, bt_ref, o_ref,
                   *, activation):
    """LN(x + ff2(act(ff1(x)))) for one batch slice."""
    x = x_ref[0]
    h = jnp.dot(x.astype(_BF16), w1_ref[...].astype(_BF16),
                preferred_element_type=jnp.float32) + b1_ref[...]
    if activation == "relu":
        h = jnp.maximum(h, 0.0)
    else:
        h = _gelu_exact(h)
    y = jnp.dot(h.astype(_BF16), w2_ref[...].astype(_BF16),
                preferred_element_type=jnp.float32) + b2_ref[...]
    o_ref[...] = _layernorm(x + y, g_ref[...], bt_ref[...])[None]


def _ln_kernel(x_ref, g_ref, bt_ref, o_ref):
    o_ref[...] = _layernorm(x_ref[0], g_ref[...], bt_ref[...])[None]


def _ln_proj_kernel(x_ref, g_ref, bt_ref, w_ref, b_ref, o_ref):
    """Final decoder LayerNorm fused with the output projection."""
    normed = _layernorm(x_ref[0], g_ref[...], bt_ref[...])
    # TODO(synk): c_out=4 forces a masked partial store; pad to >=128 lanes if
    # this tail ever shows up in profiles.
    o_ref[...] = (jnp.dot(normed.astype(_BF16), w_ref[...].astype(_BF16),
                          preferred_element_type=jnp.float32) + b_ref[...])[None]


# ----------------------------------------------------------------------------
# Pallas wrappers (grid over batch, everything else full-block in VMEM)
# ----------------------------------------------------------------------------

_PARALLEL = pltpu.CompilerParams(dimension_semantics=("parallel",))


def _full2d(shape):
    return pl.BlockSpec(shape, lambda b: (0, 0))


def fused_embedding(x, emb_params, pe):
    """DataEmbedding: circular conv1d (k=3) as im2col GEMM + pos. embedding."""
    B, L, C = x.shape
    # circular im2col: features ordered [x_{t-1}, x_t, x_{t+1}]
    x_win = jnp.concatenate(
        [jnp.roll(x, 1, axis=1), x, jnp.roll(x, -1, axis=1)], axis=-1)
    w, b = emb_params["conv"]
    D = w.shape[1]
    return pl.pallas_call(
        _embed_kernel,
        out_shape=jax.ShapeDtypeStruct((B, L, D), jnp.float32),
        grid=(B,),
        in_specs=[
            pl.BlockSpec((1, L, 3 * C), lambda b: (b, 0, 0)),
            _full2d((3 * C, D)),
            _full2d((1, D)),
            _full2d((L, D)),
        ],
        out_specs=pl.BlockSpec((1, L, D), lambda b: (b, 0, 0)),
        compiler_params=_PARALLEL,
    )(x_win, w, b.reshape(1, -1), pe)


def fused_attention_block(x, cross, p, gamma, beta, *, n_heads, causal,
                          self_attn):
    """AttnLayer (fused QKV + FullAttention + out proj) + residual + LN."""
    B, L, D = x.shape
    S = cross.shape[1]
    wqkv, bqkv = p["qkv"]
    wo, bo = p["o"]
    if causal:
        row = jnp.arange(L, dtype=jnp.int32)[:, None]
        col = jnp.arange(S, dtype=jnp.int32)[None, :]
        mask = jnp.where(col > row, -1e30, 0.0).astype(jnp.float32)
    else:
        mask = jnp.zeros((L, S), jnp.float32)

    kernel = functools.partial(_attn_block_kernel, n_heads=n_heads,
                               head_dim=D // n_heads, self_attn=self_attn)
    return pl.pallas_call(
        kernel,
        out_shape=jax.ShapeDtypeStruct((B, L, D), jnp.float32),
        grid=(B,),
        in_specs=[
            pl.BlockSpec((1, L, D), lambda b: (b, 0, 0)),
            pl.BlockSpec((1, S, D), lambda b: (b, 0, 0)),
            _full2d((L, S)),
            _full2d((D, 3 * D)),
            _full2d((1, 3 * D)),
            _full2d((D, D)),
            _full2d((1, D)),
            _full2d((1, D)),
            _full2d((1, D)),
        ],
        out_specs=pl.BlockSpec((1, L, D), lambda b: (b, 0, 0)),
        compiler_params=_PARALLEL,
    )(x, cross, mask, wqkv, bqkv.reshape(1, -1), wo, bo.reshape(1, -1),
      gamma.reshape(1, -1), beta.reshape(1, -1))


def fused_ffn_block(x, w1, b1, w2, b2, gamma, beta, *, activation):
    B, L, D = x.shape
    dff = w1.shape[1]
    kernel = functools.partial(_ffn_ln_kernel, activation=activation)
    return pl.pallas_call(
        kernel,
        out_shape=jax.ShapeDtypeStruct((B, L, D), jnp.float32),
        grid=(B,),
        in_specs=[
            pl.BlockSpec((1, L, D), lambda b: (b, 0, 0)),
            _full2d((D, dff)),
            _full2d((1, dff)),
            _full2d((dff, D)),
            _full2d((1, D)),
            _full2d((1, D)),
            _full2d((1, D)),
        ],
        out_specs=pl.BlockSpec((1, L, D), lambda b: (b, 0, 0)),
        compiler_params=_PARALLEL,
    )(x, w1, b1.reshape(1, -1), w2, b2.reshape(1, -1),
      gamma.reshape(1, -1), beta.reshape(1, -1))


def pallas_layernorm(x, gamma, beta):
    B, L, D = x.shape
    return pl.pallas_call(
        _ln_kernel,
        out_shape=jax.ShapeDtypeStruct((B, L, D), jnp.float32),
        grid=(B,),
        in_specs=[
            pl.BlockSpec((1, L, D), lambda b: (b, 0, 0)),
            _full2d((1, D)),
            _full2d((1, D)),
        ],
        out_specs=pl.BlockSpec((1, L, D), lambda b: (b, 0, 0)),
        compiler_params=_PARALLEL,
    )(x, gamma.reshape(1, -1), beta.reshape(1, -1))


def fused_norm_projection(x, gamma, beta, wp, bp):
    B, L, D = x.shape
    C = wp.shape[1]
    return pl.pallas_call(
        _ln_proj_kernel,
        out_shape=jax.ShapeDtypeStruct((B, L, C), jnp.float32),
        grid=(B,),
        in_specs=[
            pl.BlockSpec((1, L, D), lambda b: (b, 0, 0)),
            _full2d((1, D)),
            _full2d((1, D)),
            _full2d((D, C)),
            _full2d((1, C)),
        ],
        out_specs=pl.BlockSpec((1, L, C), lambda b: (b, 0, 0)),
        compiler_params=_PARALLEL,
    )(x, gamma.reshape(1, -1), beta.reshape(1, -1), wp, bp.reshape(1, -1))


# ----------------------------------------------------------------------------
# Parameters and model composition
# ----------------------------------------------------------------------------

def _dense_params(key, fan_in, fan_out):
    """Deterministic init mimicking nn.Linear's default U(-1/sqrt(fan_in), .)."""
    kw, kb = jax.random.split(key)
    bound = 1.0 / math.sqrt(fan_in)
    w = jax.random.uniform(kw, (fan_in, fan_out), jnp.float32, -bound, bound)
    b = jax.random.uniform(kb, (fan_out,), jnp.float32, -bound, bound)
    return w, b


def init_params(key, enc_in, dec_in, c_out, d_model, n_heads,
                e_layers, d_layers, d_ff):
    keys = iter(jax.random.split(key, 256))

    def dense(fi, fo):
        return _dense_params(next(keys), fi, fo)

    def attn_params():
        wq, bq = dense(d_model, d_model)
        wk, bk = dense(d_model, d_model)
        wv, bv = dense(d_model, d_model)
        return {"qkv": (jnp.concatenate([wq, wk, wv], axis=1),
                        jnp.concatenate([bq, bk, bv], axis=0)),
                "o": dense(d_model, d_model)}

    def ln_params():
        return (jnp.ones((d_model,), jnp.float32),
                jnp.zeros((d_model,), jnp.float32))

    return {
        # token-embedding conv1d (k=3, circular) flattened to (3*c_in, d_model)
        "enc_emb": {"conv": dense(3 * enc_in, d_model)},
        "dec_emb": {"conv": dense(3 * dec_in, d_model)},
        "enc_layers": [
            {"attn": attn_params(),
             "ff1": dense(d_model, d_ff), "ff2": dense(d_ff, d_model),
             "ln1": ln_params(), "ln2": ln_params()}
            for _ in range(e_layers)
        ],
        "enc_norm": ln_params(),
        "dec_layers": [
            {"self_attn": attn_params(), "cross_attn": attn_params(),
             "ff1": dense(d_model, d_ff), "ff2": dense(d_ff, d_model),
             "ln1": ln_params(), "ln2": ln_params(), "ln3": ln_params()}
            for _ in range(d_layers)
        ],
        "dec_norm": ln_params(),
        "proj": dense(d_model, c_out),
    }


def positional_embedding(L, d_model):
    pos = jnp.arange(L, dtype=jnp.float32)[:, None]
    div = jnp.exp(jnp.arange(0, d_model, 2, dtype=jnp.float32)
                  * (-math.log(10000.0) / d_model))
    pe = jnp.zeros((L, d_model), jnp.float32)
    pe = pe.at[:, 0::2].set(jnp.sin(pos * div))
    pe = pe.at[:, 1::2].set(jnp.cos(pos * div))
    return pe


def informer_forward(params, x_enc, x_dec, *, d_model, n_heads, pred_len,
                     activation):
    # ---- encoder ----
    enc = fused_embedding(x_enc, params["enc_emb"],
                          positional_embedding(x_enc.shape[1], d_model))
    for lp in params["enc_layers"]:
        enc = fused_attention_block(enc, enc, lp["attn"], *lp["ln1"],
                                    n_heads=n_heads, causal=False,
                                    self_attn=True)
        enc = fused_ffn_block(enc, *lp["ff1"], *lp["ff2"], *lp["ln2"],
                              activation=activation)
    enc = pallas_layernorm(enc, *params["enc_norm"])

    # ---- decoder ----
    dec = fused_embedding(x_dec, params["dec_emb"],
                          positional_embedding(x_dec.shape[1], d_model))
    for lp in params["dec_layers"]:
        dec = fused_attention_block(dec, dec, lp["self_attn"], *lp["ln1"],
                                    n_heads=n_heads, causal=True,
                                    self_attn=True)
        dec = fused_attention_block(dec, enc, lp["cross_attn"], *lp["ln2"],
                                    n_heads=n_heads, causal=False,
                                    self_attn=False)
        dec = fused_ffn_block(dec, *lp["ff1"], *lp["ff2"], *lp["ln3"],
                              activation=activation)

    # ---- final norm + projection (fused) ----
    out = fused_norm_projection(dec, *params["dec_norm"], *params["proj"])
    return out[:, -pred_len:, :]


# ----------------------------------------------------------------------------
# main
# ----------------------------------------------------------------------------

if __name__ == "__main__":
    # constructor arguments (small, TPU-friendly shapes)
    enc_in, dec_in, c_out = 4, 4, 4
    seq_len, label_len, out_len = 16, 8, 8
    d_model, n_heads, e_layers, d_layers, d_ff = 32, 4, 2, 1, 64
    activation = "gelu"
    batch = 2

    key = jax.random.PRNGKey(0)
    kp, ke, kd = jax.random.split(key, 3)

    params = init_params(kp, enc_in, dec_in, c_out, d_model, n_heads,
                         e_layers, d_layers, d_ff)

    x_enc = jax.random.normal(ke, (batch, seq_len, enc_in), jnp.float32)
    # decoder input = label window + zero placeholder for the prediction window
    x_dec_known = jax.random.normal(kd, (batch, label_len, dec_in), jnp.float32)
    x_dec = jnp.concatenate(
        [x_dec_known, jnp.zeros((batch, out_len, dec_in), jnp.float32)], axis=1)

    fwd = jax.jit(functools.partial(
        informer_forward, d_model=d_model, n_heads=n_heads,
        pred_len=out_len, activation=activation))

    out = fwd(params, x_enc, x_dec)
    jax.block_until_ready(out)
    assert out.shape == (batch, out_len, c_out), out.shape
    assert bool(jnp.all(jnp.isfinite(out)))
    print("KERNEL_OK")
</pallas_src>

<mosaic_0001>
module attributes {stable_mosaic.version = 11 : i64} {
  func.func @_embed_kernel(%arg0: i32, %arg1: memref<1x16x12xf32, #tpu.memory_space<vmem>>, %arg2: memref<12x32xf32, #tpu.memory_space<vmem>>, %arg3: memref<1x32xf32, #tpu.memory_space<vmem>>, %arg4: memref<16x32xf32, #tpu.memory_space<vmem>>, %arg5: memref<1x16x32xf32, #tpu.memory_space<vmem>>) attributes {dimension_semantics = [#tpu.dimension_semantics<parallel>], iteration_bounds = array<i64: 2>, scalar_prefetch = 0 : i64, scratch_operands = 0 : i64, tpu.core_type = #tpu.core_type<tc>, window_params = [{transform_indices = @transform_0, window_bounds = array<i64: 1, 16, 12>}, {pipeline_mode = #tpu.pipeline_mode<synchronous>, transform_indices = @transform_1, window_bounds = array<i64: 12, 32>}, {pipeline_mode = #tpu.pipeline_mode<synchronous>, transform_indices = @transform_2, window_bounds = array<i64: 1, 32>}, {pipeline_mode = #tpu.pipeline_mode<synchronous>, transform_indices = @transform_3, window_bounds = array<i64: 16, 32>}, {transform_indices = @transform_4, window_bounds = array<i64: 1, 16, 32>}]} {
    %c0 = arith.constant 0 : index
    %c0_0 = arith.constant 0 : index
    %c0_1 = arith.constant 0 : index
    %0 = vector.load %arg1[%c0, %c0_0, %c0_1] : memref<1x16x12xf32, #tpu.memory_space<vmem>>, vector<1x16x12xf32>
    %1 = vector.shape_cast %0 : vector<1x16x12xf32> to vector<16x12xf32>
    %2 = arith.truncf %1 : vector<16x12xf32> to vector<16x12xbf16>
    %c0_2 = arith.constant 0 : index
    %c0_3 = arith.constant 0 : index
    %3 = vector.load %arg2[%c0_2, %c0_3] : memref<12x32xf32, #tpu.memory_space<vmem>>, vector<12x32xf32>
    %4 = arith.truncf %3 : vector<12x32xf32> to vector<12x32xbf16>
    %cst = arith.constant dense<0.000000e+00> : vector<16x32xf32>
    %5 = tpu.matmul %2, %4, %cst {dimension_numbers = #tpu.dot_dimension_numbers<[1], [0], [0], [1], [0, 0, 1, 1], [], []>} : vector<16x12xbf16>, vector<12x32xbf16>, vector<16x32xf32> -> vector<16x32xf32>
    %c0_4 = arith.constant 0 : index
    %c0_5 = arith.constant 0 : index
    %6 = vector.load %arg3[%c0_4, %c0_5] : memref<1x32xf32, #tpu.memory_space<vmem>>, vector<1x32xf32>
    %7 = vector.broadcast %6 : vector<1x32xf32> to vector<16x32xf32>
    %8 = arith.addf %5, %7 : vector<16x32xf32>
    %c0_6 = arith.constant 0 : index
    %c0_7 = arith.constant 0 : index
    %9 = vector.load %arg4[%c0_6, %c0_7] : memref<16x32xf32, #tpu.memory_space<vmem>>, vector<16x32xf32>
    %10 = arith.addf %8, %9 : vector<16x32xf32>
    %11 = vector.shape_cast %10 : vector<16x32xf32> to vector<1x16x32xf32>
    %c0_8 = arith.constant 0 : index
    %c0_9 = arith.constant 0 : index
    %c0_10 = arith.constant 0 : index
    %12 = vector.load %arg5[%c0_8, %c0_9, %c0_10] : memref<1x16x32xf32, #tpu.memory_space<vmem>>, vector<1x16x32xf32>
    tpu.vector_store %arg5[%c0_8, %c0_9, %c0_10], %11 {strides = array<i32>} : memref<1x16x32xf32, #tpu.memory_space<vmem>>, vector<1x16x32xf32>,
    return
  }
  func.func @transform_0(%arg0: i32) -> (i32, i32, i32) {
    %c0_i32 = arith.constant 0 : i32
    %c0_i32_0 = arith.constant 0 : i32
    %c0_i32_1 = arith.constant 0 : i32
    return %arg0, %c0_i32, %c0_i32_0 : i32, i32, i32
  }
  func.func @transform_1(%arg0: i32) -> (i32, i32) {
    %c0_i32 = arith.constant 0 : i32
    %c0_i32_0 = arith.constant 0 : i32
    %c0_i32_1 = arith.constant 0 : i32
    return %c0_i32, %c0_i32_0 : i32, i32
  }
  func.func @transform_2(%arg0: i32) -> (i32, i32) {
    %c0_i32 = arith.constant 0 : i32
    %c0_i32_0 = arith.constant 0 : i32
    %c0_i32_1 = arith.constant 0 : i32
    return %c0_i32, %c0_i32_0 : i32, i32
  }
  func.func @transform_3(%arg0: i32) -> (i32, i32) {
    %c0_i32 = arith.constant 0 : i32
    %c0_i32_0 = arith.constant 0 : i32
    %c0_i32_1 = arith.constant 0 : i32
    return %c0_i32, %c0_i32_0 : i32, i32
  }
  func.func @transform_4(%arg0: i32) -> (i32, i32, i32) {
    %c0_i32 = arith.constant 0 : i32
    %c0_i32_0 = arith.constant 0 : i32
    %c0_i32_1 = arith.constant 0 : i32
    return %arg0, %c0_i32, %c0_i32_0 : i32, i32, i32
  }
}

module attributes {stable_mosaic.version = 11 : i64} {
  func.func @_attn_block_kernel(%arg0: i32, %arg1: memref<1x16x32xf32, #tpu.memory_space<vmem>>, %arg2: memref<1x16x32xf32, #tpu.memory_space<vmem>>, %arg3: memref<16x16xf32, #tpu.memory_space<vmem>>, %arg4: memref<32x96xf32, #tpu.memory_space<vmem>>, %arg5: memref<1x96xf32, #tpu.memory_space<vmem>>, %arg6: memref<32x32xf32, #tpu.memory_space<vmem>>, %arg7: memref<1x32xf32, #tpu.memory_space<vmem>>, %arg8: memref<1x32xf32, #tpu.memory_space<vmem>>, %arg9: memref<1x32xf32, #tpu.memory_space<vmem>>, %arg10: memref<1x16x32xf32, #tpu.memory_space<vmem>>) attributes {dimension_semantics = [#tpu.dimension_semantics<parallel>], iteration_bounds = array<i64: 2>, scalar_prefetch = 0 : i64, scratch_operands = 0 : i64, tpu.core_type = #tpu.core_type<tc>, window_params = [{transform_indices = @transform_0, window_bounds = array<i64: 1, 16, 32>}, {transform_indices = @transform_1, window_bounds = array<i64: 1, 16, 32>}, {pipeline_mode = #tpu.pipeline_mode<synchronous>, transform_indices = @transform_2, window_bounds = array<i64: 16, 16>}, {pipeline_mode = #tpu.pipeline_mode<synchronous>, transform_indices = @transform_3, window_bounds = array<i64: 32, 96>}, {pipeline_mode = #tpu.pipeline_mode<synchronous>, transform_indices = @transform_4, window_bounds = array<i64: 1, 96>}, {pipeline_mode = #tpu.pipeline_mode<synchronous>, transform_indices = @transform_5, window_bounds = array<i64: 32, 32>}, {pipeline_mode = #tpu.pipeline_mode<synchronous>, transform_indices = @transform_6, window_bounds = array<i64: 1, 32>}, {pipeline_mode = #tpu.pipeline_mode<synchronous>, transform_indices = @transform_7, window_bounds = array<i64: 1, 32>}, {pipeline_mode = #tpu.pipeline_mode<synchronous>, transform_indices = @transform_8, window_bounds = array<i64: 1, 32>}, {transform_indices = @transform_9, window_bounds = array<i64: 1, 16, 32>}]} {
    %c0 = arith.constant 0 : index
    %c0_0 = arith.constant 0 : index
    %c0_1 = arith.constant 0 : index
    %0 = vector.load %arg1[%c0, %c0_0, %c0_1] : memref<1x16x32xf32, #tpu.memory_space<vmem>>, vector<1x16x32xf32>
    %1 = vector.shape_cast %0 : vector<1x16x32xf32> to vector<16x32xf32>
    %2 = arith.truncf %1 : vector<16x32xf32> to vector<16x32xbf16>
    %c0_2 = arith.constant 0 : index
    %c0_3 = arith.constant 0 : index
    %3 = vector.load %arg4[%c0_2, %c0_3] : memref<32x96xf32, #tpu.memory_space<vmem>>, vector<32x96xf32>
    %4 = arith.truncf %3 : vector<32x96xf32> to vector<32x96xbf16>
    %c0_4 = arith.constant 0 : index
    %c0_5 = arith.constant 0 : index
    %5 = vector.load %arg5[%c0_4, %c0_5] : memref<1x96xf32, #tpu.memory_space<vmem>>, vector<1x96xf32>
    %cst = arith.constant dense<0.000000e+00> : vector<16x96xf32>
    %6 = tpu.matmul %2, %4, %cst {dimension_numbers = #tpu.dot_dimension_numbers<[1], [0], [0], [1], [0, 0, 1, 1], [], []>} : vector<16x32xbf16>, vector<32x96xbf16>, vector<16x96xf32> -> vector<16x96xf32>
    %7 = vector.broadcast %5 : vector<1x96xf32> to vector<16x96xf32>
    %8 = arith.addf %6, %7 : vector<16x96xf32>
    %9 = vector.extract_strided_slice %8 {offsets = [0, 0], sizes = [16, 32], strides = [1, 1]} : vector<16x96xf32> to vector<16x32xf32>
    %10 = vector.extract_strided_slice %8 {offsets = [0, 32], sizes = [16, 32], strides = [1, 1]} : vector<16x96xf32> to vector<16x32xf32>
    %11 = vector.extract_strided_slice %8 {offsets = [0, 64], sizes = [16, 32], strides = [1, 1]} : vector<16x96xf32> to vector<16x32xf32>
    %c0_6 = arith.constant 0 : index
    %c0_7 = arith.constant 0 : index
    %12 = vector.load %arg3[%c0_6, %c0_7] : memref<16x16xf32, #tpu.memory_space<vmem>>, vector<16x16xf32>
    %13 = vector.extract_strided_slice %9 {offsets = [0, 0], sizes = [16, 8], strides = [1, 1]} : vector<16x32xf32> to vector<16x8xf32>
    %14 = arith.truncf %13 : vector<16x8xf32> to vector<16x8xbf16>
    %15 = vector.extract_strided_slice %10 {offsets = [0, 0], sizes = [16, 8], strides = [1, 1]} : vector<16x32xf32> to vector<16x8xf32>
    %16 = arith.truncf %15 : vector<16x8xf32> to vector<16x8xbf16>
    %17 = vector.extract_strided_slice %11 {offsets = [0, 0], sizes = [16, 8], strides = [1, 1]} : vector<16x32xf32> to vector<16x8xf32>
    %18 = arith.truncf %17 : vector<16x8xf32> to vector<16x8xbf16>
    %cst_8 = arith.constant dense<0.000000e+00> : vector<16x16xf32>
    %19 = tpu.matmul %14, %16, %cst_8 {dimension_numbers = #tpu.dot_dimension_numbers<[1], [1], [0], [0], [0, 0, 1, 0], [], []>} : vector<16x8xbf16>, vector<16x8xbf16>, vector<16x16xf32> -> vector<16x16xf32>
    %cst_9 = arith.constant 0.353553385 : f32
    %20 = vector.broadcast %cst_9 : f32 to vector<16x16xf32>
    %21 = arith.mulf %19, %20 : vector<16x16xf32>
    %22 = arith.addf %21, %12 : vector<16x16xf32>
    %cst_10 = arith.constant dense<0xFF800000> : vector<16xf32>
    %23 = vector.multi_reduction <maximumf>, %22, %cst_10 [1] : vector<16x16xf32> to vector<16xf32>
    %24 = vector.shape_cast %23 : vector<16xf32> to vector<16x1xf32>
    %25 = vector.broadcast %24 : vector<16x1xf32> to vector<16x16xf32>
    %26 = arith.subf %22, %25 : vector<16x16xf32>
    %27 = math.exp %26 : vector<16x16xf32>
    %cst_11 = arith.constant dense<0.000000e+00> : vector<16xf32>
    %28 = vector.multi_reduction <add>, %27, %cst_11 [1] : vector<16x16xf32> to vector<16xf32>
    %29 = vector.shape_cast %28 : vector<16xf32> to vector<16x1xf32>
    %30 = tpu.reciprocal %29 {approx = true} : vector<16x1xf32> -> vector<16x1xf32>
    %31 = vector.broadcast %30 : vector<16x1xf32> to vector<16x16xf32>
    %32 = arith.mulf %27, %31 : vector<16x16xf32>
    %33 = arith.truncf %32 : vector<16x16xf32> to vector<16x16xbf16>
    %cst_12 = arith.constant dense<0.000000e+00> : vector<16x8xf32>
    %34 = tpu.matmul %33, %18, %cst_12 {dimension_numbers = #tpu.dot_dimension_numbers<[1], [0], [0], [1], [0, 0, 1, 1], [], []>} : vector<16x16xbf16>, vector<16x8xbf16>, vector<16x8xf32> -> vector<16x8xf32>
    %35 = vector.extract_strided_slice %9 {offsets = [0, 8], sizes = [16, 8], strides = [1, 1]} : vector<16x32xf32> to vector<16x8xf32>
    %36 = arith.truncf %35 : vector<16x8xf32> to vector<16x8xbf16>
    %37 = vector.extract_strided_slice %10 {offsets = [0, 8], sizes = [16, 8], strides = [1, 1]} : vector<16x32xf32> to vector<16x8xf32>
    %38 = arith.truncf %37 : vector<16x8xf32> to vector<16x8xbf16>
    %39 = vector.extract_strided_slice %11 {offsets = [0, 8], sizes = [16, 8], strides = [1, 1]} : vector<16x32xf32> to vector<16x8xf32>
    %40 = arith.truncf %39 : vector<16x8xf32> to vector<16x8xbf16>
    %cst_13 = arith.constant dense<0.000000e+00> : vector<16x16xf32>
    %41 = tpu.matmul %36, %38, %cst_13 {dimension_numbers = #tpu.dot_dimension_numbers<[1], [1], [0], [0], [0, 0, 1, 0], [], []>} : vector<16x8xbf16>, vector<16x8xbf16>, vector<16x16xf32> -> vector<16x16xf32>
    %cst_14 = arith.constant 0.353553385 : f32
    %42 = vector.broadcast %cst_14 : f32 to vector<16x16xf32>
    %43 = arith.mulf %41, %42 : vector<16x16xf32>
    %44 = arith.addf %43, %12 : vector<16x16xf32>
    %cst_15 = arith.constant dense<0xFF800000> : vector<16xf32>
    %45 = vector.multi_reduction <maximumf>, %44, %cst_15 [1] : vector<16x16xf32> to vector<16xf32>
    %46 = vector.shape_cast %45 : vector<16xf32> to vector<16x1xf32>
    %47 = vector.broadcast %46 : vector<16x1xf32> to vector<16x16xf32>
    %48 = arith.subf %44, %47 : vector<16x16xf32>
    %49 = math.exp %48 : vector<16x16xf32>
    %cst_16 = arith.constant dense<0.000000e+00> : vector<16xf32>
    %50 = vector.multi_reduction <add>, %49, %cst_16 [1] : vector<16x16xf32> to vector<16xf32>
    %51 = vector.shape_cast %50 : vector<16xf32> to vector<16x1xf32>
    %52 = tpu.reciprocal %51 {approx = true} : vector<16x1xf32> -> vector<16x1xf32>
    %53 = vector.broadcast %52 : vector<16x1xf32> to vector<16x16xf32>
    %54 = arith.mulf %49, %53 : vector<16x16xf32>
    %55 = arith.truncf %54 : vector<16x16xf32> to vector<16x16xbf16>
    %cst_17 = arith.constant dense<0.000000e+00> : vector<16x8xf32>
    %56 = tpu.matmul %55, %40, %cst_17 {dimension_numbers = #tpu.dot_dimension_numbers<[1], [0], [0], [1], [0, 0, 1, 1], [], []>} : vector<16x16xbf16>, vector<16x8xbf16>, vector<16x8xf32> -> vector<16x8xf32>
    %57 = vector.extract_strided_slice %9 {offsets = [0, 16], sizes = [16, 8], strides = [1, 1]} : vector<16x32xf32> to vector<16x8xf32>
    %58 = arith.truncf %57 : vector<16x8xf32> to vector<16x8xbf16>
    %59 = vector.extract_strided_slice %10 {offsets = [0, 16], sizes = [16, 8], strides = [1, 1]} : vector<16x32xf32> to vector<16x8xf32>
    %60 = arith.truncf %59 : vector<16x8xf32> to vector<16x8xbf16>
    %61 = vector.extract_strided_slice %11 {offsets = [0, 16], sizes = [16, 8], strides = [1, 1]} : vector<16x32xf32> to vector<16x8xf32>
    %62 = arith.truncf %61 : vector<16x8xf32> to vector<16x8xbf16>
    %cst_18 = arith.constant dense<0.000000e+00> : vector<16x16xf32>
    %63 = tpu.matmul %58, %60, %cst_18 {dimension_numbers = #tpu.dot_dimension_numbers<[1], [1], [0], [0], [0, 0, 1, 0], [], []>} : vector<16x8xbf16>, vector<16x8xbf16>, vector<16x16xf32> -> vector<16x16xf32>
    %cst_19 = arith.constant 0.353553385 : f32
    %64 = vector.broadcast %cst_19 : f32 to vector<16x16xf32>
    %65 = arith.mulf %63, %64 : vector<16x16xf32>
    %66 = arith.addf %65, %12 : vector<16x16xf32>
    %cst_20 = arith.constant dense<0xFF800000> : vector<16xf32>
    %67 = vector.multi_reduction <maximumf>, %66, %cst_20 [1] : vector<16x16xf32> to vector<16xf32>
    %68 = vector.shape_cast %67 : vector<16xf32> to vector<16x1xf32>
    %69 = vector.broadcast %68 : vector<16x1xf32> to vector<16x16xf32>
    %70 = arith.subf %66, %69 : vector<16x16xf32>
    %71 = math.exp %70 : vector<16x16xf32>
    %cst_21 = arith.constant dense<0.000000e+00> : vector<16xf32>
    %72 = vector.multi_reduction <add>, %71, %cst_21 [1] : vector<16x16xf32> to vector<16xf32>
    %73 = vector.shape_cast %72 : vector<16xf32> to vector<16x1xf32>
    %74 = tpu.reciprocal %73 {approx = true} : vector<16x1xf32> -> vector<16x1xf32>
    %75 = vector.broadcast %74 : vector<16x1xf32> to vector<16x16xf32>
    %76 = arith.mulf %71, %75 : vector<16x16xf32>
    %77 = arith.truncf %76 : vector<16x16xf32> to vector<16x16xbf16>
    %cst_22 = arith.constant dense<0.000000e+00> : vector<16x8xf32>
    %78 = tpu.matmul %77, %62, %cst_22 {dimension_numbers = #tpu.dot_dimension_numbers<[1], [0], [0], [1], [0, 0, 1, 1], [], []>} : vector<16x16xbf16>, vector<16x8xbf16>, vector<16x8xf32> -> vector<16x8xf32>
    %79 = vector.extract_strided_slice %9 {offsets = [0, 24], sizes = [16, 8], strides = [1, 1]} : vector<16x32xf32> to vector<16x8xf32>
    %80 = arith.truncf %79 : vector<16x8xf32> to vector<16x8xbf16>
    %81 = vector.extract_strided_slice %10 {offsets = [0, 24], sizes = [16, 8], strides = [1, 1]} : vector<16x32xf32> to vector<16x8xf32>
    %82 = arith.truncf %81 : vector<16x8xf32> to vector<16x8xbf16>
    %83 = vector.extract_strided_slice %11 {offsets = [0, 24], sizes = [16, 8], strides = [1, 1]} : vector<16x32xf32> to vector<16x8xf32>
    %84 = arith.truncf %83 : vector<16x8xf32> to vector<16x8xbf16>
    %cst_23 = arith.constant dense<0.000000e+00> : vector<16x16xf32>
    %85 = tpu.matmul %80, %82, %cst_23 {dimension_numbers = #tpu.dot_dimension_numbers<[1], [1], [0], [0], [0, 0, 1, 0], [], []>} : vector<16x8xbf16>, vector<16x8xbf16>, vector<16x16xf32> -> vector<16x16xf32>
    %cst_24 = arith.constant 0.353553385 : f32
    %86 = vector.broadcast %cst_24 : f32 to vector<16x16xf32>
    %87 = arith.mulf %85, %86 : vector<16x16xf32>
    %88 = arith.addf %87, %12 : vector<16x16xf32>
    %cst_25 = arith.constant dense<0xFF800000> : vector<16xf32>
    %89 = vector.multi_reduction <maximumf>, %88, %cst_25 [1] : vector<16x16xf32> to vector<16xf32>
    %90 = vector.shape_cast %89 : vector<16xf32> to vector<16x1xf32>
    %91 = vector.broadcast %90 : vector<16x1xf32> to vector<16x16xf32>
    %92 = arith.subf %88, %91 : vector<16x16xf32>
    %93 = math.exp %92 : vector<16x16xf32>
    %cst_26 = arith.constant dense<0.000000e+00> : vector<16xf32>
    %94 = vector.multi_reduction <add>, %93, %cst_26 [1] : vector<16x16xf32> to vector<16xf32>
    %95 = vector.shape_cast %94 : vector<16xf32> to vector<16x1xf32>
    %96 = tpu.reciprocal %95 {approx = true} : vector<16x1xf32> -> vector<16x1xf32>
    %97 = vector.broadcast %96 : vector<16x1xf32> to vector<16x16xf32>
    %98 = arith.mulf %93, %97 : vector<16x16xf32>
    %99 = arith.truncf %98 : vector<16x16xf32> to vector<16x16xbf16>
    %cst_27 = arith.constant dense<0.000000e+00> : vector<16x8xf32>
    %100 = tpu.matmul %99, %84, %cst_27 {dimension_numbers = #tpu.dot_dimension_numbers<[1], [0], [0], [1], [0, 0, 1, 1], [], []>} : vector<16x16xbf16>, vector<16x8xbf16>, vector<16x8xf32> -> vector<16x8xf32>
    %101 = tpu.concatenate %34, %56, %78, %100 in 1 : vector<16x8xf32>, vector<16x8xf32>, vector<16x8xf32>, vector<16x8xf32> -> vector<16x32xf32>
    %102 = arith.truncf %101 : vector<16x32xf32> to vector<16x32xbf16>
    %c0_28 = arith.constant 0 : index
    %c0_29 = arith.constant 0 : index
    %103 = vector.load %arg6[%c0_28, %c0_29] : memref<32x32xf32, #tpu.memory_space<vmem>>, vector<32x32xf32>
    %104 = arith.truncf %103 : vector<32x32xf32> to vector<32x32xbf16>
    %cst_30 = arith.constant dense<0.000000e+00> : vector<16x32xf32>
    %105 = tpu.matmul %102, %104, %cst_30 {dimension_numbers = #tpu.dot_dimension_numbers<[1], [0], [0], [1], [0, 0, 1, 1], [], []>} : vector<16x32xbf16>, vector<32x32xbf16>, vector<16x32xf32> -> vector<16x32xf32>
    %c0_31 = arith.constant 0 : index
    %c0_32 = arith.constant 0 : index
    %106 = vector.load %arg7[%c0_31, %c0_32] : memref<1x32xf32, #tpu.memory_space<vmem>>, vector<1x32xf32>
    %107 = vector.broadcast %106 : vector<1x32xf32> to vector<16x32xf32>
    %108 = arith.addf %105, %107 : vector<16x32xf32>
    %109 = arith.addf %1, %108 : vector<16x32xf32>
    %c0_33 = arith.constant 0 : index
    %c0_34 = arith.constant 0 : index
    %110 = vector.load %arg8[%c0_33, %c0_34] : memref<1x32xf32, #tpu.memory_space<vmem>>, vector<1x32xf32>
    %c0_35 = arith.constant 0 : index
    %c0_36 = arith.constant 0 : index
    %111 = vector.load %arg9[%c0_35, %c0_36] : memref<1x32xf32, #tpu.memory_space<vmem>>, vector<1x32xf32>
    %cst_37 = arith.constant dense<0.000000e+00> : vector<16xf32>
    %112 = vector.multi_reduction <add>, %109, %cst_37 [1] : vector<16x32xf32> to vector<16xf32>
    %113 = vector.shape_cast %112 : vector<16xf32> to vector<16x1xf32>
    %cst_38 = arith.constant 3.200000e+01 : f32
    %114 = vector.broadcast %cst_38 : f32 to vector<16x1xf32>
    %115 = arith.divf %113, %114 : vector<16x1xf32>
    %116 = vector.broadcast %115 : vector<16x1xf32> to vector<16x32xf32>
    %117 = arith.subf %109, %116 : vector<16x32xf32>
    %118 = arith.mulf %117, %117 : vector<16x32xf32>
    %cst_39 = arith.constant dense<0.000000e+00> : vector<16xf32>
    %119 = vector.multi_reduction <add>, %118, %cst_39 [1] : vector<16x32xf32> to vector<16xf32>
    %120 = vector.shape_cast %119 : vector<16xf32> to vector<16x1xf32>
    %cst_40 = arith.constant 3.200000e+01 : f32
    %121 = vector.broadcast %cst_40 : f32 to vector<16x1xf32>
    %122 = arith.divf %120, %121 : vector<16x1xf32>
    %cst_41 = arith.constant 9.99999974E-6 : f32
    %123 = vector.broadcast %cst_41 : f32 to vector<16x1xf32>
    %124 = arith.addf %122, %123 : vector<16x1xf32>
    %125 = math.rsqrt %124 : vector<16x1xf32>
    %126 = vector.broadcast %125 : vector<16x1xf32> to vector<16x32xf32>
    %127 = arith.mulf %117, %126 : vector<16x32xf32>
    %128 = vector.broadcast %110 : vector<1x32xf32> to vector<16x32xf32>
    %129 = arith.mulf %127, %128 : vector<16x32xf32>
    %130 = vector.broadcast %111 : vector<1x32xf32> to vector<16x32xf32>
    %131 = arith.addf %129, %130 : vector<16x32xf32>
    %132 = vector.shape_cast %131 : vector<16x32xf32> to vector<1x16x32xf32>
    %c0_42 = arith.constant 0 : index
    %c0_43 = arith.constant 0 : index
    %c0_44 = arith.constant 0 : index
    %133 = vector.load %arg10[%c0_42, %c0_43, %c0_44] : memref<1x16x32xf32, #tpu.memory_space<vmem>>, vector<1x16x32xf32>
    tpu.vector_store %arg10[%c0_42, %c0_43, %c0_44], %132 {strides = array<i32>} : memref<1x16x32xf32, #tpu.memory_space<vmem>>, vector<1x16x32xf32>,
    return
  }
  func.func @transform_0(%arg0: i32) -> (i32, i32, i32) {
    %c0_i32 = arith.constant 0 : i32
    %c0_i32_0 = arith.constant 0 : i32
    %c0_i32_1 = arith.constant 0 : i32
    return %arg0, %c0_i32, %c0_i32_0 : i32, i32, i32
  }
  func.func @transform_1(%arg0: i32) -> (i32, i32, i32) {
    %c0_i32 = arith.constant 0 : i32
    %c0_i32_0 = arith.constant 0 : i32
    %c0_i32_1 = arith.constant 0 : i32
    return %arg0, %c0_i32, %c0_i32_0 : i32, i32, i32
  }
  func.func @transform_2(%arg0: i32) -> (i32, i32) {
    %c0_i32 = arith.constant 0 : i32
    %c0_i32_0 = arith.constant 0 : i32
    %c0_i32_1 = arith.constant 0 : i32
    return %c0_i32, %c0_i32_0 : i32, i32
  }
  func.func @transform_3(%arg0: i32) -> (i32, i32) {
    %c0_i32 = arith.constant 0 : i32
    %c0_i32_0 = arith.constant 0 : i32
    %c0_i32_1 = arith.constant 0 : i32
    return %c0_i32, %c0_i32_0 : i32, i32
  }
  func.func @transform_4(%arg0: i32) -> (i32, i32) {
    %c0_i32 = arith.constant 0 : i32
    %c0_i32_0 = arith.constant 0 : i32
    %c0_i32_1 = arith.constant 0 : i32
    return %c0_i32, %c0_i32_0 : i32, i32
  }
  func.func @transform_5(%arg0: i32) -> (i32, i32) {
    %c0_i32 = arith.constant 0 : i32
    %c0_i32_0 = arith.constant 0 : i32
    %c0_i32_1 = arith.constant 0 : i32
    return %c0_i32, %c0_i32_0 : i32, i32
  }
  func.func @transform_6(%arg0: i32) -> (i32, i32) {
    %c0_i32 = arith.constant 0 : i32
    %c0_i32_0 = arith.constant 0 : i32
    %c0_i32_1 = arith.constant 0 : i32
    return %c0_i32, %c0_i32_0 : i32, i32
  }
  func.func @transform_7(%arg0: i32) -> (i32, i32) {
    %c0_i32 = arith.constant 0 : i32
    %c0_i32_0 = arith.constant 0 : i32
    %c0_i32_1 = arith.constant 0 : i32
    return %c0_i32, %c0_i32_0 : i32, i32
  }
  func.func @transform_8(%arg0: i32) -> (i32, i32) {
    %c0_i32 = arith.constant 0 : i32
    %c0_i32_0 = arith.constant 0 : i32
    %c0_i32_1 = arith.constant 0 : i32
    return %c0_i32, %c0_i32_0 : i32, i32
  }
  func.func @transform_9(%arg0: i32) -> (i32, i32, i32) {
    %c0_i32 = arith.constant 0 : i32
    %c0_i32_0 = arith.constant 0 : i32
    %c0_i32_1 = arith.constant 0 : i32
    return %arg0, %c0_i32, %c0_i32_0 : i32, i32, i32
  }
}

module attributes {stable_mosaic.version = 11 : i64} {
  func.func @_ln_kernel(%arg0: i32, %arg1: memref<1x16x32xf32, #tpu.memory_space<vmem>>, %arg2: memref<1x32xf32, #tpu.memory_space<vmem>>, %arg3: memref<1x32xf32, #tpu.memory_space<vmem>>, %arg4: memref<1x16x32xf32, #tpu.memory_space<vmem>>) attributes {dimension_semantics = [#tpu.dimension_semantics<parallel>], iteration_bounds = array<i64: 2>, scalar_prefetch = 0 : i64, scratch_operands = 0 : i64, tpu.core_type = #tpu.core_type<tc>, window_params = [{transform_indices = @transform_0, window_bounds = array<i64: 1, 16, 32>}, {pipeline_mode = #tpu.pipeline_mode<synchronous>, transform_indices = @transform_1, window_bounds = array<i64: 1, 32>}, {pipeline_mode = #tpu.pipeline_mode<synchronous>, transform_indices = @transform_2, window_bounds = array<i64: 1, 32>}, {transform_indices = @transform_3, window_bounds = array<i64: 1, 16, 32>}]} {
    %c0 = arith.constant 0 : index
    %c0_0 = arith.constant 0 : index
    %c0_1 = arith.constant 0 : index
    %0 = vector.load %arg1[%c0, %c0_0, %c0_1] : memref<1x16x32xf32, #tpu.memory_space<vmem>>, vector<1x16x32xf32>
    %1 = vector.shape_cast %0 : vector<1x16x32xf32> to vector<16x32xf32>
    %c0_2 = arith.constant 0 : index
    %c0_3 = arith.constant 0 : index
    %2 = vector.load %arg2[%c0_2, %c0_3] : memref<1x32xf32, #tpu.memory_space<vmem>>, vector<1x32xf32>
    %c0_4 = arith.constant 0 : index
    %c0_5 = arith.constant 0 : index
    %3 = vector.load %arg3[%c0_4, %c0_5] : memref<1x32xf32, #tpu.memory_space<vmem>>, vector<1x32xf32>
    %cst = arith.constant dense<0.000000e+00> : vector<16xf32>
    %4 = vector.multi_reduction <add>, %1, %cst [1] : vector<16x32xf32> to vector<16xf32>
    %5 = vector.shape_cast %4 : vector<16xf32> to vector<16x1xf32>
    %cst_6 = arith.constant 3.200000e+01 : f32
    %6 = vector.broadcast %cst_6 : f32 to vector<16x1xf32>
    %7 = arith.divf %5, %6 : vector<16x1xf32>
    %8 = vector.broadcast %7 : vector<16x1xf32> to vector<16x32xf32>
    %9 = arith.subf %1, %8 : vector<16x32xf32>
    %10 = arith.mulf %9, %9 : vector<16x32xf32>
    %cst_7 = arith.constant dense<0.000000e+00> : vector<16xf32>
    %11 = vector.multi_reduction <add>, %10, %cst_7 [1] : vector<16x32xf32> to vector<16xf32>
    %12 = vector.shape_cast %11 : vector<16xf32> to vector<16x1xf32>
    %cst_8 = arith.constant 3.200000e+01 : f32
    %13 = vector.broadcast %cst_8 : f32 to vector<16x1xf32>
    %14 = arith.divf %12, %13 : vector<16x1xf32>
    %cst_9 = arith.constant 9.99999974E-6 : f32
    %15 = vector.broadcast %cst_9 : f32 to vector<16x1xf32>
    %16 = arith.addf %14, %15 : vector<16x1xf32>
    %17 = math.rsqrt %16 : vector<16x1xf32>
    %18 = vector.broadcast %17 : vector<16x1xf32> to vector<16x32xf32>
    %19 = arith.mulf %9, %18 : vector<16x32xf32>
    %20 = vector.broadcast %2 : vector<1x32xf32> to vector<16x32xf32>
    %21 = arith.mulf %19, %20 : vector<16x32xf32>
    %22 = vector.broadcast %3 : vector<1x32xf32> to vector<16x32xf32>
    %23 = arith.addf %21, %22 : vector<16x32xf32>
    %24 = vector.shape_cast %23 : vector<16x32xf32> to vector<1x16x32xf32>
    %c0_10 = arith.constant 0 : index
    %c0_11 = arith.constant 0 : index
    %c0_12 = arith.constant 0 : index
    %25 = vector.load %arg4[%c0_10, %c0_11, %c0_12] : memref<1x16x32xf32, #tpu.memory_space<vmem>>, vector<1x16x32xf32>
    tpu.vector_store %arg4[%c0_10, %c0_11, %c0_12], %24 {strides = array<i32>} : memref<1x16x32xf32, #tpu.memory_space<vmem>>, vector<1x16x32xf32>,
    return
  }
  func.func @transform_0(%arg0: i32) -> (i32, i32, i32) {
    %c0_i32 = arith.constant 0 : i32
    %c0_i32_0 = arith.constant 0 : i32
    %c0_i32_1 = arith.constant 0 : i32
    return %arg0, %c0_i32, %c0_i32_0 : i32, i32, i32
  }
  func.func @transform_1(%arg0: i32) -> (i32, i32) {
    %c0_i32 = arith.constant 0 : i32
    %c0_i32_0 = arith.constant 0 : i32
    %c0_i32_1 = arith.constant 0 : i32
    return %c0_i32, %c0_i32_0 : i32, i32
  }
  func.func @transform_2(%arg0: i32) -> (i32, i32) {
    %c0_i32 = arith.constant 0 : i32
    %c0_i32_0 = arith.constant 0 : i32
    %c0_i32_1 = arith.constant 0 : i32
    return %c0_i32, %c0_i32_0 : i32, i32
  }
  func.func @transform_3(%arg0: i32) -> (i32, i32, i32) {
    %c0_i32 = arith.constant 0 : i32
    %c0_i32_0 = arith.constant 0 : i32
    %c0_i32_1 = arith.constant 0 : i32
    return %arg0, %c0_i32, %c0_i32_0 : i32, i32, i32
  }
}

module attributes {stable_mosaic.version = 11 : i64} {
  func.func @_ffn_ln_kernel(%arg0: i32, %arg1: memref<1x16x32xf32, #tpu.memory_space<vmem>>, %arg2: memref<32x64xf32, #tpu.memory_space<vmem>>, %arg3: memref<1x64xf32, #tpu.memory_space<vmem>>, %arg4: memref<64x32xf32, #tpu.memory_space<vmem>>, %arg5: memref<1x32xf32, #tpu.memory_space<vmem>>, %arg6: memref<1x32xf32, #tpu.memory_space<vmem>>, %arg7: memref<1x32xf32, #tpu.memory_space<vmem>>, %arg8: memref<1x16x32xf32, #tpu.memory_space<vmem>>) attributes {dimension_semantics = [#tpu.dimension_semantics<parallel>], iteration_bounds = array<i64: 2>, scalar_prefetch = 0 : i64, scratch_operands = 0 : i64, tpu.core_type = #tpu.core_type<tc>, window_params = [{transform_indices = @transform_0, window_bounds = array<i64: 1, 16, 32>}, {pipeline_mode = #tpu.pipeline_mode<synchronous>, transform_indices = @transform_1, window_bounds = array<i64: 32, 64>}, {pipeline_mode = #tpu.pipeline_mode<synchronous>, transform_indices = @transform_2, window_bounds = array<i64: 1, 64>}, {pipeline_mode = #tpu.pipeline_mode<synchronous>, transform_indices = @transform_3, window_bounds = array<i64: 64, 32>}, {pipeline_mode = #tpu.pipeline_mode<synchronous>, transform_indices = @transform_4, window_bounds = array<i64: 1, 32>}, {pipeline_mode = #tpu.pipeline_mode<synchronous>, transform_indices = @transform_5, window_bounds = array<i64: 1, 32>}, {pipeline_mode = #tpu.pipeline_mode<synchronous>, transform_indices = @transform_6, window_bounds = array<i64: 1, 32>}, {transform_indices = @transform_7, window_bounds = array<i64: 1, 16, 32>}]} {
    %c0 = arith.constant 0 : index
    %c0_0 = arith.constant 0 : index
    %c0_1 = arith.constant 0 : index
    %0 = vector.load %arg1[%c0, %c0_0, %c0_1] : memref<1x16x32xf32, #tpu.memory_space<vmem>>, vector<1x16x32xf32>
    %1 = vector.shape_cast %0 : vector<1x16x32xf32> to vector<16x32xf32>
    %2 = arith.truncf %1 : vector<16x32xf32> to vector<16x32xbf16>
    %c0_2 = arith.constant 0 : index
    %c0_3 = arith.constant 0 : index
    %3 = vector.load %arg2[%c0_2, %c0_3] : memref<32x64xf32, #tpu.memory_space<vmem>>, vector<32x64xf32>
    %4 = arith.truncf %3 : vector<32x64xf32> to vector<32x64xbf16>
    %cst = arith.constant dense<0.000000e+00> : vector<16x64xf32>
    %5 = tpu.matmul %2, %4, %cst {dimension_numbers = #tpu.dot_dimension_numbers<[1], [0], [0], [1], [0, 0, 1, 1], [], []>} : vector<16x32xbf16>, vector<32x64xbf16>, vector<16x64xf32> -> vector<16x64xf32>
    %c0_4 = arith.constant 0 : index
    %c0_5 = arith.constant 0 : index
    %6 = vector.load %arg3[%c0_4, %c0_5] : memref<1x64xf32, #tpu.memory_space<vmem>>, vector<1x64xf32>
    %7 = vector.broadcast %6 : vector<1x64xf32> to vector<16x64xf32>
    %8 = arith.addf %5, %7 : vector<16x64xf32>
    %cst_6 = arith.constant 5.000000e-01 : f32
    %9 = vector.broadcast %cst_6 : f32 to vector<16x64xf32>
    %10 = arith.mulf %9, %8 : vector<16x64xf32>
    %cst_7 = arith.constant 0.707106769 : f32
    %11 = vector.broadcast %cst_7 : f32 to vector<16x64xf32>
    %12 = arith.mulf %8, %11 : vector<16x64xf32>
    %13 = math.erf %12 : vector<16x64xf32>
    %cst_8 = arith.constant 1.000000e+00 : f32
    %14 = vector.broadcast %cst_8 : f32 to vector<16x64xf32>
    %15 = arith.addf %14, %13 : vector<16x64xf32>
    %16 = arith.mulf %10, %15 : vector<16x64xf32>
    %17 = arith.truncf %16 : vector<16x64xf32> to vector<16x64xbf16>
    %c0_9 = arith.constant 0 : index
    %c0_10 = arith.constant 0 : index
    %18 = vector.load %arg4[%c0_9, %c0_10] : memref<64x32xf32, #tpu.memory_space<vmem>>, vector<64x32xf32>
    %19 = arith.truncf %18 : vector<64x32xf32> to vector<64x32xbf16>
    %cst_11 = arith.constant dense<0.000000e+00> : vector<16x32xf32>
    %20 = tpu.matmul %17, %19, %cst_11 {dimension_numbers = #tpu.dot_dimension_numbers<[1], [0], [0], [1], [0, 0, 1, 1], [], []>} : vector<16x64xbf16>, vector<64x32xbf16>, vector<16x32xf32> -> vector<16x32xf32>
    %c0_12 = arith.constant 0 : index
    %c0_13 = arith.constant 0 : index
    %21 = vector.load %arg5[%c0_12, %c0_13] : memref<1x32xf32, #tpu.memory_space<vmem>>, vector<1x32xf32>
    %22 = vector.broadcast %21 : vector<1x32xf32> to vector<16x32xf32>
    %23 = arith.addf %20, %22 : vector<16x32xf32>
    %24 = arith.addf %1, %23 : vector<16x32xf32>
    %c0_14 = arith.constant 0 : index
    %c0_15 = arith.constant 0 : index
    %25 = vector.load %arg6[%c0_14, %c0_15] : memref<1x32xf32, #tpu.memory_space<vmem>>, vector<1x32xf32>
    %c0_16 = arith.constant 0 : index
    %c0_17 = arith.constant 0 : index
    %26 = vector.load %arg7[%c0_16, %c0_17] : memref<1x32xf32, #tpu.memory_space<vmem>>, vector<1x32xf32>
    %cst_18 = arith.constant dense<0.000000e+00> : vector<16xf32>
    %27 = vector.multi_reduction <add>, %24, %cst_18 [1] : vector<16x32xf32> to vector<16xf32>
    %28 = vector.shape_cast %27 : vector<16xf32> to vector<16x1xf32>
    %cst_19 = arith.constant 3.200000e+01 : f32
    %29 = vector.broadcast %cst_19 : f32 to vector<16x1xf32>
    %30 = arith.divf %28, %29 : vector<16x1xf32>
    %31 = vector.broadcast %30 : vector<16x1xf32> to vector<16x32xf32>
    %32 = arith.subf %24, %31 : vector<16x32xf32>
    %33 = arith.mulf %32, %32 : vector<16x32xf32>
    %cst_20 = arith.constant dense<0.000000e+00> : vector<16xf32>
    %34 = vector.multi_reduction <add>, %33, %cst_20 [1] : vector<16x32xf32> to vector<16xf32>
    %35 = vector.shape_cast %34 : vector<16xf32> to vector<16x1xf32>
    %cst_21 = arith.constant 3.200000e+01 : f32
    %36 = vector.broadcast %cst_21 : f32 to vector<16x1xf32>
    %37 = arith.divf %35, %36 : vector<16x1xf32>
    %cst_22 = arith.constant 9.99999974E-6 : f32
    %38 = vector.broadcast %cst_22 : f32 to vector<16x1xf32>
    %39 = arith.addf %37, %38 : vector<16x1xf32>
    %40 = math.rsqrt %39 : vector<16x1xf32>
    %41 = vector.broadcast %40 : vector<16x1xf32> to vector<16x32xf32>
    %42 = arith.mulf %32, %41 : vector<16x32xf32>
    %43 = vector.broadcast %25 : vector<1x32xf32> to vector<16x32xf32>
    %44 = arith.mulf %42, %43 : vector<16x32xf32>
    %45 = vector.broadcast %26 : vector<1x32xf32> to vector<16x32xf32>
    %46 = arith.addf %44, %45 : vector<16x32xf32>
    %47 = vector.shape_cast %46 : vector<16x32xf32> to vector<1x16x32xf32>
    %c0_23 = arith.constant 0 : index
    %c0_24 = arith.constant 0 : index
    %c0_25 = arith.constant 0 : index
    %48 = vector.load %arg8[%c0_23, %c0_24, %c0_25] : memref<1x16x32xf32, #tpu.memory_space<vmem>>, vector<1x16x32xf32>
    tpu.vector_store %arg8[%c0_23, %c0_24, %c0_25], %47 {strides = array<i32>} : memref<1x16x32xf32, #tpu.memory_space<vmem>>, vector<1x16x32xf32>,
    return
  }
  func.func @transform_0(%arg0: i32) -> (i32, i32, i32) {
    %c0_i32 = arith.constant 0 : i32
    %c0_i32_0 = arith.constant 0 : i32
    %c0_i32_1 = arith.constant 0 : i32
    return %arg0, %c0_i32, %c0_i32_0 : i32, i32, i32
  }
  func.func @transform_1(%arg0: i32) -> (i32, i32) {
    %c0_i32 = arith.constant 0 : i32
    %c0_i32_0 = arith.constant 0 : i32
    %c0_i32_1 = arith.constant 0 : i32
    return %c0_i32, %c0_i32_0 : i32, i32
  }
  func.func @transform_2(%arg0: i32) -> (i32, i32) {
    %c0_i32 = arith.constant 0 : i32
    %c0_i32_0 = arith.constant 0 : i32
    %c0_i32_1 = arith.constant 0 : i32
    return %c0_i32, %c0_i32_0 : i32, i32
  }
  func.func @transform_3(%arg0: i32) -> (i32, i32) {
    %c0_i32 = arith.constant 0 : i32
    %c0_i32_0 = arith.constant 0 : i32
    %c0_i32_1 = arith.constant 0 : i32
    return %c0_i32, %c0_i32_0 : i32, i32
  }
  func.func @transform_4(%arg0: i32) -> (i32, i32) {
    %c0_i32 = arith.constant 0 : i32
    %c0_i32_0 = arith.constant 0 : i32
    %c0_i32_1 = arith.constant 0 : i32
    return %c0_i32, %c0_i32_0 : i32, i32
  }
  func.func @transform_5(%arg0: i32) -> (i32, i32) {
    %c0_i32 = arith.constant 0 : i32
    %c0_i32_0 = arith.constant 0 : i32
    %c0_i32_1 = arith.constant 0 : i32
    return %c0_i32, %c0_i32_0 : i32, i32
  }
  func.func @transform_6(%arg0: i32) -> (i32, i32) {
    %c0_i32 = arith.constant 0 : i32
    %c0_i32_0 = arith.constant 0 : i32
    %c0_i32_1 = arith.constant 0 : i32
    return %c0_i32, %c0_i32_0 : i32, i32
  }
  func.func @transform_7(%arg0: i32) -> (i32, i32, i32) {
    %c0_i32 = arith.constant 0 : i32
    %c0_i32_0 = arith.constant 0 : i32
    %c0_i32_1 = arith.constant 0 : i32
    return %arg0, %c0_i32, %c0_i32_0 : i32, i32, i32
  }
}

module attributes {stable_mosaic.version = 11 : i64} {
  func.func @_attn_block_kernel(%arg0: i32, %arg1: memref<1x16x32xf32, #tpu.memory_space<vmem>>, %arg2: memref<1x16x32xf32, #tpu.memory_space<vmem>>, %arg3: memref<16x16xf32, #tpu.memory_space<vmem>>, %arg4: memref<32x96xf32, #tpu.memory_space<vmem>>, %arg5: memref<1x96xf32, #tpu.memory_space<vmem>>, %arg6: memref<32x32xf32, #tpu.memory_space<vmem>>, %arg7: memref<1x32xf32, #tpu.memory_space<vmem>>, %arg8: memref<1x32xf32, #tpu.memory_space<vmem>>, %arg9: memref<1x32xf32, #tpu.memory_space<vmem>>, %arg10: memref<1x16x32xf32, #tpu.memory_space<vmem>>) attributes {dimension_semantics = [#tpu.dimension_semantics<parallel>], iteration_bounds = array<i64: 2>, scalar_prefetch = 0 : i64, scratch_operands = 0 : i64, tpu.core_type = #tpu.core_type<tc>, window_params = [{transform_indices = @transform_0, window_bounds = array<i64: 1, 16, 32>}, {transform_indices = @transform_1, window_bounds = array<i64: 1, 16, 32>}, {pipeline_mode = #tpu.pipeline_mode<synchronous>, transform_indices = @transform_2, window_bounds = array<i64: 16, 16>}, {pipeline_mode = #tpu.pipeline_mode<synchronous>, transform_indices = @transform_3, window_bounds = array<i64: 32, 96>}, {pipeline_mode = #tpu.pipeline_mode<synchronous>, transform_indices = @transform_4, window_bounds = array<i64: 1, 96>}, {pipeline_mode = #tpu.pipeline_mode<synchronous>, transform_indices = @transform_5, window_bounds = array<i64: 32, 32>}, {pipeline_mode = #tpu.pipeline_mode<synchronous>, transform_indices = @transform_6, window_bounds = array<i64: 1, 32>}, {pipeline_mode = #tpu.pipeline_mode<synchronous>, transform_indices = @transform_7, window_bounds = array<i64: 1, 32>}, {pipeline_mode = #tpu.pipeline_mode<synchronous>, transform_indices = @transform_8, window_bounds = array<i64: 1, 32>}, {transform_indices = @transform_9, window_bounds = array<i64: 1, 16, 32>}]} {
    %c0 = arith.constant 0 : index
    %c0_0 = arith.constant 0 : index
    %c0_1 = arith.constant 0 : index
    %0 = vector.load %arg1[%c0, %c0_0, %c0_1] : memref<1x16x32xf32, #tpu.memory_space<vmem>>, vector<1x16x32xf32>
    %1 = vector.shape_cast %0 : vector<1x16x32xf32> to vector<16x32xf32>
    %2 = arith.truncf %1 : vector<16x32xf32> to vector<16x32xbf16>
    %c0_2 = arith.constant 0 : index
    %c0_3 = arith.constant 0 : index
    %3 = vector.load %arg4[%c0_2, %c0_3] : memref<32x96xf32, #tpu.memory_space<vmem>>, vector<32x96xf32>
    %4 = arith.truncf %3 : vector<32x96xf32> to vector<32x96xbf16>
    %c0_4 = arith.constant 0 : index
    %c0_5 = arith.constant 0 : index
    %5 = vector.load %arg5[%c0_4, %c0_5] : memref<1x96xf32, #tpu.memory_space<vmem>>, vector<1x96xf32>
    %c0_6 = arith.constant 0 : index
    %c0_7 = arith.constant 0 : index
    %c0_8 = arith.constant 0 : index
    %6 = vector.load %arg2[%c0_6, %c0_7, %c0_8] : memref<1x16x32xf32, #tpu.memory_space<vmem>>, vector<1x16x32xf32>
    %7 = vector.shape_cast %6 : vector<1x16x32xf32> to vector<16x32xf32>
    %8 = arith.truncf %7 : vector<16x32xf32> to vector<16x32xbf16>
    %9 = vector.extract_strided_slice %4 {offsets = [0, 0], sizes = [32, 32], strides = [1, 1]} : vector<32x96xbf16> to vector<32x32xbf16>
    %cst = arith.constant dense<0.000000e+00> : vector<16x32xf32>
    %10 = tpu.matmul %2, %9, %cst {dimension_numbers = #tpu.dot_dimension_numbers<[1], [0], [0], [1], [0, 0, 1, 1], [], []>} : vector<16x32xbf16>, vector<32x32xbf16>, vector<16x32xf32> -> vector<16x32xf32>
    %11 = vector.extract_strided_slice %5 {offsets = [0, 0], sizes = [1, 32], strides = [1, 1]} : vector<1x96xf32> to vector<1x32xf32>
    %12 = vector.broadcast %11 : vector<1x32xf32> to vector<16x32xf32>
    %13 = arith.addf %10, %12 : vector<16x32xf32>
    %14 = vector.extract_strided_slice %4 {offsets = [0, 32], sizes = [32, 64], strides = [1, 1]} : vector<32x96xbf16> to vector<32x64xbf16>
    %cst_9 = arith.constant dense<0.000000e+00> : vector<16x64xf32>
    %15 = tpu.matmul %8, %14, %cst_9 {dimension_numbers = #tpu.dot_dimension_numbers<[1], [0], [0], [1], [0, 0, 1, 1], [], []>} : vector<16x32xbf16>, vector<32x64xbf16>, vector<16x64xf32> -> vector<16x64xf32>
    %16 = vector.extract_strided_slice %5 {offsets = [0, 32], sizes = [1, 64], strides = [1, 1]} : vector<1x96xf32> to vector<1x64xf32>
    %17 = vector.broadcast %16 : vector<1x64xf32> to vector<16x64xf32>
    %18 = arith.addf %15, %17 : vector<16x64xf32>
    %19 = vector.extract_strided_slice %18 {offsets = [0, 0], sizes = [16, 32], strides = [1, 1]} : vector<16x64xf32> to vector<16x32xf32>
    %20 = vector.extract_strided_slice %18 {offsets = [0, 32], sizes = [16, 32], strides = [1, 1]} : vector<16x64xf32> to vector<16x32xf32>
    %c0_10 = arith.constant 0 : index
    %c0_11 = arith.constant 0 : index
    %21 = vector.load %arg3[%c0_10, %c0_11] : memref<16x16xf32, #tpu.memory_space<vmem>>, vector<16x16xf32>
    %22 = vector.extract_strided_slice %13 {offsets = [0, 0], sizes = [16, 8], strides = [1, 1]} : vector<16x32xf32> to vector<16x8xf32>
    %23 = arith.truncf %22 : vector<16x8xf32> to vector<16x8xbf16>
    %24 = vector.extract_strided_slice %19 {offsets = [0, 0], sizes = [16, 8], strides = [1, 1]} : vector<16x32xf32> to vector<16x8xf32>
    %25 = arith.truncf %24 : vector<16x8xf32> to vector<16x8xbf16>
    %26 = vector.extract_strided_slice %20 {offsets = [0, 0], sizes = [16, 8], strides = [1, 1]} : vector<16x32xf32> to vector<16x8xf32>
    %27 = arith.truncf %26 : vector<16x8xf32> to vector<16x8xbf16>
    %cst_12 = arith.constant dense<0.000000e+00> : vector<16x16xf32>
    %28 = tpu.matmul %23, %25, %cst_12 {dimension_numbers = #tpu.dot_dimension_numbers<[1], [1], [0], [0], [0, 0, 1, 0], [], []>} : vector<16x8xbf16>, vector<16x8xbf16>, vector<16x16xf32> -> vector<16x16xf32>
    %cst_13 = arith.constant 0.353553385 : f32
    %29 = vector.broadcast %cst_13 : f32 to vector<16x16xf32>
    %30 = arith.mulf %28, %29 : vector<16x16xf32>
    %31 = arith.addf %30, %21 : vector<16x16xf32>
    %cst_14 = arith.constant dense<0xFF800000> : vector<16xf32>
    %32 = vector.multi_reduction <maximumf>, %31, %cst_14 [1] : vector<16x16xf32> to vector<16xf32>
    %33 = vector.shape_cast %32 : vector<16xf32> to vector<16x1xf32>
    %34 = vector.broadcast %33 : vector<16x1xf32> to vector<16x16xf32>
    %35 = arith.subf %31, %34 : vector<16x16xf32>
    %36 = math.exp %35 : vector<16x16xf32>
    %cst_15 = arith.constant dense<0.000000e+00> : vector<16xf32>
    %37 = vector.multi_reduction <add>, %36, %cst_15 [1] : vector<16x16xf32> to vector<16xf32>
    %38 = vector.shape_cast %37 : vector<16xf32> to vector<16x1xf32>
    %39 = tpu.reciprocal %38 {approx = true} : vector<16x1xf32> -> vector<16x1xf32>
    %40 = vector.broadcast %39 : vector<16x1xf32> to vector<16x16xf32>
    %41 = arith.mulf %36, %40 : vector<16x16xf32>
    %42 = arith.truncf %41 : vector<16x16xf32> to vector<16x16xbf16>
    %cst_16 = arith.constant dense<0.000000e+00> : vector<16x8xf32>
    %43 = tpu.matmul %42, %27, %cst_16 {dimension_numbers = #tpu.dot_dimension_numbers<[1], [0], [0], [1], [0, 0, 1, 1], [], []>} : vector<16x16xbf16>, vector<16x8xbf16>, vector<16x8xf32> -> vector<16x8xf32>
    %44 = vector.extract_strided_slice %13 {offsets = [0, 8], sizes = [16, 8], strides = [1, 1]} : vector<16x32xf32> to vector<16x8xf32>
    %45 = arith.truncf %44 : vector<16x8xf32> to vector<16x8xbf16>
    %46 = vector.extract_strided_slice %19 {offsets = [0, 8], sizes = [16, 8], strides = [1, 1]} : vector<16x32xf32> to vector<16x8xf32>
    %47 = arith.truncf %46 : vector<16x8xf32> to vector<16x8xbf16>
    %48 = vector.extract_strided_slice %20 {offsets = [0, 8], sizes = [16, 8], strides = [1, 1]} : vector<16x32xf32> to vector<16x8xf32>
    %49 = arith.truncf %48 : vector<16x8xf32> to vector<16x8xbf16>
    %cst_17 = arith.constant dense<0.000000e+00> : vector<16x16xf32>
    %50 = tpu.matmul %45, %47, %cst_17 {dimension_numbers = #tpu.dot_dimension_numbers<[1], [1], [0], [0], [0, 0, 1, 0], [], []>} : vector<16x8xbf16>, vector<16x8xbf16>, vector<16x16xf32> -> vector<16x16xf32>
    %cst_18 = arith.constant 0.353553385 : f32
    %51 = vector.broadcast %cst_18 : f32 to vector<16x16xf32>
    %52 = arith.mulf %50, %51 : vector<16x16xf32>
    %53 = arith.addf %52, %21 : vector<16x16xf32>
    %cst_19 = arith.constant dense<0xFF800000> : vector<16xf32>
    %54 = vector.multi_reduction <maximumf>, %53, %cst_19 [1] : vector<16x16xf32> to vector<16xf32>
    %55 = vector.shape_cast %54 : vector<16xf32> to vector<16x1xf32>
    %56 = vector.broadcast %55 : vector<16x1xf32> to vector<16x16xf32>
    %57 = arith.subf %53, %56 : vector<16x16xf32>
    %58 = math.exp %57 : vector<16x16xf32>
    %cst_20 = arith.constant dense<0.000000e+00> : vector<16xf32>
    %59 = vector.multi_reduction <add>, %58, %cst_20 [1] : vector<16x16xf32> to vector<16xf32>
    %60 = vector.shape_cast %59 : vector<16xf32> to vector<16x1xf32>
    %61 = tpu.reciprocal %60 {approx = true} : vector<16x1xf32> -> vector<16x1xf32>
    %62 = vector.broadcast %61 : vector<16x1xf32> to vector<16x16xf32>
    %63 = arith.mulf %58, %62 : vector<16x16xf32>
    %64 = arith.truncf %63 : vector<16x16xf32> to vector<16x16xbf16>
    %cst_21 = arith.constant dense<0.000000e+00> : vector<16x8xf32>
    %65 = tpu.matmul %64, %49, %cst_21 {dimension_numbers = #tpu.dot_dimension_numbers<[1], [0], [0], [1], [0, 0, 1, 1], [], []>} : vector<16x16xbf16>, vector<16x8xbf16>, vector<16x8xf32> -> vector<16x8xf32>
    %66 = vector.extract_strided_slice %13 {offsets = [0, 16], sizes = [16, 8], strides = [1, 1]} : vector<16x32xf32> to vector<16x8xf32>
    %67 = arith.truncf %66 : vector<16x8xf32> to vector<16x8xbf16>
    %68 = vector.extract_strided_slice %19 {offsets = [0, 16], sizes = [16, 8], strides = [1, 1]} : vector<16x32xf32> to vector<16x8xf32>
    %69 = arith.truncf %68 : vector<16x8xf32> to vector<16x8xbf16>
    %70 = vector.extract_strided_slice %20 {offsets = [0, 16], sizes = [16, 8], strides = [1, 1]} : vector<16x32xf32> to vector<16x8xf32>
    %71 = arith.truncf %70 : vector<16x8xf32> to vector<16x8xbf16>
    %cst_22 = arith.constant dense<0.000000e+00> : vector<16x16xf32>
    %72 = tpu.matmul %67, %69, %cst_22 {dimension_numbers = #tpu.dot_dimension_numbers<[1], [1], [0], [0], [0, 0, 1, 0], [], []>} : vector<16x8xbf16>, vector<16x8xbf16>, vector<16x16xf32> -> vector<16x16xf32>
    %cst_23 = arith.constant 0.353553385 : f32
    %73 = vector.broadcast %cst_23 : f32 to vector<16x16xf32>
    %74 = arith.mulf %72, %73 : vector<16x16xf32>
    %75 = arith.addf %74, %21 : vector<16x16xf32>
    %cst_24 = arith.constant dense<0xFF800000> : vector<16xf32>
    %76 = vector.multi_reduction <maximumf>, %75, %cst_24 [1] : vector<16x16xf32> to vector<16xf32>
    %77 = vector.shape_cast %76 : vector<16xf32> to vector<16x1xf32>
    %78 = vector.broadcast %77 : vector<16x1xf32> to vector<16x16xf32>
    %79 = arith.subf %75, %78 : vector<16x16xf32>
    %80 = math.exp %79 : vector<16x16xf32>
    %cst_25 = arith.constant dense<0.000000e+00> : vector<16xf32>
    %81 = vector.multi_reduction <add>, %80, %cst_25 [1] : vector<16x16xf32> to vector<16xf32>
    %82 = vector.shape_cast %81 : vector<16xf32> to vector<16x1xf32>
    %83 = tpu.reciprocal %82 {approx = true} : vector<16x1xf32> -> vector<16x1xf32>
    %84 = vector.broadcast %83 : vector<16x1xf32> to vector<16x16xf32>
    %85 = arith.mulf %80, %84 : vector<16x16xf32>
    %86 = arith.truncf %85 : vector<16x16xf32> to vector<16x16xbf16>
    %cst_26 = arith.constant dense<0.000000e+00> : vector<16x8xf32>
    %87 = tpu.matmul %86, %71, %cst_26 {dimension_numbers = #tpu.dot_dimension_numbers<[1], [0], [0], [1], [0, 0, 1, 1], [], []>} : vector<16x16xbf16>, vector<16x8xbf16>, vector<16x8xf32> -> vector<16x8xf32>
    %88 = vector.extract_strided_slice %13 {offsets = [0, 24], sizes = [16, 8], strides = [1, 1]} : vector<16x32xf32> to vector<16x8xf32>
    %89 = arith.truncf %88 : vector<16x8xf32> to vector<16x8xbf16>
    %90 = vector.extract_strided_slice %19 {offsets = [0, 24], sizes = [16, 8], strides = [1, 1]} : vector<16x32xf32> to vector<16x8xf32>
    %91 = arith.truncf %90 : vector<16x8xf32> to vector<16x8xbf16>
    %92 = vector.extract_strided_slice %20 {offsets = [0, 24], sizes = [16, 8], strides = [1, 1]} : vector<16x32xf32> to vector<16x8xf32>
    %93 = arith.truncf %92 : vector<16x8xf32> to vector<16x8xbf16>
    %cst_27 = arith.constant dense<0.000000e+00> : vector<16x16xf32>
    %94 = tpu.matmul %89, %91, %cst_27 {dimension_numbers = #tpu.dot_dimension_numbers<[1], [1], [0], [0], [0, 0, 1, 0], [], []>} : vector<16x8xbf16>, vector<16x8xbf16>, vector<16x16xf32> -> vector<16x16xf32>
    %cst_28 = arith.constant 0.353553385 : f32
    %95 = vector.broadcast %cst_28 : f32 to vector<16x16xf32>
    %96 = arith.mulf %94, %95 : vector<16x16xf32>
    %97 = arith.addf %96, %21 : vector<16x16xf32>
    %cst_29 = arith.constant dense<0xFF800000> : vector<16xf32>
    %98 = vector.multi_reduction <maximumf>, %97, %cst_29 [1] : vector<16x16xf32> to vector<16xf32>
    %99 = vector.shape_cast %98 : vector<16xf32> to vector<16x1xf32>
    %100 = vector.broadcast %99 : vector<16x1xf32> to vector<16x16xf32>
    %101 = arith.subf %97, %100 : vector<16x16xf32>
    %102 = math.exp %101 : vector<16x16xf32>
    %cst_30 = arith.constant dense<0.000000e+00> : vector<16xf32>
    %103 = vector.multi_reduction <add>, %102, %cst_30 [1] : vector<16x16xf32> to vector<16xf32>
    %104 = vector.shape_cast %103 : vector<16xf32> to vector<16x1xf32>
    %105 = tpu.reciprocal %104 {approx = true} : vector<16x1xf32> -> vector<16x1xf32>
    %106 = vector.broadcast %105 : vector<16x1xf32> to vector<16x16xf32>
    %107 = arith.mulf %102, %106 : vector<16x16xf32>
    %108 = arith.truncf %107 : vector<16x16xf32> to vector<16x16xbf16>
    %cst_31 = arith.constant dense<0.000000e+00> : vector<16x8xf32>
    %109 = tpu.matmul %108, %93, %cst_31 {dimension_numbers = #tpu.dot_dimension_numbers<[1], [0], [0], [1], [0, 0, 1, 1], [], []>} : vector<16x16xbf16>, vector<16x8xbf16>, vector<16x8xf32> -> vector<16x8xf32>
    %110 = tpu.concatenate %43, %65, %87, %109 in 1 : vector<16x8xf32>, vector<16x8xf32>, vector<16x8xf32>, vector<16x8xf32> -> vector<16x32xf32>
    %111 = arith.truncf %110 : vector<16x32xf32> to vector<16x32xbf16>
    %c0_32 = arith.constant 0 : index
    %c0_33 = arith.constant 0 : index
    %112 = vector.load %arg6[%c0_32, %c0_33] : memref<32x32xf32, #tpu.memory_space<vmem>>, vector<32x32xf32>
    %113 = arith.truncf %112 : vector<32x32xf32> to vector<32x32xbf16>
    %cst_34 = arith.constant dense<0.000000e+00> : vector<16x32xf32>
    %114 = tpu.matmul %111, %113, %cst_34 {dimension_numbers = #tpu.dot_dimension_numbers<[1], [0], [0], [1], [0, 0, 1, 1], [], []>} : vector<16x32xbf16>, vector<32x32xbf16>, vector<16x32xf32> -> vector<16x32xf32>
    %c0_35 = arith.constant 0 : index
    %c0_36 = arith.constant 0 : index
    %115 = vector.load %arg7[%c0_35, %c0_36] : memref<1x32xf32, #tpu.memory_space<vmem>>, vector<1x32xf32>
    %116 = vector.broadcast %115 : vector<1x32xf32> to vector<16x32xf32>
    %117 = arith.addf %114, %116 : vector<16x32xf32>
    %118 = arith.addf %1, %117 : vector<16x32xf32>
    %c0_37 = arith.constant 0 : index
    %c0_38 = arith.constant 0 : index
    %119 = vector.load %arg8[%c0_37, %c0_38] : memref<1x32xf32, #tpu.memory_space<vmem>>, vector<1x32xf32>
    %c0_39 = arith.constant 0 : index
    %c0_40 = arith.constant 0 : index
    %120 = vector.load %arg9[%c0_39, %c0_40] : memref<1x32xf32, #tpu.memory_space<vmem>>, vector<1x32xf32>
    %cst_41 = arith.constant dense<0.000000e+00> : vector<16xf32>
    %121 = vector.multi_reduction <add>, %118, %cst_41 [1] : vector<16x32xf32> to vector<16xf32>
    %122 = vector.shape_cast %121 : vector<16xf32> to vector<16x1xf32>
    %cst_42 = arith.constant 3.200000e+01 : f32
    %123 = vector.broadcast %cst_42 : f32 to vector<16x1xf32>
    %124 = arith.divf %122, %123 : vector<16x1xf32>
    %125 = vector.broadcast %124 : vector<16x1xf32> to vector<16x32xf32>
    %126 = arith.subf %118, %125 : vector<16x32xf32>
    %127 = arith.mulf %126, %126 : vector<16x32xf32>
    %cst_43 = arith.constant dense<0.000000e+00> : vector<16xf32>
    %128 = vector.multi_reduction <add>, %127, %cst_43 [1] : vector<16x32xf32> to vector<16xf32>
    %129 = vector.shape_cast %128 : vector<16xf32> to vector<16x1xf32>
    %cst_44 = arith.constant 3.200000e+01 : f32
    %130 = vector.broadcast %cst_44 : f32 to vector<16x1xf32>
    %131 = arith.divf %129, %130 : vector<16x1xf32>
    %cst_45 = arith.constant 9.99999974E-6 : f32
    %132 = vector.broadcast %cst_45 : f32 to vector<16x1xf32>
    %133 = arith.addf %131, %132 : vector<16x1xf32>
    %134 = math.rsqrt %133 : vector<16x1xf32>
    %135 = vector.broadcast %134 : vector<16x1xf32> to vector<16x32xf32>
    %136 = arith.mulf %126, %135 : vector<16x32xf32>
    %137 = vector.broadcast %119 : vector<1x32xf32> to vector<16x32xf32>
    %138 = arith.mulf %136, %137 : vector<16x32xf32>
    %139 = vector.broadcast %120 : vector<1x32xf32> to vector<16x32xf32>
    %140 = arith.addf %138, %139 : vector<16x32xf32>
    %141 = vector.shape_cast %140 : vector<16x32xf32> to vector<1x16x32xf32>
    %c0_46 = arith.constant 0 : index
    %c0_47 = arith.constant 0 : index
    %c0_48 = arith.constant 0 : index
    %142 = vector.load %arg10[%c0_46, %c0_47, %c0_48] : memref<1x16x32xf32, #tpu.memory_space<vmem>>, vector<1x16x32xf32>
    tpu.vector_store %arg10[%c0_46, %c0_47, %c0_48], %141 {strides = array<i32>} : memref<1x16x32xf32, #tpu.memory_space<vmem>>, vector<1x16x32xf32>,
    return
  }
  func.func @transform_0(%arg0: i32) -> (i32, i32, i32) {
    %c0_i32 = arith.constant 0 : i32
    %c0_i32_0 = arith.constant 0 : i32
    %c0_i32_1 = arith.constant 0 : i32
    return %arg0, %c0_i32, %c0_i32_0 : i32, i32, i32
  }
  func.func @transform_1(%arg0: i32) -> (i32, i32, i32) {
    %c0_i32 = arith.constant 0 : i32
    %c0_i32_0 = arith.constant 0 : i32
    %c0_i32_1 = arith.constant 0 : i32
    return %arg0, %c0_i32, %c0_i32_0 : i32, i32, i32
  }
  func.func @transform_2(%arg0: i32) -> (i32, i32) {
    %c0_i32 = arith.constant 0 : i32
    %c0_i32_0 = arith.constant 0 : i32
    %c0_i32_1 = arith.constant 0 : i32
    return %c0_i32, %c0_i32_0 : i32, i32
  }
  func.func @transform_3(%arg0: i32) -> (i32, i32) {
    %c0_i32 = arith.constant 0 : i32
    %c0_i32_0 = arith.constant 0 : i32
    %c0_i32_1 = arith.constant 0 : i32
    return %c0_i32, %c0_i32_0 : i32, i32
  }
  func.func @transform_4(%arg0: i32) -> (i32, i32) {
    %c0_i32 = arith.constant 0 : i32
    %c0_i32_0 = arith.constant 0 : i32
    %c0_i32_1 = arith.constant 0 : i32
    return %c0_i32, %c0_i32_0 : i32, i32
  }
  func.func @transform_5(%arg0: i32) -> (i32, i32) {
    %c0_i32 = arith.constant 0 : i32
    %c0_i32_0 = arith.constant 0 : i32
    %c0_i32_1 = arith.constant 0 : i32
    return %c0_i32, %c0_i32_0 : i32, i32
  }
  func.func @transform_6(%arg0: i32) -> (i32, i32) {
    %c0_i32 = arith.constant 0 : i32
    %c0_i32_0 = arith.constant 0 : i32
    %c0_i32_1 = arith.constant 0 : i32
    return %c0_i32, %c0_i32_0 : i32, i32
  }
  func.func @transform_7(%arg0: i32) -> (i32, i32) {
    %c0_i32 = arith.constant 0 : i32
    %c0_i32_0 = arith.constant 0 : i32
    %c0_i32_1 = arith.constant 0 : i32
    return %c0_i32, %c0_i32_0 : i32, i32
  }
  func.func @transform_8(%arg0: i32) -> (i32, i32) {
    %c0_i32 = arith.constant 0 : i32
    %c0_i32_0 = arith.constant 0 : i32
    %c0_i32_1 = arith.constant 0 : i32
    return %c0_i32, %c0_i32_0 : i32, i32
  }
  func.func @transform_9(%arg0: i32) -> (i32, i32, i32) {
    %c0_i32 = arith.constant 0 : i32
    %c0_i32_0 = arith.constant 0 : i32
    %c0_i32_1 = arith.constant 0 : i32
    return %arg0, %c0_i32, %c0_i32_0 : i32, i32, i32
  }
}

module attributes {stable_mosaic.version = 11 : i64} {
  func.func @_ln_proj_kernel(%arg0: i32, %arg1: memref<1x16x32xf32, #tpu.memory_space<vmem>>, %arg2: memref<1x32xf32, #tpu.memory_space<vmem>>, %arg3: memref<1x32xf32, #tpu.memory_space<vmem>>, %arg4: memref<32x4xf32, #tpu.memory_space<vmem>>, %arg5: memref<1x4xf32, #tpu.memory_space<vmem>>, %arg6: memref<1x16x4xf32, #tpu.memory_space<vmem>>) attributes {dimension_semantics = [#tpu.dimension_semantics<parallel>], iteration_bounds = array<i64: 2>, scalar_prefetch = 0 : i64, scratch_operands = 0 : i64, tpu.core_type = #tpu.core_type<tc>, window_params = [{transform_indices = @transform_0, window_bounds = array<i64: 1, 16, 32>}, {pipeline_mode = #tpu.pipeline_mode<synchronous>, transform_indices = @transform_1, window_bounds = array<i64: 1, 32>}, {pipeline_mode = #tpu.pipeline_mode<synchronous>, transform_indices = @transform_2, window_bounds = array<i64: 1, 32>}, {pipeline_mode = #tpu.pipeline_mode<synchronous>, transform_indices = @transform_3, window_bounds = array<i64: 32, 4>}, {pipeline_mode = #tpu.pipeline_mode<synchronous>, transform_indices = @transform_4, window_bounds = array<i64: 1, 4>}, {transform_indices = @transform_5, window_bounds = array<i64: 1, 16, 4>}]} {
    %c0 = arith.constant 0 : index
    %c0_0 = arith.constant 0 : index
    %c0_1 = arith.constant 0 : index
    %0 = vector.load %arg1[%c0, %c0_0, %c0_1] : memref<1x16x32xf32, #tpu.memory_space<vmem>>, vector<1x16x32xf32>
    %1 = vector.shape_cast %0 : vector<1x16x32xf32> to vector<16x32xf32>
    %c0_2 = arith.constant 0 : index
    %c0_3 = arith.constant 0 : index
    %2 = vector.load %arg2[%c0_2, %c0_3] : memref<1x32xf32, #tpu.memory_space<vmem>>, vector<1x32xf32>
    %c0_4 = arith.constant 0 : index
    %c0_5 = arith.constant 0 : index
    %3 = vector.load %arg3[%c0_4, %c0_5] : memref<1x32xf32, #tpu.memory_space<vmem>>, vector<1x32xf32>
    %cst = arith.constant dense<0.000000e+00> : vector<16xf32>
    %4 = vector.multi_reduction <add>, %1, %cst [1] : vector<16x32xf32> to vector<16xf32>
    %5 = vector.shape_cast %4 : vector<16xf32> to vector<16x1xf32>
    %cst_6 = arith.constant 3.200000e+01 : f32
    %6 = vector.broadcast %cst_6 : f32 to vector<16x1xf32>
    %7 = arith.divf %5, %6 : vector<16x1xf32>
    %8 = vector.broadcast %7 : vector<16x1xf32> to vector<16x32xf32>
    %9 = arith.subf %1, %8 : vector<16x32xf32>
    %10 = arith.mulf %9, %9 : vector<16x32xf32>
    %cst_7 = arith.constant dense<0.000000e+00> : vector<16xf32>
    %11 = vector.multi_reduction <add>, %10, %cst_7 [1] : vector<16x32xf32> to vector<16xf32>
    %12 = vector.shape_cast %11 : vector<16xf32> to vector<16x1xf32>
    %cst_8 = arith.constant 3.200000e+01 : f32
    %13 = vector.broadcast %cst_8 : f32 to vector<16x1xf32>
    %14 = arith.divf %12, %13 : vector<16x1xf32>
    %cst_9 = arith.constant 9.99999974E-6 : f32
    %15 = vector.broadcast %cst_9 : f32 to vector<16x1xf32>
    %16 = arith.addf %14, %15 : vector<16x1xf32>
    %17 = math.rsqrt %16 : vector<16x1xf32>
    %18 = vector.broadcast %17 : vector<16x1xf32> to vector<16x32xf32>
    %19 = arith.mulf %9, %18 : vector<16x32xf32>
    %20 = vector.broadcast %2 : vector<1x32xf32> to vector<16x32xf32>
    %21 = arith.mulf %19, %20 : vector<16x32xf32>
    %22 = vector.broadcast %3 : vector<1x32xf32> to vector<16x32xf32>
    %23 = arith.addf %21, %22 : vector<16x32xf32>
    %24 = arith.truncf %23 : vector<16x32xf32> to vector<16x32xbf16>
    %c0_10 = arith.constant 0 : index
    %c0_11 = arith.constant 0 : index
    %25 = vector.load %arg4[%c0_10, %c0_11] : memref<32x4xf32, #tpu.memory_space<vmem>>, vector<32x4xf32>
    %26 = arith.truncf %25 : vector<32x4xf32> to vector<32x4xbf16>
    %cst_12 = arith.constant dense<0.000000e+00> : vector<16x4xf32>
    %27 = tpu.matmul %24, %26, %cst_12 {dimension_numbers = #tpu.dot_dimension_numbers<[1], [0], [0], [1], [0, 0, 1, 1], [], []>} : vector<16x32xbf16>, vector<32x4xbf16>, vector<16x4xf32> -> vector<16x4xf32>
    %c0_13 = arith.constant 0 : index
    %c0_14 = arith.constant 0 : index
    %28 = vector.load %arg5[%c0_13, %c0_14] : memref<1x4xf32, #tpu.memory_space<vmem>>, vector<1x4xf32>
    %29 = vector.broadcast %28 : vector<1x4xf32> to vector<16x4xf32>
    %30 = arith.addf %27, %29 : vector<16x4xf32>
    %31 = vector.shape_cast %30 : vector<16x4xf32> to vector<1x16x4xf32>
    %c0_15 = arith.constant 0 : index
    %c0_16 = arith.constant 0 : index
    %c0_17 = arith.constant 0 : index
    %32 = vector.load %arg6[%c0_15, %c0_16, %c0_17] : memref<1x16x4xf32, #tpu.memory_space<vmem>>, vector<1x16x4xf32>
    tpu.vector_store %arg6[%c0_15, %c0_16, %c0_17], %31 {strides = array<i32>} : memref<1x16x4xf32, #tpu.memory_space<vmem>>, vector<1x16x4xf32>,
    return
  }
  func.func @transform_0(%arg0: i32) -> (i32, i32, i32) {
    %c0_i32 = arith.constant 0 : i32
    %c0_i32_0 = arith.constant 0 : i32
    %c0_i32_1 = arith.constant 0 : i32
    return %arg0, %c0_i32, %c0_i32_0 : i32, i32, i32
  }
  func.func @transform_1(%arg0: i32) -> (i32, i32) {
    %c0_i32 = arith.constant 0 : i32
    %c0_i32_0 = arith.constant 0 : i32
    %c0_i32_1 = arith.constant 0 : i32
    return %c0_i32, %c0_i32_0 : i32, i32
  }
  func.func @transform_2(%arg0: i32) -> (i32, i32) {
    %c0_i32 = arith.constant 0 : i32
    %c0_i32_0 = arith.constant 0 : i32
    %c0_i32_1 = arith.constant 0 : i32
    return %c0_i32, %c0_i32_0 : i32, i32
  }
  func.func @transform_3(%arg0: i32) -> (i32, i32) {
    %c0_i32 = arith.constant 0 : i32
    %c0_i32_0 = arith.constant 0 : i32
    %c0_i32_1 = arith.constant 0 : i32
    return %c0_i32, %c0_i32_0 : i32, i32
  }
  func.func @transform_4(%arg0: i32) -> (i32, i32) {
    %c0_i32 = arith.constant 0 : i32
    %c0_i32_0 = arith.constant 0 : i32
    %c0_i32_1 = arith.constant 0 : i32
    return %c0_i32, %c0_i32_0 : i32, i32
  }
  func.func @transform_5(%arg0: i32) -> (i32, i32, i32) {
    %c0_i32 = arith.constant 0 : i32
    %c0_i32_0 = arith.constant 0 : i32
    %c0_i32_1 = arith.constant 0 : i32
    return %arg0, %c0_i32, %c0_i32_0 : i32, i32, i32
  }
}

</mosaic_0001>

<llo_original>
// kernel: informer_forward.17
$region0: #{informer_forward.17}
  #allocation0 [shape = 'u32[]', space=smem, size = 0x4, offset = 0x4, fixed_abs, tag = 'smem constant byte address 0x4 - core index']
  #allocation1 [shape = 'u32[144,128]{1,0:T(1,128)}', space=vmem, size = 0x12000, scoped, tag = 'internal scratch']
  %s0 = inlined_call_operand.vmem [shape: f32[2,16,12], index: 0, kind: input, shape index: {}]
  %s1 = inlined_call_operand.vmem [shape: f32[12,32], index: 1, kind: input, shape index: {}]
  %s2 = inlined_call_operand.vmem [shape: f32[1,32], index: 2, kind: input, shape index: {}]
  %s3 = inlined_call_operand.vmem [shape: f32[16,32], index: 3, kind: input, shape index: {}]
  %s4 = inlined_call_operand.vmem [shape: f32[2,16,32], index: 4, kind: output, shape index: {}]
  %s5 = sld [smem:[#allocation0]]
  $region49: #{informer_forward.17} parent=0
    _
  %s7 = ssub.s32 1, %s5
  %s8 = scalar_select 0, %s7, %s5
  loop: start=0, step=1, limit=4
  $region2: #{informer_forward.17} parent=0 // loop_pre_header
    _
  $region3: #{informer_forward.17} parent=0 // loop_header
    %s10 = sphi 0, %s14
    %p11 = scmp.ge.s32.totalorder %s10, 4
    %s20 = sphi 0, %s22
    %s23 = sphi 0, %s20
    %s24 = sphi 0, %s23
    %s40 = sphi 0, %s24
    %s44 = sphi 0, %s44
    %s46 = sphi 0, %s44
    %s47 = sphi 0, %s46
    %s61 = sphi 0, %s47
    %s65 = sphi 0, %s65
    %s67 = sphi 0, %s65
    %s68 = sphi 0, %s67
    %s82 = sphi 0, %s68
    %s86 = sphi 0, %s86
    %s88 = sphi 0, %s86
    %s89 = sphi 0, %s88
    %s103 = sphi 0, %s89
    %s109 = sphi 0, %s111
    %s112 = sphi 0, %s109
    %s113 = sphi 0, %s112
    %s129 = sphi 0, %s113
  $region4: #{informer_forward.17} parent=0 // loop_header_branch
    %13 = sbr.rel (%p11) target = $region8
  $region5: #{informer_forward.17} parent=0 // loop_body
    %s15 = ssub.s32 %s10, 1
    %s16 = ssub.s32 %s10, 2
    %s17 = sadd.s32 %s10, 1
    %s18 = ssub.s32 %s10, %s17
    %p19 = scmp.eq.s32.totalorder %s18, 0
    %s21 = sadd.s32 %s20, 1
    %s22 = scalar_select %p19, %s20, %s21
    %p25 = pneg %p19
    %p26 = scmp.eq.s32.totalorder %s10, 1
    %p27 = por %p25, %p26
    %p28 = scmp.ne.s32.totalorder %s20, %s23
    %p29 = scmp.eq.s32.totalorder %s10, 0
    %p30 = por %p28, %p29
    %p31 = scmp.ne.s32.totalorder %s20, %s23
    %p32 = scmp.eq.s32.totalorder %s15, 1
    %p33 = por %p31, %p32
    %p34 = scmp.ne.s32.totalorder %s23, %s24
    %p35 = scmp.eq.s32.totalorder %s15, 0
    %p36 = por %p34, %p35
    %p37 = scmp.ne.s32.totalorder %s23, %s24
    %p38 = scmp.eq.s32.totalorder %s16, 1
    %p39 = por %p37, %p38
    %p41 = scmp.ne.s32.totalorder %s24, %s40
    %p42 = scmp.eq.s32.totalorder %s16, 0
    %p43 = por %p41, %p42
    %s45 = sadd.s32 %s44, 1
    %p48 = scmp.eq.s32.totalorder %s10, 1
    %p49 = scmp.ne.s32.totalorder %s44, %s46
    %p50 = scmp.eq.s32.totalorder %s10, 0
    %p51 = por %p49, %p50
    %p52 = scmp.ne.s32.totalorder %s44, %s46
    %p53 = scmp.eq.s32.totalorder %s15, 1
    %p54 = por %p52, %p53
    %p55 = scmp.ne.s32.totalorder %s46, %s47
    %p56 = scmp.eq.s32.totalorder %s15, 0
    %p57 = por %p55, %p56
    %p58 = scmp.ne.s32.totalorder %s46, %s47
    %p59 = scmp.eq.s32.totalorder %s16, 1
    %p60 = por %p58, %p59
    %p62 = scmp.ne.s32.totalorder %s47, %s61
    %p63 = scmp.eq.s32.totalorder %s16, 0
    %p64 = por %p62, %p63
    %s66 = sadd.s32 %s65, 1
    %p69 = scmp.eq.s32.totalorder %s10, 1
    %p70 = scmp.ne.s32.totalorder %s65, %s67
    %p71 = scmp.eq.s32.totalorder %s10, 0
    %p72 = por %p70, %p71
    %p73 = scmp.ne.s32.totalorder %s65, %s67
    %p74 = scmp.eq.s32.totalorder %s15, 1
    %p75 = por %p73, %p74
    %p76 = scmp.ne.s32.totalorder %s67, %s68
    %p77 = scmp.eq.s32.totalorder %s15, 0
    %p78 = por %p76, %p77
    %p79 = scmp.ne.s32.totalorder %s67, %s68
    %p80 = scmp.eq.s32.totalorder %s16, 1
    %p81 = por %p79, %p80
    %p83 = scmp.ne.s32.totalorder %s68, %s82
    %p84 = scmp.eq.s32.totalorder %s16, 0
    %p85 = por %p83, %p84
    %s87 = sadd.s32 %s86, 1
    %p90 = scmp.eq.s32.totalorder %s10, 1
    %p91 = scmp.ne.s32.totalorder %s86, %s88
    %p92 = scmp.eq.s32.totalorder %s10, 0
    %p93 = por %p91, %p92
    %p94 = scmp.ne.s32.totalorder %s86, %s88
    %p95 = scmp.eq.s32.totalorder %s15, 1
    %p96 = por %p94, %p95
    %p97 = scmp.ne.s32.totalorder %s88, %s89
    %p98 = scmp.eq.s32.totalorder %s15, 0
    %p99 = por %p97, %p98
    %p100 = scmp.ne.s32.totalorder %s88, %s89
    %p101 = scmp.eq.s32.totalorder %s16, 1
    %p102 = por %p100, %p101
    %p104 = scmp.ne.s32.totalorder %s89, %s103
    %p105 = scmp.eq.s32.totalorder %s16, 0
    %p106 = por %p104, %p105
    %s107 = ssub.s32 %s10, %s17
    %p108 = scmp.eq.s32.totalorder %s107, 0
    %s110 = sadd.s32 %s109, 1
    %s111 = scalar_select %p108, %s109, %s110
    %p114 = pneg %p108
    %p115 = scmp.eq.s32.totalorder %s10, 1
    %p116 = por %p114, %p115
    %p117 = scmp.ne.s32.totalorder %s109, %s112
    %p118 = scmp.eq.s32.totalorder %s10, 0
    %p119 = por %p117, %p118
    %p120 = scmp.ne.s32.totalorder %s109, %s112
    %p121 = scmp.eq.s32.totalorder %s15, 1
    %p122 = por %p120, %p121
    %p123 = scmp.ne.s32.totalorder %s112, %s113
    %p124 = scmp.eq.s32.totalorder %s15, 0
    %p125 = por %p123, %p124
    %p126 = scmp.ne.s32.totalorder %s112, %s113
    %p127 = scmp.eq.s32.totalorder %s16, 1
    %p128 = por %p126, %p127
    %p130 = scmp.ne.s32.totalorder %s113, %s129
    %p131 = scmp.eq.s32.totalorder %s16, 0
    %p132 = por %p130, %p131
    %p133 = scmp.le.s32.totalorder 1, %s10
    %p134 = scmp.lt.s32.totalorder %s10, 3
    %p135 = pnand %p133, %p134
    %p136 = pneg %p135
    // Predicated region
    $region9: #{informer_forward.17} parent=5 // pred_check
      _
    $region10: #{informer_forward.17} parent=5 // pred_check_branch
      %138 = sbr.rel (%p135) target = $region12
    $region11: #{informer_forward.17} parent=5 // pred_region
      %s139 = ssub.s32 %s10, 1
      // Predicated region
      $region13: #{informer_forward.17} parent=11 // pred_check
        %p140 = pneg %p57
      $region14: #{informer_forward.17} parent=11 // pred_check_branch
        %142 = sbr.rel (%p140) target = $region16
      $region15: #{informer_forward.17} parent=11 // pred_region
        _
      $region16: #{informer_forward.17} parent=11 // pred_fallthru
        _
      // Predicated region
      $region17: #{informer_forward.17} parent=11 // pred_check
        %p143 = pneg %p78
      $region18: #{informer_forward.17} parent=11 // pred_check_branch
        %145 = sbr.rel (%p143) target = $region20
      $region19: #{informer_forward.17} parent=11 // pred_region
        _
      $region20: #{informer_forward.17} parent=11 // pred_fallthru
        _
      // Predicated region
      $region21: #{informer_forward.17} parent=11 // pred_check
        %p146 = pneg %p99
      $region22: #{informer_forward.17} parent=11 // pred_check_branch
        %148 = sbr.rel (%p146) target = $region24
      $region23: #{informer_forward.17} parent=11 // pred_region
        _
      $region24: #{informer_forward.17} parent=11 // pred_fallthru
        _
    $region12: #{informer_forward.17} parent=5 // pred_fallthru
      _
    %p149 = scmp.lt.s32.totalorder %s10, 2
    // Predicated region
    $region25: #{informer_forward.17} parent=5 // pred_check
      %p150 = pneg %p149
    $region26: #{informer_forward.17} parent=5 // pred_check_branch
      %152 = sbr.rel (%p150) target = $region28
    $region27: #{informer_forward.17} parent=5 // pred_region
      // Predicated region
      $region29: #{informer_forward.17} parent=27 // pred_check
        %p153 = pneg %p30
      $region30: #{informer_forward.17} parent=27 // pred_check_branch
        %155 = sbr.rel (%p153) target = $region32
      $region31: #{informer_forward.17} parent=27 // pred_region
        %p156 = scmp.lt.s32.totalorder %s10, 1
        %s157 = scalar_select %p156, %s10, 1
        %s158 = smul.addr %s157, 2
        %s159 = smul.addr %s158, 8
        %s160 = scalar_lea.vmem %s0, %s159
      $region32: #{informer_forward.17} parent=27 // pred_fallthru
        _
    $region28: #{informer_forward.17} parent=5 // pred_fallthru
      _
    %p161 = scmp.le.s32.totalorder 1, %s10
    %p162 = scmp.lt.s32.totalorder %s10, 3
    %p163 = pnand %p161, %p162
    %p164 = pneg %p163
    // Predicated region
    $region33: #{informer_forward.17} parent=5 // pred_check
      _
    $region34: #{informer_forward.17} parent=5 // pred_check_branch
      %166 = sbr.rel (%p163) target = $region36
    $region35: #{informer_forward.17} parent=5 // pred_region
      %s167 = ssub.s32 %s10, 1
      %p168 = scmp.lt.s32.totalorder %s15, 1
      %s169 = scalar_select %p168, %s15, 1
      %s170 = smul.addr %s169, 2
      %s171 = smul.addr %s170, 8
      %s172 = scalar_lea.vmem %s0, %s171
      %p173 = pneg %p36
      %p174 = pneg %p33
      %p175 = pneg %p57
      %p176 = pneg %p54
      %p177 = pneg %p78
      %p178 = pneg %p75
      %p179 = pneg %p99
      %p180 = pneg %p96
      %p181 = pneg %p125
      %p182 = pneg %p122
      %p183 = scmp.lt.s32.totalorder %s15, 1
      %s184 = scalar_select %p183, %s15, 1
      %s185 = smul.addr %s184, 2
      %s186 = smul.addr %s185, 8
      %s187 = scalar_lea.vmem %s4, %s186
      %p188 = scmp.lt.s32.totalorder %s15, 1
      %s189 = scalar_select %p188, %s15, 1
      %s190 = smul.addr %s189, 2
      %s191 = smul.addr %s190, 8
      %s192 = scalar_lea.vmem %s0, %s191
      %p193 = scmp.lt.s32.totalorder %s15, 1
      %s194 = scalar_select %p193, %s15, 1
      %s195 = smul.addr %s194, 2
      %s196 = smul.addr %s195, 8
      %s197 = scalar_lea.vmem %s4, %s196
      %v199 = vld [vmem:[%s192] sm:$0xff]
      %v200 = vld [vmem:[%s192 + $0x8] sm:$0xff]
      %v201 = vpack.c.bf16 %v200, %v199
      %v202 = vld [vmem:[%s1] sm:$0xff]
      %v203 = vld [vmem:[%s1 + $0x8] sm:$0xf]
      %v204 = vpack.c.bf16 %v203, %v202
      %v205 = vld [vmem:[%s2] sm:$0x1]
      %v207 = vlaneseq
      %v208 = vshrl.u32 %v207, 7
      %v209 = vsub.s32 0, %v208
      %v210 = vrot.slane %v205, %v209
      %vm212 = vcmask 97280
      %v214 = vsel %vm212, %v201, 0
      %vm216 = vcmask 1045504
      %v218 = vsel %vm216, %v204, 0
      %220 = vmatprep.subr.bf16.mxu0 0
      %221 = vmatpush1.bf16.msra.mxu0 %v218
      %222 = vmatprep.subr.bf16.mxu0 0
      %223 = vmatpush1.bf16.msra.mxu0 0
      %224 = vmatprep.subr.bf16.mxu0 0
      %225 = vmatpush1.bf16.msra.mxu0 0
      %226 = vmatprep.subr.bf16.mxu0 0
      %227 = vmatpush1.bf16.msra.mxu0 0
      %228 = vmatprep.subr.bf16.mxu0 0
      %229 = vmatpush1.bf16.msra.mxu0 0
      %230 = vmatprep.subr.bf16.mxu0 0
      %231 = vmatpush1.bf16.msra.mxu0 0
      %232 = vmatprep.subr.bf16.mxu0 0
      %233 = vmatpush1.bf16.msra.mxu0 0
      %234 = vmatprep.subr.bf16.mxu0 0
      %235 = vmatpush1.bf16.msra.mxu0 0
      %236 = vmatprep.subr.bf16.mxu0 0
      %237 = vmatpush1.bf16.msra.mxu0 0
      %238 = vmatprep.subr.bf16.mxu0 0
      %239 = vmatpush1.bf16.msra.mxu0 0
      %240 = vmatprep.subr.bf16.mxu0 0
      %241 = vmatpush1.bf16.msra.mxu0 0
      %242 = vmatprep.subr.bf16.mxu0 0
      %243 = vmatpush1.bf16.msra.mxu0 0
      %244 = vmatprep.subr.bf16.mxu0 0
      %245 = vmatpush1.bf16.msra.mxu0 0
      %246 = vmatprep.subr.bf16.mxu0 0
      %247 = vmatpush1.bf16.msra.mxu0 0
      %248 = vmatprep.subr.bf16.mxu0 0
      %249 = vmatpush1.bf16.msra.mxu0 0
      %250 = vmatprep.subr.bf16.mxu0 0
      %251 = vmatpush1.bf16.msra.mxu0 0
      %252 = vmatprep.mubr.bf16.mxu0 0
      %253 = vmatmul.mubr.bf16.gmra.mrb[0].mxu0 %v214
      %v254 = vpop.f32.mrb[0].mxu0
      %v255 = vadd.f32 %v210, %v254
      %v256 = vpop.f32.mrb[0].mxu0
      %v257 = vpop.f32.mrb[0].mxu0
      %v258 = vadd.f32 %v210, %v257
      %v259 = vpop.f32.mrb[0].mxu0
      %260 = vdwg.mxu0
      %v261 = vld [vmem:[%s3] sm:$0xff]
      %v262 = vld [vmem:[%s3 + $0x8] sm:$0xff]
      %v263 = vadd.f32 %v255, %v261
      %v264 = vadd.f32 %v258, %v262
      %vm265 = vcmask 261120
      %266 = vst.msk [vmem:[%s197] sm:$0xff] %vm265, %v263
      %267 = vst.msk [vmem:[%s197 + $0x8] sm:$0xff] %vm265, %v264
      %p268 = scmp.lt.s32.totalorder %s15, 1
      %s269 = scalar_select %p268, %s15, 1
      %s270 = smul.addr %s269, 2
      %s271 = smul.addr %s270, 8
      %s272 = scalar_lea.vmem %s4, %s271
      // Predicated region
      $region37: #{informer_forward.17} parent=35 // pred_check
        %p273 = pneg %p122
      $region38: #{informer_forward.17} parent=35 // pred_check_branch
        %275 = sbr.rel (%p273) target = $region40
      $region39: #{informer_forward.17} parent=35 // pred_region
        _
      $region40: #{informer_forward.17} parent=35 // pred_fallthru
        _
    $region36: #{informer_forward.17} parent=5 // pred_fallthru
      _
    %p276 = scmp.le.s32.totalorder 2, %s10
    // Predicated region
    $region41: #{informer_forward.17} parent=5 // pred_check
      %p277 = pneg %p276
    $region42: #{informer_forward.17} parent=5 // pred_check_branch
      %279 = sbr.rel (%p277) target = $region44
    $region43: #{informer_forward.17} parent=5 // pred_region
      %s280 = ssub.s32 %s10, 2
      // Predicated region
      $region45: #{informer_forward.17} parent=43 // pred_check
        %p281 = pneg %p128
      $region46: #{informer_forward.17} parent=43 // pred_check_branch
        %283 = sbr.rel (%p281) target = $region48
      $region47: #{informer_forward.17} parent=43 // pred_region
        %p284 = scmp.lt.s32.totalorder %s16, 1
        %s285 = scalar_select %p284, %s16, 1
        %s286 = smul.addr %s285, 2
        %s287 = smul.addr %s286, 8
        %s288 = scalar_lea.vmem %s4, %s287
      $region48: #{informer_forward.17} parent=43 // pred_fallthru
        _
    $region44: #{informer_forward.17} parent=5 // pred_fallthru
      _
  $region6: #{informer_forward.17} parent=0 // loop_footer
    %s14 = sadd.s32 1, %s10
  $region7: #{informer_forward.17} parent=0 // loop_footer_branch
    %9 = sbr.rel target = $region3
  $region8: #{informer_forward.17} parent=0 // loop_exit
    _

// kernel: informer_forward.16
$region0: #{informer_forward.16}
  #allocation0 [shape = 'u32[]', space=smem, size = 0x4, offset = 0x4, fixed_abs, tag = 'smem constant byte address 0x4 - core index']
  #allocation1 [shape = 'u32[144,128]{1,0:T(1,128)}', space=vmem, size = 0x12000, scoped, tag = 'internal scratch']
  %s0 = inlined_call_operand.vmem [shape: f32[2,16,32], index: 0, kind: input, shape index: {}]
  %s1 = inlined_call_operand.vmem [shape: f32[1,32], index: 1, kind: input, shape index: {}]
  %s2 = inlined_call_operand.vmem [shape: f32[1,32], index: 2, kind: input, shape index: {}]
  %s3 = inlined_call_operand.vmem [shape: f32[2,16,32], index: 3, kind: output, shape index: {}]
  %s4 = sld [smem:[#allocation0]]
  $region45: #{informer_forward.16} parent=0
    _
  %s6 = ssub.s32 1, %s4
  %s7 = scalar_select 0, %s6, %s4
  loop: start=0, step=1, limit=4
  $region2: #{informer_forward.16} parent=0 // loop_pre_header
    _
  $region3: #{informer_forward.16} parent=0 // loop_header
    %s9 = sphi 0, %s13
    %p10 = scmp.ge.s32.totalorder %s9, 4
    %s19 = sphi 0, %s21
    %s22 = sphi 0, %s19
    %s23 = sphi 0, %s22
    %s39 = sphi 0, %s23
    %s43 = sphi 0, %s43
    %s45 = sphi 0, %s43
    %s46 = sphi 0, %s45
    %s60 = sphi 0, %s46
    %s64 = sphi 0, %s64
    %s66 = sphi 0, %s64
    %s67 = sphi 0, %s66
    %s81 = sphi 0, %s67
    %s87 = sphi 0, %s89
    %s90 = sphi 0, %s87
    %s91 = sphi 0, %s90
    %s107 = sphi 0, %s91
  $region4: #{informer_forward.16} parent=0 // loop_header_branch
    %12 = sbr.rel (%p10) target = $region8
  $region5: #{informer_forward.16} parent=0 // loop_body
    %s14 = ssub.s32 %s9, 1
    %s15 = ssub.s32 %s9, 2
    %s16 = sadd.s32 %s9, 1
    %s17 = ssub.s32 %s9, %s16
    %p18 = scmp.eq.s32.totalorder %s17, 0
    %s20 = sadd.s32 %s19, 1
    %s21 = scalar_select %p18, %s19, %s20
    %p24 = pneg %p18
    %p25 = scmp.eq.s32.totalorder %s9, 1
    %p26 = por %p24, %p25
    %p27 = scmp.ne.s32.totalorder %s19, %s22
    %p28 = scmp.eq.s32.totalorder %s9, 0
    %p29 = por %p27, %p28
    %p30 = scmp.ne.s32.totalorder %s19, %s22
    %p31 = scmp.eq.s32.totalorder %s14, 1
    %p32 = por %p30, %p31
    %p33 = scmp.ne.s32.totalorder %s22, %s23
    %p34 = scmp.eq.s32.totalorder %s14, 0
    %p35 = por %p33, %p34
    %p36 = scmp.ne.s32.totalorder %s22, %s23
    %p37 = scmp.eq.s32.totalorder %s15, 1
    %p38 = por %p36, %p37
    %p40 = scmp.ne.s32.totalorder %s23, %s39
    %p41 = scmp.eq.s32.totalorder %s15, 0
    %p42 = por %p40, %p41
    %s44 = sadd.s32 %s43, 1
    %p47 = scmp.eq.s32.totalorder %s9, 1
    %p48 = scmp.ne.s32.totalorder %s43, %s45
    %p49 = scmp.eq.s32.totalorder %s9, 0
    %p50 = por %p48, %p49
    %p51 = scmp.ne.s32.totalorder %s43, %s45
    %p52 = scmp.eq.s32.totalorder %s14, 1
    %p53 = por %p51, %p52
    %p54 = scmp.ne.s32.totalorder %s45, %s46
    %p55 = scmp.eq.s32.totalorder %s14, 0
    %p56 = por %p54, %p55
    %p57 = scmp.ne.s32.totalorder %s45, %s46
    %p58 = scmp.eq.s32.totalorder %s15, 1
    %p59 = por %p57, %p58
    %p61 = scmp.ne.s32.totalorder %s46, %s60
    %p62 = scmp.eq.s32.totalorder %s15, 0
    %p63 = por %p61, %p62
    %s65 = sadd.s32 %s64, 1
    %p68 = scmp.eq.s32.totalorder %s9, 1
    %p69 = scmp.ne.s32.totalorder %s64, %s66
    %p70 = scmp.eq.s32.totalorder %s9, 0
    %p71 = por %p69, %p70
    %p72 = scmp.ne.s32.totalorder %s64, %s66
    %p73 = scmp.eq.s32.totalorder %s14, 1
    %p74 = por %p72, %p73
    %p75 = scmp.ne.s32.totalorder %s66, %s67
    %p76 = scmp.eq.s32.totalorder %s14, 0
    %p77 = por %p75, %p76
    %p78 = scmp.ne.s32.totalorder %s66, %s67
    %p79 = scmp.eq.s32.totalorder %s15, 1
    %p80 = por %p78, %p79
    %p82 = scmp.ne.s32.totalorder %s67, %s81
    %p83 = scmp.eq.s32.totalorder %s15, 0
    %p84 = por %p82, %p83
    %s85 = ssub.s32 %s9, %s16
    %p86 = scmp.eq.s32.totalorder %s85, 0
    %s88 = sadd.s32 %s87, 1
    %s89 = scalar_select %p86, %s87, %s88
    %p92 = pneg %p86
    %p93 = scmp.eq.s32.totalorder %s9, 1
    %p94 = por %p92, %p93
    %p95 = scmp.ne.s32.totalorder %s87, %s90
    %p96 = scmp.eq.s32.totalorder %s9, 0
    %p97 = por %p95, %p96
    %p98 = scmp.ne.s32.totalorder %s87, %s90
    %p99 = scmp.eq.s32.totalorder %s14, 1
    %p100 = por %p98, %p99
    %p101 = scmp.ne.s32.totalorder %s90, %s91
    %p102 = scmp.eq.s32.totalorder %s14, 0
    %p103 = por %p101, %p102
    %p104 = scmp.ne.s32.totalorder %s90, %s91
    %p105 = scmp.eq.s32.totalorder %s15, 1
    %p106 = por %p104, %p105
    %p108 = scmp.ne.s32.totalorder %s91, %s107
    %p109 = scmp.eq.s32.totalorder %s15, 0
    %p110 = por %p108, %p109
    %p111 = scmp.le.s32.totalorder 1, %s9
    %p112 = scmp.lt.s32.totalorder %s9, 3
    %p113 = pnand %p111, %p112
    %p114 = pneg %p113
    // Predicated region
    $region9: #{informer_forward.16} parent=5 // pred_check
      _
    $region10: #{informer_forward.16} parent=5 // pred_check_branch
      %116 = sbr.rel (%p113) target = $region12
    $region11: #{informer_forward.16} parent=5 // pred_region
      %s117 = ssub.s32 %s9, 1
      // Predicated region
      $region13: #{informer_forward.16} parent=11 // pred_check
        %p118 = pneg %p56
      $region14: #{informer_forward.16} parent=11 // pred_check_branch
        %120 = sbr.rel (%p118) target = $region16
      $region15: #{informer_forward.16} parent=11 // pred_region
        _
      $region16: #{informer_forward.16} parent=11 // pred_fallthru
        _
      // Predicated region
      $region17: #{informer_forward.16} parent=11 // pred_check
        %p121 = pneg %p77
      $region18: #{informer_forward.16} parent=11 // pred_check_branch
        %123 = sbr.rel (%p121) target = $region20
      $region19: #{informer_forward.16} parent=11 // pred_region
        _
      $region20: #{informer_forward.16} parent=11 // pred_fallthru
        _
    $region12: #{informer_forward.16} parent=5 // pred_fallthru
      _
    %p124 = scmp.lt.s32.totalorder %s9, 2
    // Predicated region
    $region21: #{informer_forward.16} parent=5 // pred_check
      %p125 = pneg %p124
    $region22: #{informer_forward.16} parent=5 // pred_check_branch
      %127 = sbr.rel (%p125) target = $region24
    $region23: #{informer_forward.16} parent=5 // pred_region
      // Predicated region
      $region25: #{informer_forward.16} parent=23 // pred_check
        %p128 = pneg %p29
      $region26: #{informer_forward.16} parent=23 // pred_check_branch
        %130 = sbr.rel (%p128) target = $region28
      $region27: #{informer_forward.16} parent=23 // pred_region
        %p131 = scmp.lt.s32.totalorder %s9, 1
        %s132 = scalar_select %p131, %s9, 1
        %s133 = smul.addr %s132, 2
        %s134 = smul.addr %s133, 8
        %s135 = scalar_lea.vmem %s0, %s134
      $region28: #{informer_forward.16} parent=23 // pred_fallthru
        _
    $region24: #{informer_forward.16} parent=5 // pred_fallthru
      _
    %p136 = scmp.le.s32.totalorder 1, %s9
    %p137 = scmp.lt.s32.totalorder %s9, 3
    %p138 = pnand %p136, %p137
    %p139 = pneg %p138
    // Predicated region
    $region29: #{informer_forward.16} parent=5 // pred_check
      _
    $region30: #{informer_forward.16} parent=5 // pred_check_branch
      %141 = sbr.rel (%p138) target = $region32
    $region31: #{informer_forward.16} parent=5 // pred_region
      %s142 = ssub.s32 %s9, 1
      %p143 = scmp.lt.s32.totalorder %s14, 1
      %s144 = scalar_select %p143, %s14, 1
      %s145 = smul.addr %s144, 2
      %s146 = smul.addr %s145, 8
      %s147 = scalar_lea.vmem %s0, %s146
      %p148 = pneg %p35
      %p149 = pneg %p32
      %p150 = pneg %p56
      %p151 = pneg %p53
      %p152 = pneg %p77
      %p153 = pneg %p74
      %p154 = pneg %p103
      %p155 = pneg %p100
      %p156 = scmp.lt.s32.totalorder %s14, 1
      %s157 = scalar_select %p156, %s14, 1
      %s158 = smul.addr %s157, 2
      %s159 = smul.addr %s158, 8
      %s160 = scalar_lea.vmem %s3, %s159
      %p161 = scmp.lt.s32.totalorder %s14, 1
      %s162 = scalar_select %p161, %s14, 1
      %s163 = smul.addr %s162, 2
      %s164 = smul.addr %s163, 8
      %s165 = scalar_lea.vmem %s0, %s164
      %p166 = scmp.lt.s32.totalorder %s14, 1
      %s167 = scalar_select %p166, %s14, 1
      %s168 = smul.addr %s167, 2
      %s169 = smul.addr %s168, 8
      %s170 = scalar_lea.vmem %s3, %s169
      %v171 = vld [vmem:[%s165] sm:$0xff]
      %v172 = vld [vmem:[%s165 + $0x8] sm:$0xff]
      %v173 = vld [vmem:[%s1] sm:$0x1]
      %v174 = vld [vmem:[%s2] sm:$0x1]
      %vm175 = vcmask 261120
      %v176 = vsel %vm175, %v171, 0.0
      %177 = vadd.xlane.f32.xlu0 %v176
      %v178 = vpop.xlane.xlu0 %177
      %v179 = vsel %vm175, %v172, 0.0
      %180 = vadd.xlane.f32.xlu0 %v179
      %v181 = vpop.xlane.xlu0 %180
      %v182 = vrcp.pop 32.0
      %v183 = vmul.f32 %v178, %v182
      %v184 = vmul.f32 %v181, %v182
      %v185 = vsub.f32 %v171, %v183
      %v186 = vsub.f32 %v172, %v184
      %v187 = vmul.f32 %v185, %v185
      %v188 = vmul.f32 %v186, %v186
      %v189 = vsel %vm175, %v187, 0.0
      %190 = vadd.xlane.f32.xlu0 %v189
      %v191 = vpop.xlane.xlu0 %190
      %v192 = vsel %vm175, %v188, 0.0
      %193 = vadd.xlane.f32.xlu0 %v192
      %v194 = vpop.xlane.xlu0 %193
      %v195 = vmul.f32 %v191, %v182
      %v196 = vmul.f32 %v194, %v182
      %v197 = vadd.f32 %v195, 1e-05
      %v198 = vadd.f32 %v196, 1e-05
      %v199 = vrsqrt.pop %v197
      %v200 = vrsqrt.pop %v198
      %v201 = vmul.f32 %v185, %v199
      %v202 = vmul.f32 %v186, %v200
      %v204 = vlaneseq
      %v205 = vshrl.u32 %v204, 7
      %v206 = vsub.s32 0, %v205
      %v207 = vrot.slane %v173, %v206
      %v209 = vmul.f32 %v201, %v207
      %v210 = vmul.f32 %v202, %v207
      %v212 = vlaneseq
      %v213 = vshrl.u32 %v212, 7
      %v214 = vsub.s32 0, %v213
      %v215 = vrot.slane %v174, %v214
      %v217 = vadd.f32 %v209, %v215
      %v218 = vadd.f32 %v210, %v215
      %219 = vst.msk [vmem:[%s170] sm:$0xff] %vm175, %v217
      %220 = vst.msk [vmem:[%s170 + $0x8] sm:$0xff] %vm175, %v218
      %p221 = scmp.lt.s32.totalorder %s14, 1
      %s222 = scalar_select %p221, %s14, 1
      %s223 = smul.addr %s222, 2
      %s224 = smul.addr %s223, 8
      %s225 = scalar_lea.vmem %s3, %s224
      // Predicated region
      $region33: #{informer_forward.16} parent=31 // pred_check
        %p226 = pneg %p100
      $region34: #{informer_forward.16} parent=31 // pred_check_branch
        %228 = sbr.rel (%p226) target = $region36
      $region35: #{informer_forward.16} parent=31 // pred_region
        _
      $region36: #{informer_forward.16} parent=31 // pred_fallthru
        _
    $region32: #{informer_forward.16} parent=5 // pred_fallthru
      _
    %p229 = scmp.le.s32.totalorder 2, %s9
    // Predicated region
    $region37: #{informer_forward.16} parent=5 // pred_check
      %p230 = pneg %p229
    $region38: #{informer_forward.16} parent=5 // pred_check_branch
      %232 = sbr.rel (%p230) target = $region40
    $region39: #{informer_forward.16} parent=5 // pred_region
      %s233 = ssub.s32 %s9, 2
      // Predicated region
      $region41: #{informer_forward.16} parent=39 // pred_check
        %p234 = pneg %p106
      $region42: #{informer_forward.16} parent=39 // pred_check_branch
        %236 = sbr.rel (%p234) target = $region44
      $region43: #{informer_forward.16} parent=39 // pred_region
        %p237 = scmp.lt.s32.totalorder %s15, 1
        %s238 = scalar_select %p237, %s15, 1
        %s239 = smul.addr %s238, 2
        %s240 = smul.addr %s239, 8
        %s241 = scalar_lea.vmem %s3, %s240
      $region44: #{informer_forward.16} parent=39 // pred_fallthru
        _
    $region40: #{informer_forward.16} parent=5 // pred_fallthru
      _
  $region6: #{informer_forward.16} parent=0 // loop_footer
    %s13 = sadd.s32 1, %s9
  $region7: #{informer_forward.16} parent=0 // loop_footer_branch
    %8 = sbr.rel target = $region3
  $region8: #{informer_forward.16} parent=0 // loop_exit
    _

// kernel: informer_forward.18
$region0: #{informer_forward.18}
  #allocation0 [shape = 'u32[]', space=smem, size = 0x4, offset = 0x4, fixed_abs, tag = 'smem constant byte address 0x4 - core index']
  #allocation1 [shape = 'u32[144,128]{1,0:T(1,128)}', space=vmem, size = 0x12000, scoped, tag = 'internal scratch']
  %s0 = inlined_call_operand.vmem [shape: f32[2,16,32], index: 0, kind: input, shape index: {}, may-alias: {0,1}]
  %s1 = inlined_call_operand.vmem [shape: f32[2,16,32], index: 1, kind: input, shape index: {}, may-alias: {0,1}]
  %s2 = inlined_call_operand.vmem [shape: f32[16,16], index: 2, kind: input, shape index: {}]
  %s3 = inlined_call_operand.vmem [shape: f32[32,96], index: 3, kind: input, shape index: {}]
  %s4 = inlined_call_operand.vmem [shape: f32[1,96], index: 4, kind: input, shape index: {}]
  %s5 = inlined_call_operand.vmem [shape: f32[32,32], index: 5, kind: input, shape index: {}]
  %s6 = inlined_call_operand.vmem [shape: f32[1,32], index: 6, kind: input, shape index: {}]
  %s7 = inlined_call_operand.vmem [shape: f32[1,32], index: 7, kind: input, shape index: {}]
  %s8 = inlined_call_operand.vmem [shape: f32[1,32], index: 8, kind: input, shape index: {}]
  %s9 = inlined_call_operand.vmem [shape: f32[2,16,32], index: 9, kind: output, shape index: {}]
  %s10 = sld [smem:[#allocation0]]
  $region69: #{informer_forward.18} parent=0
    _
  %s12 = ssub.s32 1, %s10
  %s13 = scalar_select 0, %s12, %s10
  loop: start=0, step=1, limit=4
  $region2: #{informer_forward.18} parent=0 // loop_pre_header
    _
  $region3: #{informer_forward.18} parent=0 // loop_header
    %s15 = sphi 0, %s19
    %p16 = scmp.ge.s32.totalorder %s15, 4
    %s25 = sphi 0, %s27
    %s28 = sphi 0, %s25
    %s29 = sphi 0, %s28
    %s45 = sphi 0, %s29
    %s51 = sphi 0, %s53
    %s54 = sphi 0, %s51
    %s55 = sphi 0, %s54
    %s71 = sphi 0, %s55
    %s75 = sphi 0, %s75
    %s77 = sphi 0, %s75
    %s78 = sphi 0, %s77
    %s92 = sphi 0, %s78
    %s96 = sphi 0, %s96
    %s98 = sphi 0, %s96
    %s99 = sphi 0, %s98
    %s113 = sphi 0, %s99
    %s117 = sphi 0, %s117
    %s119 = sphi 0, %s117
    %s120 = sphi 0, %s119
    %s134 = sphi 0, %s120
    %s138 = sphi 0, %s138
    %s140 = sphi 0, %s138
    %s141 = sphi 0, %s140
    %s155 = sphi 0, %s141
    %s159 = sphi 0, %s159
    %s161 = sphi 0, %s159
    %s162 = sphi 0, %s161
    %s176 = sphi 0, %s162
    %s180 = sphi 0, %s180
    %s182 = sphi 0, %s180
    %s183 = sphi 0, %s182
    %s197 = sphi 0, %s183
    %s201 = sphi 0, %s201
    %s203 = sphi 0, %s201
    %s204 = sphi 0, %s203
    %s218 = sphi 0, %s204
    %s224 = sphi 0, %s226
    %s227 = sphi 0, %s224
    %s228 = sphi 0, %s227
    %s244 = sphi 0, %s228
  $region4: #{informer_forward.18} parent=0 // loop_header_branch
    %18 = sbr.rel (%p16) target = $region8
  $region5: #{informer_forward.18} parent=0 // loop_body
    %s20 = ssub.s32 %s15, 1
    %s21 = ssub.s32 %s15, 2
    %s22 = sadd.s32 %s15, 1
    %s23 = ssub.s32 %s15, %s22
    %p24 = scmp.eq.s32.totalorder %s23, 0
    %s26 = sadd.s32 %s25, 1
    %s27 = scalar_select %p24, %s25, %s26
    %p30 = pneg %p24
    %p31 = scmp.eq.s32.totalorder %s15, 1
    %p32 = por %p30, %p31
    %p33 = scmp.ne.s32.totalorder %s25, %s28
    %p34 = scmp.eq.s32.totalorder %s15, 0
    %p35 = por %p33, %p34
    %p36 = scmp.ne.s32.totalorder %s25, %s28
    %p37 = scmp.eq.s32.totalorder %s20, 1
    %p38 = por %p36, %p37
    %p39 = scmp.ne.s32.totalorder %s28, %s29
    %p40 = scmp.eq.s32.totalorder %s20, 0
    %p41 = por %p39, %p40
    %p42 = scmp.ne.s32.totalorder %s28, %s29
    %p43 = scmp.eq.s32.totalorder %s21, 1
    %p44 = por %p42, %p43
    %p46 = scmp.ne.s32.totalorder %s29, %s45
    %p47 = scmp.eq.s32.totalorder %s21, 0
    %p48 = por %p46, %p47
    %s49 = ssub.s32 %s15, %s22
    %p50 = scmp.eq.s32.totalorder %s49, 0
    %s52 = sadd.s32 %s51, 1
    %s53 = scalar_select %p50, %s51, %s52
    %p56 = pneg %p50
    %p57 = scmp.eq.s32.totalorder %s15, 1
    %p58 = por %p56, %p57
    %p59 = scmp.ne.s32.totalorder %s51, %s54
    %p60 = scmp.eq.s32.totalorder %s15, 0
    %p61 = por %p59, %p60
    %p62 = scmp.ne.s32.totalorder %s51, %s54
    %p63 = scmp.eq.s32.totalorder %s20, 1
    %p64 = por %p62, %p63
    %p65 = scmp.ne.s32.totalorder %s54, %s55
    %p66 = scmp.eq.s32.totalorder %s20, 0
    %p67 = por %p65, %p66
    %p68 = scmp.ne.s32.totalorder %s54, %s55
    %p69 = scmp.eq.s32.totalorder %s21, 1
    %p70 = por %p68, %p69
    %p72 = scmp.ne.s32.totalorder %s55, %s71
    %p73 = scmp.eq.s32.totalorder %s21, 0
    %p74 = por %p72, %p73
    %s76 = sadd.s32 %s75, 1
    %p79 = scmp.eq.s32.totalorder %s15, 1
    %p80 = scmp.ne.s32.totalorder %s75, %s77
    %p81 = scmp.eq.s32.totalorder %s15, 0
    %p82 = por %p80, %p81
    %p83 = scmp.ne.s32.totalorder %s75, %s77
    %p84 = scmp.eq.s32.totalorder %s20, 1
    %p85 = por %p83, %p84
    %p86 = scmp.ne.s32.totalorder %s77, %s78
    %p87 = scmp.eq.s32.totalorder %s20, 0
    %p88 = por %p86, %p87
    %p89 = scmp.ne.s32.totalorder %s77, %s78
    %p90 = scmp.eq.s32.totalorder %s21, 1
    %p91 = por %p89, %p90
    %p93 = scmp.ne.s32.totalorder %s78, %s92
    %p94 = scmp.eq.s32.totalorder %s21, 0
    %p95 = por %p93, %p94
    %s97 = sadd.s32 %s96, 1
    %p100 = scmp.eq.s32.totalorder %s15, 1
    %p101 = scmp.ne.s32.totalorder %s96, %s98
    %p102 = scmp.eq.s32.totalorder %s15, 0
    %p103 = por %p101, %p102
    %p104 = scmp.ne.s32.totalorder %s96, %s98
    %p105 = scmp.eq.s32.totalorder %s20, 1
    %p106 = por %p104, %p105
    %p107 = scmp.ne.s32.totalorder %s98, %s99
    %p108 = scmp.eq.s32.totalorder %s20, 0
    %p109 = por %p107, %p108
    %p110 = scmp.ne.s32.totalorder %s98, %s99
    %p111 = scmp.eq.s32.totalorder %s21, 1
    %p112 = por %p110, %p111
    %p114 = scmp.ne.s32.totalorder %s99, %s113
    %p115 = scmp.eq.s32.totalorder %s21, 0
    %p116 = por %p114, %p115
    %s118 = sadd.s32 %s117, 1
    %p121 = scmp.eq.s32.totalorder %s15, 1
    %p122 = scmp.ne.s32.totalorder %s117, %s119
    %p123 = scmp.eq.s32.totalorder %s15, 0
    %p124 = por %p122, %p123
    %p125 = scmp.ne.s32.totalorder %s117, %s119
    %p126 = scmp.eq.s32.totalorder %s20, 1
    %p127 = por %p125, %p126
    %p128 = scmp.ne.s32.totalorder %s119, %s120
    %p129 = scmp.eq.s32.totalorder %s20, 0
    %p130 = por %p128, %p129
    %p131 = scmp.ne.s32.totalorder %s119, %s120
    %p132 = scmp.eq.s32.totalorder %s21, 1
    %p133 = por %p131, %p132
    %p135 = scmp.ne.s32.totalorder %s120, %s134
    %p136 = scmp.eq.s32.totalorder %s21, 0
    %p137 = por %p135, %p136
    %s139 = sadd.s32 %s138, 1
    %p142 = scmp.eq.s32.totalorder %s15, 1
    %p143 = scmp.ne.s32.totalorder %s138, %s140
    %p144 = scmp.eq.s32.totalorder %s15, 0
    %p145 = por %p143, %p144
    %p146 = scmp.ne.s32.totalorder %s138, %s140
    %p147 = scmp.eq.s32.totalorder %s20, 1
    %p148 = por %p146, %p147
    %p149 = scmp.ne.s32.totalorder %s140, %s141
    %p150 = scmp.eq.s32.totalorder %s20, 0
    %p151 = por %p149, %p150
    %p152 = scmp.ne.s32.totalorder %s140, %s141
    %p153 = scmp.eq.s32.totalorder %s21, 1
    %p154 = por %p152, %p153
    %p156 = scmp.ne.s32.totalorder %s141, %s155
    %p157 = scmp.eq.s32.totalorder %s21, 0
    %p158 = por %p156, %p157
    %s160 = sadd.s32 %s159, 1
    %p163 = scmp.eq.s32.totalorder %s15, 1
    %p164 = scmp.ne.s32.totalorder %s159, %s161
    %p165 = scmp.eq.s32.totalorder %s15, 0
    %p166 = por %p164, %p165
    %p167 = scmp.ne.s32.totalorder %s159, %s161
    %p168 = scmp.eq.s32.totalorder %s20, 1
    %p169 = por %p167, %p168
    %p170 = scmp.ne.s32.totalorder %s161, %s162
    %p171 = scmp.eq.s32.totalorder %s20, 0
    %p172 = por %p170, %p171
    %p173 = scmp.ne.s32.totalorder %s161, %s162
    %p174 = scmp.eq.s32.totalorder %s21, 1
    %p175 = por %p173, %p174
    %p177 = scmp.ne.s32.totalorder %s162, %s176
    %p178 = scmp.eq.s32.totalorder %s21, 0
    %p179 = por %p177, %p178
    %s181 = sadd.s32 %s180, 1
    %p184 = scmp.eq.s32.totalorder %s15, 1
    %p185 = scmp.ne.s32.totalorder %s180, %s182
    %p186 = scmp.eq.s32.totalorder %s15, 0
    %p187 = por %p185, %p186
    %p188 = scmp.ne.s32.totalorder %s180, %s182
    %p189 = scmp.eq.s32.totalorder %s20, 1
    %p190 = por %p188, %p189
    %p191 = scmp.ne.s32.totalorder %s182, %s183
    %p192 = scmp.eq.s32.totalorder %s20, 0
    %p193 = por %p191, %p192
    %p194 = scmp.ne.s32.totalorder %s182, %s183
    %p195 = scmp.eq.s32.totalorder %s21, 1
    %p196 = por %p194, %p195
    %p198 = scmp.ne.s32.totalorder %s183, %s197
    %p199 = scmp.eq.s32.totalorder %s21, 0
    %p200 = por %p198, %p199
    %s202 = sadd.s32 %s201, 1
    %p205 = scmp.eq.s32.totalorder %s15, 1
    %p206 = scmp.ne.s32.totalorder %s201, %s203
    %p207 = scmp.eq.s32.totalorder %s15, 0
    %p208 = por %p206, %p207
    %p209 = scmp.ne.s32.totalorder %s201, %s203
    %p210 = scmp.eq.s32.totalorder %s20, 1
    %p211 = por %p209, %p210
    %p212 = scmp.ne.s32.totalorder %s203, %s204
    %p213 = scmp.eq.s32.totalorder %s20, 0
    %p214 = por %p212, %p213
    %p215 = scmp.ne.s32.totalorder %s203, %s204
    %p216 = scmp.eq.s32.totalorder %s21, 1
    %p217 = por %p215, %p216
    %p219 = scmp.ne.s32.totalorder %s204, %s218
    %p220 = scmp.eq.s32.totalorder %s21, 0
    %p221 = por %p219, %p220
    %s222 = ssub.s32 %s15, %s22
    %p223 = scmp.eq.s32.totalorder %s222, 0
    %s225 = sadd.s32 %s224, 1
    %s226 = scalar_select %p223, %s224, %s225
    %p229 = pneg %p223
    %p230 = scmp.eq.s32.totalorder %s15, 1
    %p231 = por %p229, %p230
    %p232 = scmp.ne.s32.totalorder %s224, %s227
    %p233 = scmp.eq.s32.totalorder %s15, 0
    %p234 = por %p232, %p233
    %p235 = scmp.ne.s32.totalorder %s224, %s227
    %p236 = scmp.eq.s32.totalorder %s20, 1
    %p237 = por %p235, %p236
    %p238 = scmp.ne.s32.totalorder %s227, %s228
    %p239 = scmp.eq.s32.totalorder %s20, 0
    %p240 = por %p238, %p239
    %p241 = scmp.ne.s32.totalorder %s227, %s228
    %p242 = scmp.eq.s32.totalorder %s21, 1
    %p243 = por %p241, %p242
    %p245 = scmp.ne.s32.totalorder %s228, %s244
    %p246 = scmp.eq.s32.totalorder %s21, 0
    %p247 = por %p245, %p246
    %p248 = scmp.le.s32.totalorder 1, %s15
    %p249 = scmp.lt.s32.totalorder %s15, 3
    %p250 = pnand %p248, %p249
    %p251 = pneg %p250
    // Predicated region
    $region9: #{informer_forward.18} parent=5 // pred_check
      _
    $region10: #{informer_forward.18} parent=5 // pred_check_branch
      %253 = sbr.rel (%p250) target = $region12
    $region11: #{informer_forward.18} parent=5 // pred_region
      %s254 = ssub.s32 %s15, 1
      // Predicated region
      $region13: #{informer_forward.18} parent=11 // pred_check
        %p255 = pneg %p88
      $region14: #{informer_forward.18} parent=11 // pred_check_branch
        %257 = sbr.rel (%p255) target = $region16
      $region15: #{informer_forward.18} parent=11 // pred_region
        _
      $region16: #{informer_forward.18} parent=11 // pred_fallthru
        _
      // Predicated region
      $region17: #{informer_forward.18} parent=11 // pred_check
        %p258 = pneg %p109
      $region18: #{informer_forward.18} parent=11 // pred_check_branch
        %260 = sbr.rel (%p258) target = $region20
      $region19: #{informer_forward.18} parent=11 // pred_region
        _
      $region20: #{informer_forward.18} parent=11 // pred_fallthru
        _
      // Predicated region
      $region21: #{informer_forward.18} parent=11 // pred_check
        %p261 = pneg %p130
      $region22: #{informer_forward.18} parent=11 // pred_check_branch
        %263 = sbr.rel (%p261) target = $region24
      $region23: #{informer_forward.18} parent=11 // pred_region
        _
      $region24: #{informer_forward.18} parent=11 // pred_fallthru
        _
      // Predicated region
      $region25: #{informer_forward.18} parent=11 // pred_check
        %p264 = pneg %p151
      $region26: #{informer_forward.18} parent=11 // pred_check_branch
        %266 = sbr.rel (%p264) target = $region28
      $region27: #{informer_forward.18} parent=11 // pred_region
        _
      $region28: #{informer_forward.18} parent=11 // pred_fallthru
        _
      // Predicated region
      $region29: #{informer_forward.18} parent=11 // pred_check
        %p267 = pneg %p172
      $region30: #{informer_forward.18} parent=11 // pred_check_branch
        %269 = sbr.rel (%p267) target = $region32
      $region31: #{informer_forward.18} parent=11 // pred_region
        _
      $region32: #{informer_forward.18} parent=11 // pred_fallthru
        _
      // Predicated region
      $region33: #{informer_forward.18} parent=11 // pred_check
        %p270 = pneg %p193
      $region34: #{informer_forward.18} parent=11 // pred_check_branch
        %272 = sbr.rel (%p270) target = $region36
      $region35: #{informer_forward.18} parent=11 // pred_region
        _
      $region36: #{informer_forward.18} parent=11 // pred_fallthru
        _
      // Predicated region
      $region37: #{informer_forward.18} parent=11 // pred_check
        %p273 = pneg %p214
      $region38: #{informer_forward.18} parent=11 // pred_check_branch
        %275 = sbr.rel (%p273) target = $region40
      $region39: #{informer_forward.18} parent=11 // pred_region
        _
      $region40: #{informer_forward.18} parent=11 // pred_fallthru
        _
    $region12: #{informer_forward.18} parent=5 // pred_fallthru
      _
    %p276 = scmp.lt.s32.totalorder %s15, 2
    // Predicated region
    $region41: #{informer_forward.18} parent=5 // pred_check
      %p277 = pneg %p276
    $region42: #{informer_forward.18} parent=5 // pred_check_branch
      %279 = sbr.rel (%p277) target = $region44
    $region43: #{informer_forward.18} parent=5 // pred_region
      // Predicated region
      $region45: #{informer_forward.18} parent=43 // pred_check
        %p280 = pneg %p35
      $region46: #{informer_forward.18} parent=43 // pred_check_branch
        %282 = sbr.rel (%p280) target = $region48
      $region47: #{informer_forward.18} parent=43 // pred_region
        %p283 = scmp.lt.s32.totalorder %s15, 1
        %s284 = scalar_select %p283, %s15, 1
        %s285 = smul.addr %s284, 2
        %s286 = smul.addr %s285, 8
        %s287 = scalar_lea.vmem %s0, %s286
      $region48: #{informer_forward.18} parent=43 // pred_fallthru
        _
      // Predicated region
      $region49: #{informer_forward.18} parent=43 // pred_check
        %p288 = pneg %p61
      $region50: #{informer_forward.18} parent=43 // pred_check_branch
        %290 = sbr.rel (%p288) target = $region52
      $region51: #{informer_forward.18} parent=43 // pred_region
        %p291 = scmp.lt.s32.totalorder %s15, 1
        %s292 = scalar_select %p291, %s15, 1
        %s293 = smul.addr %s292, 2
        %s294 = smul.addr %s293, 8
        %s295 = scalar_lea.vmem %s1, %s294
      $region52: #{informer_forward.18} parent=43 // pred_fallthru
        _
    $region44: #{informer_forward.18} parent=5 // pred_fallthru
      _
    %p296 = scmp.le.s32.totalorder 1, %s15
    %p297 = scmp.lt.s32.totalorder %s15, 3
    %p298 = pnand %p296, %p297
    %p299 = pneg %p298
    // Predicated region
    $region53: #{informer_forward.18} parent=5 // pred_check
      _
    $region54: #{informer_forward.18} parent=5 // pred_check_branch
      %301 = sbr.rel (%p298) target = $region56
    $region55: #{informer_forward.18} parent=5 // pred_region
      %s302 = ssub.s32 %s15, 1
      %p303 = scmp.lt.s32.totalorder %s20, 1
      %s304 = scalar_select %p303, %s20, 1
      %s305 = smul.addr %s304, 2
      %s306 = smul.addr %s305, 8
      %s307 = scalar_lea.vmem %s0, %s306
      %p308 = pneg %p41
      %p309 = pneg %p38
      %p310 = scmp.lt.s32.totalorder %s20, 1
      %s311 = scalar_select %p310, %s20, 1
      %s312 = smul.addr %s311, 2
      %s313 = smul.addr %s312, 8
      %s314 = scalar_lea.vmem %s1, %s313
      %p315 = pneg %p67
      %p316 = pneg %p64
      %p317 = pneg %p88
      %p318 = pneg %p85
      %p319 = pneg %p109
      %p320 = pneg %p106
      %p321 = pneg %p130
      %p322 = pneg %p127
      %p323 = pneg %p151
      %p324 = pneg %p148
      %p325 = pneg %p172
      %p326 = pneg %p169
      %p327 = pneg %p193
      %p328 = pneg %p190
      %p329 = pneg %p214
      %p330 = pneg %p211
      %p331 = pneg %p240
      %p332 = pneg %p237
      %p333 = scmp.lt.s32.totalorder %s20, 1
      %s334 = scalar_select %p333, %s20, 1
      %s335 = smul.addr %s334, 2
      %s336 = smul.addr %s335, 8
      %s337 = scalar_lea.vmem %s9, %s336
      %p338 = scmp.lt.s32.totalorder %s20, 1
      %s339 = scalar_select %p338, %s20, 1
      %s340 = smul.addr %s339, 2
      %s341 = smul.addr %s340, 8
      %s342 = scalar_lea.vmem %s0, %s341
      %p343 = scmp.lt.s32.totalorder %s20, 1
      %s344 = scalar_select %p343, %s20, 1
      %s345 = smul.addr %s344, 2
      %s346 = smul.addr %s345, 8
      %s347 = scalar_lea.vmem %s1, %s346
      %p348 = scmp.lt.s32.totalorder %s20, 1
      %s349 = scalar_select %p348, %s20, 1
      %s350 = smul.addr %s349, 2
      %s351 = smul.addr %s350, 8
      %s352 = scalar_lea.vmem %s9, %s351
      %v354 = vld [vmem:[%s342] sm:$0xff]
      %v355 = vld [vmem:[%s342 + $0x8] sm:$0xff]
      %v356 = vpack.c.bf16 %v355, %v354
      %v357 = vld [vmem:[%s3] sm:$0xff]
      %v358 = vld [vmem:[%s3 + $0x8] sm:$0xff]
      %v359 = vld [vmem:[%s3 + $0x10] sm:$0xff]
      %v360 = vld [vmem:[%s3 + $0x18] sm:$0xff]
      %v361 = vpack.c.bf16 %v358, %v357
      %v362 = vpack.c.bf16 %v360, %v359
      %v363 = vld [vmem:[%s4] sm:$0x1]
      %v365 = vlaneseq
      %v366 = vshrl.u32 %v365, 7
      %v367 = vsub.s32 0, %v366
      %v368 = vrot.slane %v363, %v367
      %vm370 = vcmask 261120
      %v372 = vsel %vm370, %v356, 0
      %374 = vmatprep.subr.bf16.mxu0 0
      %375 = vmatpush1.bf16.msra.mxu0 %v361
      %376 = vmatprep.subr.bf16.mxu0 0
      %377 = vmatpush1.bf16.msra.mxu0 %v362
      %378 = vmatprep.subr.bf16.mxu0 0
      %379 = vmatpush1.bf16.msra.mxu0 0
      %380 = vmatprep.subr.bf16.mxu0 0
      %381 = vmatpush1.bf16.msra.mxu0 0
      %382 = vmatprep.subr.bf16.mxu0 0
      %383 = vmatpush1.bf16.msra.mxu0 0
      %384 = vmatprep.subr.bf16.mxu0 0
      %385 = vmatpush1.bf16.msra.mxu0 0
      %386 = vmatprep.subr.bf16.mxu0 0
      %387 = vmatpush1.bf16.msra.mxu0 0
      %388 = vmatprep.subr.bf16.mxu0 0
      %389 = vmatpush1.bf16.msra.mxu0 0
      %390 = vmatprep.subr.bf16.mxu0 0
      %391 = vmatpush1.bf16.msra.mxu0 0
      %392 = vmatprep.subr.bf16.mxu0 0
      %393 = vmatpush1.bf16.msra.mxu0 0
      %394 = vmatprep.subr.bf16.mxu0 0
      %395 = vmatpush1.bf16.msra.mxu0 0
      %396 = vmatprep.subr.bf16.mxu0 0
      %397 = vmatpush1.bf16.msra.mxu0 0
      %398 = vmatprep.subr.bf16.mxu0 0
      %399 = vmatpush1.bf16.msra.mxu0 0
      %400 = vmatprep.subr.bf16.mxu0 0
      %401 = vmatpush1.bf16.msra.mxu0 0
      %402 = vmatprep.subr.bf16.mxu0 0
      %403 = vmatpush1.bf16.msra.mxu0 0
      %404 = vmatprep.subr.bf16.mxu0 0
      %405 = vmatpush1.bf16.msra.mxu0 0
      %406 = vmatprep.mubr.bf16.mxu0 0
      %407 = vmatmul.mubr.bf16.gmra.mrb[0].mxu0 %v372
      %v408 = vpop.f32.mrb[0].mxu0
      %v409 = vadd.f32 %v368, %v408
      %v410 = vpop.f32.mrb[0].mxu0
      %v411 = vpop.f32.mrb[0].mxu0
      %v412 = vadd.f32 %v368, %v411
      %v413 = vpop.f32.mrb[0].mxu0
      %414 = vdwg.mxu0
      %v415 = vld [vmem:[%s2] sm:$0xff]
      %v416 = vld [vmem:[%s2 + $0x8] sm:$0xff]
      %v417 = vpack.c.bf16 %v412, %v409
      %419 = vrot.lane.b32.xlu0 %v417, 96
      %v420 = vpop.permute.xlu0 %419
      %vm421 = vcmask 64512
      %v423 = vsel %vm421, %v417, 0
      %v426 = vsel %vm421, %v420, 0
      %428 = vmatprep.subr.bf16.mxu0 0
      %429 = vmatpush1.bf16.xpose.msra.mxu0 %v426
      %430 = vmatprep.subr.bf16.mxu0 0
      %431 = vmatpush1.bf16.xpose.msra.mxu0 0
      %432 = vmatprep.subr.bf16.mxu0 0
      %433 = vmatpush1.bf16.xpose.msra.mxu0 0
      %434 = vmatprep.subr.bf16.mxu0 0
      %435 = vmatpush1.bf16.xpose.msra.mxu0 0
      %436 = vmatprep.subr.bf16.mxu0 0
      %437 = vmatpush1.bf16.xpose.msra.mxu0 0
      %438 = vmatprep.subr.bf16.mxu0 0
      %439 = vmatpush1.bf16.xpose.msra.mxu0 0
      %440 = vmatprep.subr.bf16.mxu0 0
      %441 = vmatpush1.bf16.xpose.msra.mxu0 0
      %442 = vmatprep.subr.bf16.mxu0 0
      %443 = vmatpush1.bf16.xpose.msra.mxu0 0
      %444 = vmatprep.subr.bf16.mxu0 0
      %445 = vmatpush1.bf16.xpose.msra.mxu0 0
      %446 = vmatprep.subr.bf16.mxu0 0
      %447 = vmatpush1.bf16.xpose.msra.mxu0 0
      %448 = vmatprep.subr.bf16.mxu0 0
      %449 = vmatpush1.bf16.xpose.msra.mxu0 0
      %450 = vmatprep.subr.bf16.mxu0 0
      %451 = vmatpush1.bf16.xpose.msra.mxu0 0
      %452 = vmatprep.subr.bf16.mxu0 0
      %453 = vmatpush1.bf16.xpose.msra.mxu0 0
      %454 = vmatprep.subr.bf16.mxu0 0
      %455 = vmatpush1.bf16.xpose.msra.mxu0 0
      %456 = vmatprep.subr.bf16.mxu0 0
      %457 = vmatpush1.bf16.xpose.msra.mxu0 0
      %458 = vmatprep.subr.bf16.mxu0 0
      %459 = vmatpush1.bf16.xpose.msra.mxu0 0
      %460 = vmatprep.mubr.bf16.mxu0 0
      %461 = vmatmul.mubr.bf16.gmra.mrb[0].mxu0 %v423
      %v462 = vpop.f32.mrb[0].mxu0
      %v463 = vadd.f32 0.0, %v462
      %v464 = vpop.f32.mrb[0].mxu0
      %v465 = vpop.f32.mrb[0].mxu0
      %v466 = vadd.f32 0.0, %v465
      %v467 = vpop.f32.mrb[0].mxu0
      %468 = vdwg.mxu0
      %v469 = vmul.f32 %v463, 0.35355338
      %v470 = vmul.f32 %v466, 0.35355338
      %v471 = vadd.f32 %v469, %v415
      %v472 = vadd.f32 %v470, %v416
      %vm473 = vcmask 130048
      %v474 = vsel %vm473, %v471, -inf
      %475 = vmax.xlane.f32.xlu0 %v474
      %v476 = vpop.xlane.xlu0 %475
      %v477 = vsel %vm473, %v472, -inf
      %478 = vmax.xlane.f32.xlu0 %v477
      %v479 = vpop.xlane.xlu0 %478
      %v480 = vsub.f32 %v471, %v476
      %v481 = vsub.f32 %v472, %v479
      %v482 = vmul.f32 %v480, 1.442695
      %v483 = vpow.pop %v482
      %v484 = vmul.f32 %v481, 1.442695
      %v485 = vpow.pop %v484
      %v486 = vsel %vm473, %v483, 0.0
      %487 = vadd.xlane.f32.xlu0 %v486
      %v488 = vpop.xlane.xlu0 %487
      %v489 = vsel %vm473, %v485, 0.0
      %490 = vadd.xlane.f32.xlu0 %v489
      %v491 = vpop.xlane.xlu0 %490
      %v492 = vrcp.pop %v488
      %v493 = vrcp.pop %v491
      %v494 = vmul.f32 %v483, %v492
      %v495 = vmul.f32 %v485, %v493
      %v496 = vpack.c.bf16 %v495, %v494
      %497 = vrot.lane.b32.xlu0 %v417, 64
      %v498 = vpop.permute.xlu0 %497
      %v501 = vsel %vm473, %v496, 0
      %503 = vmatprep.subr.bf16.mxu0 0
      %504 = vmatpush1.bf16.msra.mxu0 %v498
      %505 = vmatprep.subr.bf16.mxu0 0
      %506 = vmatpush1.bf16.msra.mxu0 0
      %507 = vmatprep.subr.bf16.mxu0 0
      %508 = vmatpush1.bf16.msra.mxu0 0
      %509 = vmatprep.subr.bf16.mxu0 0
      %510 = vmatpush1.bf16.msra.mxu0 0
      %511 = vmatprep.subr.bf16.mxu0 0
      %512 = vmatpush1.bf16.msra.mxu0 0
      %513 = vmatprep.subr.bf16.mxu0 0
      %514 = vmatpush1.bf16.msra.mxu0 0
      %515 = vmatprep.subr.bf16.mxu0 0
      %516 = vmatpush1.bf16.msra.mxu0 0
      %517 = vmatprep.subr.bf16.mxu0 0
      %518 = vmatpush1.bf16.msra.mxu0 0
      %519 = vmatprep.subr.bf16.mxu0 0
      %520 = vmatpush1.bf16.msra.mxu0 0
      %521 = vmatprep.subr.bf16.mxu0 0
      %522 = vmatpush1.bf16.msra.mxu0 0
      %523 = vmatprep.subr.bf16.mxu0 0
      %524 = vmatpush1.bf16.msra.mxu0 0
      %525 = vmatprep.subr.bf16.mxu0 0
      %526 = vmatpush1.bf16.msra.mxu0 0
      %527 = vmatprep.subr.bf16.mxu0 0
      %528 = vmatpush1.bf16.msra.mxu0 0
      %529 = vmatprep.subr.bf16.mxu0 0
      %530 = vmatpush1.bf16.msra.mxu0 0
      %531 = vmatprep.subr.bf16.mxu0 0
      %532 = vmatpush1.bf16.msra.mxu0 0
      %533 = vmatprep.subr.bf16.mxu0 0
      %534 = vmatpush1.bf16.msra.mxu0 0
      %535 = vmatprep.mubr.bf16.mxu0 0
      %536 = vmatmul.mubr.bf16.gmra.mrb[0].mxu0 %v501
      %v537 = vpop.f32.mrb[0].mxu0
      %v538 = vadd.f32 0.0, %v537
      %v539 = vpop.f32.mrb[0].mxu0
      %v540 = vpop.f32.mrb[0].mxu0
      %v541 = vadd.f32 0.0, %v540
      %v542 = vpop.f32.mrb[0].mxu0
      %543 = vdwg.mxu0
      %544 = vrot.lane.b32.xlu0 %v417, 120
      %v545 = vpop.permute.xlu0 %544
      %546 = vrot.lane.b32.xlu0 %v417, 88
      %v547 = vpop.permute.xlu0 %546
      %v549 = vsel %vm421, %v545, 0
      %v552 = vsel %vm421, %v547, 0
      %554 = vmatprep.subr.bf16.mxu0 0
      %555 = vmatpush1.bf16.xpose.msra.mxu0 %v552
      %556 = vmatprep.subr.bf16.mxu0 0
      %557 = vmatpush1.bf16.xpose.msra.mxu0 0
      %558 = vmatprep.subr.bf16.mxu0 0
      %559 = vmatpush1.bf16.xpose.msra.mxu0 0
      %560 = vmatprep.subr.bf16.mxu0 0
      %561 = vmatpush1.bf16.xpose.msra.mxu0 0
      %562 = vmatprep.subr.bf16.mxu0 0
      %563 = vmatpush1.bf16.xpose.msra.mxu0 0
      %564 = vmatprep.subr.bf16.mxu0 0
      %565 = vmatpush1.bf16.xpose.msra.mxu0 0
      %566 = vmatprep.subr.bf16.mxu0 0
      %567 = vmatpush1.bf16.xpose.msra.mxu0 0
      %568 = vmatprep.subr.bf16.mxu0 0
      %569 = vmatpush1.bf16.xpose.msra.mxu0 0
      %570 = vmatprep.subr.bf16.mxu0 0
      %571 = vmatpush1.bf16.xpose.msra.mxu0 0
      %572 = vmatprep.subr.bf16.mxu0 0
      %573 = vmatpush1.bf16.xpose.msra.mxu0 0
      %574 = vmatprep.subr.bf16.mxu0 0
      %575 = vmatpush1.bf16.xpose.msra.mxu0 0
      %576 = vmatprep.subr.bf16.mxu0 0
      %577 = vmatpush1.bf16.xpose.msra.mxu0 0
      %578 = vmatprep.subr.bf16.mxu0 0
      %579 = vmatpush1.bf16.xpose.msra.mxu0 0
      %580 = vmatprep.subr.bf16.mxu0 0
      %581 = vmatpush1.bf16.xpose.msra.mxu0 0
      %582 = vmatprep.subr.bf16.mxu0 0
      %583 = vmatpush1.bf16.xpose.msra.mxu0 0
      %584 = vmatprep.subr.bf16.mxu0 0
      %585 = vmatpush1.bf16.xpose.msra.mxu0 0
      %586 = vmatprep.mubr.bf16.mxu0 0
      %587 = vmatmul.mubr.bf16.gmra.mrb[0].mxu0 %v549
      %v588 = vpop.f32.mrb[0].mxu0
      %v589 = vadd.f32 0.0, %v588
      %v590 = vpop.f32.mrb[0].mxu0
      %v591 = vpop.f32.mrb[0].mxu0
      %v592 = vadd.f32 0.0, %v591
      %v593 = vpop.f32.mrb[0].mxu0
      %594 = vdwg.mxu0
      %v595 = vmul.f32 %v589, 0.35355338
      %v596 = vmul.f32 %v592, 0.35355338
      %v597 = vadd.f32 %v595, %v415
      %v598 = vadd.f32 %v596, %v416
      %v599 = vsel %vm473, %v597, -inf
      %600 = vmax.xlane.f32.xlu0 %v599
      %v601 = vpop.xlane.xlu0 %600
      %v602 = vsel %vm473, %v598, -inf
      %603 = vmax.xlane.f32.xlu0 %v602
      %v604 = vpop.xlane.xlu0 %603
      %v605 = vsub.f32 %v597, %v601
      %v606 = vsub.f32 %v598, %v604
      %v607 = vmul.f32 %v605, 1.442695
      %v608 = vpow.pop %v607
      %v609 = vmul.f32 %v606, 1.442695
      %v610 = vpow.pop %v609
      %v611 = vsel %vm473, %v608, 0.0
      %612 = vadd.xlane.f32.xlu0 %v611
      %v613 = vpop.xlane.xlu0 %612
      %v614 = vsel %vm473, %v610, 0.0
      %615 = vadd.xlane.f32.xlu0 %v614
      %v616 = vpop.xlane.xlu0 %615
      %v617 = vrcp.pop %v613
      %v618 = vrcp.pop %v616
      %v619 = vmul.f32 %v608, %v617
      %v620 = vmul.f32 %v610, %v618
      %v621 = vpack.c.bf16 %v620, %v619
      %622 = vrot.lane.b32.xlu0 %v417, 56
      %v623 = vpop.permute.xlu0 %622
      %v626 = vsel %vm473, %v621, 0
      %628 = vmatprep.subr.bf16.mxu0 0
      %629 = vmatpush1.bf16.msra.mxu0 %v623
      %630 = vmatprep.subr.bf16.mxu0 0
      %631 = vmatpush1.bf16.msra.mxu0 0
      %632 = vmatprep.subr.bf16.mxu0 0
      %633 = vmatpush1.bf16.msra.mxu0 0
      %634 = vmatprep.subr.bf16.mxu0 0
      %635 = vmatpush1.bf16.msra.mxu0 0
      %636 = vmatprep.subr.bf16.mxu0 0
      %637 = vmatpush1.bf16.msra.mxu0 0
      %638 = vmatprep.subr.bf16.mxu0 0
      %639 = vmatpush1.bf16.msra.mxu0 0
      %640 = vmatprep.subr.bf16.mxu0 0
      %641 = vmatpush1.bf16.msra.mxu0 0
      %642 = vmatprep.subr.bf16.mxu0 0
      %643 = vmatpush1.bf16.msra.mxu0 0
      %644 = vmatprep.subr.bf16.mxu0 0
      %645 = vmatpush1.bf16.msra.mxu0 0
      %646 = vmatprep.subr.bf16.mxu0 0
      %647 = vmatpush1.bf16.msra.mxu0 0
      %648 = vmatprep.subr.bf16.mxu0 0
      %649 = vmatpush1.bf16.msra.mxu0 0
      %650 = vmatprep.subr.bf16.mxu0 0
      %651 = vmatpush1.bf16.msra.mxu0 0
      %652 = vmatprep.subr.bf16.mxu0 0
      %653 = vmatpush1.bf16.msra.mxu0 0
      %654 = vmatprep.subr.bf16.mxu0 0
      %655 = vmatpush1.bf16.msra.mxu0 0
      %656 = vmatprep.subr.bf16.mxu0 0
      %657 = vmatpush1.bf16.msra.mxu0 0
      %658 = vmatprep.subr.bf16.mxu0 0
      %659 = vmatpush1.bf16.msra.mxu0 0
      %660 = vmatprep.mubr.bf16.mxu0 0
      %661 = vmatmul.mubr.bf16.gmra.mrb[0].mxu0 %v626
      %v662 = vpop.f32.mrb[0].mxu0
      %v663 = vadd.f32 0.0, %v662
      %v664 = vpop.f32.mrb[0].mxu0
      %v665 = vpop.f32.mrb[0].mxu0
      %v666 = vadd.f32 0.0, %v665
      %v667 = vpop.f32.mrb[0].mxu0
      %668 = vdwg.mxu0
      %669 = vrot.lane.b32.xlu0 %v417, 112
      %v670 = vpop.permute.xlu0 %669
      %671 = vrot.lane.b32.xlu0 %v417, 80
      %v672 = vpop.permute.xlu0 %671
      %v674 = vsel %vm421, %v670, 0
      %v677 = vsel %vm421, %v672, 0
      %679 = vmatprep.subr.bf16.mxu0 0
      %680 = vmatpush1.bf16.xpose.msra.mxu0 %v677
      %681 = vmatprep.subr.bf16.mxu0 0
      %682 = vmatpush1.bf16.xpose.msra.mxu0 0
      %683 = vmatprep.subr.bf16.mxu0 0
      %684 = vmatpush1.bf16.xpose.msra.mxu0 0
      %685 = vmatprep.subr.bf16.mxu0 0
      %686 = vmatpush1.bf16.xpose.msra.mxu0 0
      %687 = vmatprep.subr.bf16.mxu0 0
      %688 = vmatpush1.bf16.xpose.msra.mxu0 0
      %689 = vmatprep.subr.bf16.mxu0 0
      %690 = vmatpush1.bf16.xpose.msra.mxu0 0
      %691 = vmatprep.subr.bf16.mxu0 0
      %692 = vmatpush1.bf16.xpose.msra.mxu0 0
      %693 = vmatprep.subr.bf16.mxu0 0
      %694 = vmatpush1.bf16.xpose.msra.mxu0 0
      %695 = vmatprep.subr.bf16.mxu0 0
      %696 = vmatpush1.bf16.xpose.msra.mxu0 0
      %697 = vmatprep.subr.bf16.mxu0 0
      %698 = vmatpush1.bf16.xpose.msra.mxu0 0
      %699 = vmatprep.subr.bf16.mxu0 0
      %700 = vmatpush1.bf16.xpose.msra.mxu0 0
      %701 = vmatprep.subr.bf16.mxu0 0
      %702 = vmatpush1.bf16.xpose.msra.mxu0 0
      %703 = vmatprep.subr.bf16.mxu0 0
      %704 = vmatpush1.bf16.xpose.msra.mxu0 0
      %705 = vmatprep.subr.bf16.mxu0 0
      %706 = vmatpush1.bf16.xpose.msra.mxu0 0
      %707 = vmatprep.subr.bf16.mxu0 0
      %708 = vmatpush1.bf16.xpose.msra.mxu0 0
      %709 = vmatprep.subr.bf16.mxu0 0
      %710 = vmatpush1.bf16.xpose.msra.mxu0 0
      %711 = vmatprep.mubr.bf16.mxu0 0
      %712 = vmatmul.mubr.bf16.gmra.mrb[0].mxu0 %v674
      %v713 = vpop.f32.mrb[0].mxu0
      %v714 = vadd.f32 0.0, %v713
      %v715 = vpop.f32.mrb[0].mxu0
      %v716 = vpop.f32.mrb[0].mxu0
      %v717 = vadd.f32 0.0, %v716
      %v718 = vpop.f32.mrb[0].mxu0
      %719 = vdwg.mxu0
      %v720 = vmul.f32 %v714, 0.35355338
      %v721 = vmul.f32 %v717, 0.35355338
      %v722 = vadd.f32 %v720, %v415
      %v723 = vadd.f32 %v721, %v416
      %v724 = vsel %vm473, %v722, -inf
      %725 = vmax.xlane.f32.xlu0 %v724
      %v726 = vpop.xlane.xlu0 %725
      %v727 = vsel %vm473, %v723, -inf
      %728 = vmax.xlane.f32.xlu0 %v727
      %v729 = vpop.xlane.xlu0 %728
      %v730 = vsub.f32 %v722, %v726
      %v731 = vsub.f32 %v723, %v729
      %v732 = vmul.f32 %v730, 1.442695
      %v733 = vpow.pop %v732
      %v734 = vmul.f32 %v731, 1.442695
      %v735 = vpow.pop %v734
      %v736 = vsel %vm473, %v733, 0.0
      %737 = vadd.xlane.f32.xlu0 %v736
      %v738 = vpop.xlane.xlu0 %737
      %v739 = vsel %vm473, %v735, 0.0
      %740 = vadd.xlane.f32.xlu0 %v739
      %v741 = vpop.xlane.xlu0 %740
      %v742 = vrcp.pop %v738
      %v743 = vrcp.pop %v741
      %v744 = vmul.f32 %v733, %v742
      %v745 = vmul.f32 %v735, %v743
      %v746 = vpack.c.bf16 %v745, %v744
      %747 = vrot.lane.b32.xlu0 %v417, 48
      %v748 = vpop.permute.xlu0 %747
      %v751 = vsel %vm473, %v746, 0
      %753 = vmatprep.subr.bf16.mxu0 0
      %754 = vmatpush1.bf16.msra.mxu0 %v748
      %755 = vmatprep.subr.bf16.mxu0 0
      %756 = vmatpush1.bf16.msra.mxu0 0
      %757 = vmatprep.subr.bf16.mxu0 0
      %758 = vmatpush1.bf16.msra.mxu0 0
      %759 = vmatprep.subr.bf16.mxu0 0
      %760 = vmatpush1.bf16.msra.mxu0 0
      %761 = vmatprep.subr.bf16.mxu0 0
      %762 = vmatpush1.bf16.msra.mxu0 0
      %763 = vmatprep.subr.bf16.mxu0 0
      %764 = vmatpush1.bf16.msra.mxu0 0
      %765 = vmatprep.subr.bf16.mxu0 0
      %766 = vmatpush1.bf16.msra.mxu0 0
      %767 = vmatprep.subr.bf16.mxu0 0
      %768 = vmatpush1.bf16.msra.mxu0 0
      %769 = vmatprep.subr.bf16.mxu0 0
      %770 = vmatpush1.bf16.msra.mxu0 0
      %771 = vmatprep.subr.bf16.mxu0 0
      %772 = vmatpush1.bf16.msra.mxu0 0
      %773 = vmatprep.subr.bf16.mxu0 0
      %774 = vmatpush1.bf16.msra.mxu0 0
      %775 = vmatprep.subr.bf16.mxu0 0
      %776 = vmatpush1.bf16.msra.mxu0 0
      %777 = vmatprep.subr.bf16.mxu0 0
      %778 = vmatpush1.bf16.msra.mxu0 0
      %779 = vmatprep.subr.bf16.mxu0 0
      %780 = vmatpush1.bf16.msra.mxu0 0
      %781 = vmatprep.subr.bf16.mxu0 0
      %782 = vmatpush1.bf16.msra.mxu0 0
      %783 = vmatprep.subr.bf16.mxu0 0
      %784 = vmatpush1.bf16.msra.mxu0 0
      %785 = vmatprep.mubr.bf16.mxu0 0
      %786 = vmatmul.mubr.bf16.gmra.mrb[0].mxu0 %v751
      %v787 = vpop.f32.mrb[0].mxu0
      %v788 = vadd.f32 0.0, %v787
      %v789 = vpop.f32.mrb[0].mxu0
      %v790 = vpop.f32.mrb[0].mxu0
      %v791 = vadd.f32 0.0, %v790
      %v792 = vpop.f32.mrb[0].mxu0
      %793 = vdwg.mxu0
      %794 = vrot.lane.b32.xlu0 %v417, 104
      %v795 = vpop.permute.xlu0 %794
      %796 = vrot.lane.b32.xlu0 %v417, 72
      %v797 = vpop.permute.xlu0 %796
      %v799 = vsel %vm421, %v795, 0
      %v802 = vsel %vm421, %v797, 0
      %804 = vmatprep.subr.bf16.mxu0 0
      %805 = vmatpush1.bf16.xpose.msra.mxu0 %v802
      %806 = vmatprep.subr.bf16.mxu0 0
      %807 = vmatpush1.bf16.xpose.msra.mxu0 0
      %808 = vmatprep.subr.bf16.mxu0 0
      %809 = vmatpush1.bf16.xpose.msra.mxu0 0
      %810 = vmatprep.subr.bf16.mxu0 0
      %811 = vmatpush1.bf16.xpose.msra.mxu0 0
      %812 = vmatprep.subr.bf16.mxu0 0
      %813 = vmatpush1.bf16.xpose.msra.mxu0 0
      %814 = vmatprep.subr.bf16.mxu0 0
      %815 = vmatpush1.bf16.xpose.msra.mxu0 0
      %816 = vmatprep.subr.bf16.mxu0 0
      %817 = vmatpush1.bf16.xpose.msra.mxu0 0
      %818 = vmatprep.subr.bf16.mxu0 0
      %819 = vmatpush1.bf16.xpose.msra.mxu0 0
      %820 = vmatprep.subr.bf16.mxu0 0
      %821 = vmatpush1.bf16.xpose.msra.mxu0 0
      %822 = vmatprep.subr.bf16.mxu0 0
      %823 = vmatpush1.bf16.xpose.msra.mxu0 0
      %824 = vmatprep.subr.bf16.mxu0 0
      %825 = vmatpush1.bf16.xpose.msra.mxu0 0
      %826 = vmatprep.subr.bf16.mxu0 0
      %827 = vmatpush1.bf16.xpose.msra.mxu0 0
      %828 = vmatprep.subr.bf16.mxu0 0
      %829 = vmatpush1.bf16.xpose.msra.mxu0 0
      %830 = vmatprep.subr.bf16.mxu0 0
      %831 = vmatpush1.bf16.xpose.msra.mxu0 0
      %832 = vmatprep.subr.bf16.mxu0 0
      %833 = vmatpush1.bf16.xpose.msra.mxu0 0
      %834 = vmatprep.subr.bf16.mxu0 0
      %835 = vmatpush1.bf16.xpose.msra.mxu0 0
      %836 = vmatprep.mubr.bf16.mxu0 0
      %837 = vmatmul.mubr.bf16.gmra.mrb[0].mxu0 %v799
      %v838 = vpop.f32.mrb[0].mxu0
      %v839 = vadd.f32 0.0, %v838
      %v840 = vpop.f32.mrb[0].mxu0
      %v841 = vpop.f32.mrb[0].mxu0
      %v842 = vadd.f32 0.0, %v841
      %v843 = vpop.f32.mrb[0].mxu0
      %844 = vdwg.mxu0
      %v845 = vmul.f32 %v839, 0.35355338
      %v846 = vmul.f32 %v842, 0.35355338
      %v847 = vadd.f32 %v845, %v415
      %v848 = vadd.f32 %v846, %v416
      %v849 = vsel %vm473, %v847, -inf
      %850 = vmax.xlane.f32.xlu0 %v849
      %v851 = vpop.xlane.xlu0 %850
      %v852 = vsel %vm473, %v848, -inf
      %853 = vmax.xlane.f32.xlu0 %v852
      %v854 = vpop.xlane.xlu0 %853
      %v855 = vsub.f32 %v847, %v851
      %v856 = vsub.f32 %v848, %v854
      %v857 = vmul.f32 %v855, 1.442695
      %v858 = vpow.pop %v857
      %v859 = vmul.f32 %v856, 1.442695
      %v860 = vpow.pop %v859
      %v861 = vsel %vm473, %v858, 0.0
      %862 = vadd.xlane.f32.xlu0 %v861
      %v863 = vpop.xlane.xlu0 %862
      %v864 = vsel %vm473, %v860, 0.0
      %865 = vadd.xlane.f32.xlu0 %v864
      %v866 = vpop.xlane.xlu0 %865
      %v867 = vrcp.pop %v863
      %v868 = vrcp.pop %v866
      %v869 = vmul.f32 %v858, %v867
      %v870 = vmul.f32 %v860, %v868
      %v871 = vpack.c.bf16 %v870, %v869
      %872 = vrot.lane.b32.xlu0 %v417, 40
      %v873 = vpop.permute.xlu0 %872
      %v876 = vsel %vm473, %v871, 0
      %878 = vmatprep.subr.bf16.mxu0 0
      %879 = vmatpush1.bf16.msra.mxu0 %v873
      %880 = vmatprep.subr.bf16.mxu0 0
      %881 = vmatpush1.bf16.msra.mxu0 0
      %882 = vmatprep.subr.bf16.mxu0 0
      %883 = vmatpush1.bf16.msra.mxu0 0
      %884 = vmatprep.subr.bf16.mxu0 0
      %885 = vmatpush1.bf16.msra.mxu0 0
      %886 = vmatprep.subr.bf16.mxu0 0
      %887 = vmatpush1.bf16.msra.mxu0 0
      %888 = vmatprep.subr.bf16.mxu0 0
      %889 = vmatpush1.bf16.msra.mxu0 0
      %890 = vmatprep.subr.bf16.mxu0 0
      %891 = vmatpush1.bf16.msra.mxu0 0
      %892 = vmatprep.subr.bf16.mxu0 0
      %893 = vmatpush1.bf16.msra.mxu0 0
      %894 = vmatprep.subr.bf16.mxu0 0
      %895 = vmatpush1.bf16.msra.mxu0 0
      %896 = vmatprep.subr.bf16.mxu0 0
      %897 = vmatpush1.bf16.msra.mxu0 0
      %898 = vmatprep.subr.bf16.mxu0 0
      %899 = vmatpush1.bf16.msra.mxu0 0
      %900 = vmatprep.subr.bf16.mxu0 0
      %901 = vmatpush1.bf16.msra.mxu0 0
      %902 = vmatprep.subr.bf16.mxu0 0
      %903 = vmatpush1.bf16.msra.mxu0 0
      %904 = vmatprep.subr.bf16.mxu0 0
      %905 = vmatpush1.bf16.msra.mxu0 0
      %906 = vmatprep.subr.bf16.mxu0 0
      %907 = vmatpush1.bf16.msra.mxu0 0
      %908 = vmatprep.subr.bf16.mxu0 0
      %909 = vmatpush1.bf16.msra.mxu0 0
      %910 = vmatprep.mubr.bf16.mxu0 0
      %911 = vmatmul.mubr.bf16.gmra.mrb[0].mxu0 %v876
      %v912 = vpop.f32.mrb[0].mxu0
      %v913 = vadd.f32 0.0, %v912
      %v914 = vpop.f32.mrb[0].mxu0
      %v915 = vpop.f32.mrb[0].mxu0
      %v916 = vadd.f32 0.0, %v915
      %v917 = vpop.f32.mrb[0].mxu0
      %918 = vdwg.mxu0
      %921 = vrot.lane.b32.xlu0 %v663, 8
      %v922 = vpop.permute.xlu0 %921
      %923 = vrot.lane.b32.xlu0 %v666, 8
      %v924 = vpop.permute.xlu0 %923
      %929 = vrot.lane.b32.xlu0 %v788, 16
      %v930 = vpop.permute.xlu0 %929
      %931 = vrot.lane.b32.xlu0 %v791, 16
      %v932 = vpop.permute.xlu0 %931
      %937 = vrot.lane.b32.xlu0 %v913, 24
      %v938 = vpop.permute.xlu0 %937
      %939 = vrot.lane.b32.xlu0 %v916, 24
      %v940 = vpop.permute.xlu0 %939
      %v943 = vsel %vm421, %v538, %v922
      %v944 = vsel %vm421, %v541, %v924
      %v945 = vsel %vm473, %v943, %v930
      %v946 = vsel %vm473, %v944, %v932
      %vm947 = vcmask 195584
      %v948 = vsel %vm947, %v945, %v938
      %v949 = vsel %vm947, %v946, %v940
      %v950 = vpack.c.bf16 %v949, %v948
      %v951 = vld [vmem:[%s5] sm:$0xff]
      %v952 = vld [vmem:[%s5 + $0x8] sm:$0xff]
      %v953 = vld [vmem:[%s5 + $0x10] sm:$0xff]
      %v954 = vld [vmem:[%s5 + $0x18] sm:$0xff]
      %v955 = vpack.c.bf16 %v952, %v951
      %v956 = vpack.c.bf16 %v954, %v953
      %v957 = vld [vmem:[%s6] sm:$0x1]
      %v959 = vlaneseq
      %v960 = vshrl.u32 %v959, 7
      %v961 = vsub.s32 0, %v960
      %v962 = vrot.slane %v957, %v961
      %v965 = vsel %vm370, %v950, 0
      %967 = vmatprep.subr.bf16.mxu0 0
      %968 = vmatpush1.bf16.msra.mxu0 %v955
      %969 = vmatprep.subr.bf16.mxu0 0
      %970 = vmatpush1.bf16.msra.mxu0 %v956
      %971 = vmatprep.subr.bf16.mxu0 0
      %972 = vmatpush1.bf16.msra.mxu0 0
      %973 = vmatprep.subr.bf16.mxu0 0
      %974 = vmatpush1.bf16.msra.mxu0 0
      %975 = vmatprep.subr.bf16.mxu0 0
      %976 = vmatpush1.bf16.msra.mxu0 0
      %977 = vmatprep.subr.bf16.mxu0 0
      %978 = vmatpush1.bf16.msra.mxu0 0
      %979 = vmatprep.subr.bf16.mxu0 0
      %980 = vmatpush1.bf16.msra.mxu0 0
      %981 = vmatprep.subr.bf16.mxu0 0
      %982 = vmatpush1.bf16.msra.mxu0 0
      %983 = vmatprep.subr.bf16.mxu0 0
      %984 = vmatpush1.bf16.msra.mxu0 0
      %985 = vmatprep.subr.bf16.mxu0 0
      %986 = vmatpush1.bf16.msra.mxu0 0
      %987 = vmatprep.subr.bf16.mxu0 0
      %988 = vmatpush1.bf16.msra.mxu0 0
      %989 = vmatprep.subr.bf16.mxu0 0
      %990 = vmatpush1.bf16.msra.mxu0 0
      %991 = vmatprep.subr.bf16.mxu0 0
      %992 = vmatpush1.bf16.msra.mxu0 0
      %993 = vmatprep.subr.bf16.mxu0 0
      %994 = vmatpush1.bf16.msra.mxu0 0
      %995 = vmatprep.subr.bf16.mxu0 0
      %996 = vmatpush1.bf16.msra.mxu0 0
      %997 = vmatprep.subr.bf16.mxu0 0
      %998 = vmatpush1.bf16.msra.mxu0 0
      %999 = vmatprep.mubr.bf16.mxu0 0
      %1000 = vmatmul.mubr.bf16.gmra.mrb[0].mxu0 %v965
      %v1001 = vpop.f32.mrb[0].mxu0
      %v1002 = vadd.f32 %v962, %v1001
      %v1003 = vpop.f32.mrb[0].mxu0
      %v1004 = vpop.f32.mrb[0].mxu0
      %v1005 = vadd.f32 %v962, %v1004
      %v1006 = vpop.f32.mrb[0].mxu0
      %1007 = vdwg.mxu0
      %v1008 = vadd.f32 %v354, %v1002
      %v1009 = vadd.f32 %v355, %v1005
      %v1010 = vld [vmem:[%s7] sm:$0x1]
      %v1011 = vld [vmem:[%s8] sm:$0x1]
      %v1012 = vsel %vm370, %v1008, 0.0
      %1013 = vadd.xlane.f32.xlu0 %v1012
      %v1014 = vpop.xlane.xlu0 %1013
      %v1015 = vsel %vm370, %v1009, 0.0
      %1016 = vadd.xlane.f32.xlu0 %v1015
      %v1017 = vpop.xlane.xlu0 %1016
      %v1018 = vrcp.pop 32.0
      %v1019 = vmul.f32 %v1014, %v1018
      %v1020 = vmul.f32 %v1017, %v1018
      %v1021 = vsub.f32 %v1008, %v1019
      %v1022 = vsub.f32 %v1009, %v1020
      %v1023 = vmul.f32 %v1021, %v1021
      %v1024 = vmul.f32 %v1022, %v1022
      %v1025 = vsel %vm370, %v1023, 0.0
      %1026 = vadd.xlane.f32.xlu0 %v1025
      %v1027 = vpop.xlane.xlu0 %1026
      %v1028 = vsel %vm370, %v1024, 0.0
      %1029 = vadd.xlane.f32.xlu0 %v1028
      %v1030 = vpop.xlane.xlu0 %1029
      %v1031 = vmul.f32 %v1027, %v1018
      %v1032 = vmul.f32 %v1030, %v1018
      %v1033 = vadd.f32 %v1031, 1e-05
      %v1034 = vadd.f32 %v1032, 1e-05
      %v1035 = vrsqrt.pop %v1033
      %v1036 = vrsqrt.pop %v1034
      %v1037 = vmul.f32 %v1021, %v1035
      %v1038 = vmul.f32 %v1022, %v1036
      %v1040 = vlaneseq
      %v1041 = vshrl.u32 %v1040, 7
      %v1042 = vsub.s32 0, %v1041
      %v1043 = vrot.slane %v1010, %v1042
      %v1045 = vmul.f32 %v1037, %v1043
      %v1046 = vmul.f32 %v1038, %v1043
      %v1048 = vlaneseq
      %v1049 = vshrl.u32 %v1048, 7
      %v1050 = vsub.s32 0, %v1049
      %v1051 = vrot.slane %v1011, %v1050
      %v1053 = vadd.f32 %v1045, %v1051
      %v1054 = vadd.f32 %v1046, %v1051
      %1055 = vst.msk [vmem:[%s352] sm:$0xff] %vm370, %v1053
      %1056 = vst.msk [vmem:[%s352 + $0x8] sm:$0xff] %vm370, %v1054
      %p1057 = scmp.lt.s32.totalorder %s20, 1
      %s1058 = scalar_select %p1057, %s20, 1
      %s1059 = smul.addr %s1058, 2
      %s1060 = smul.addr %s1059, 8
      %s1061 = scalar_lea.vmem %s9, %s1060
      // Predicated region
      $region57: #{informer_forward.18} parent=55 // pred_check
        %p1062 = pneg %p237
      $region58: #{informer_forward.18} parent=55 // pred_check_branch
        %1064 = sbr.rel (%p1062) target = $region60
      $region59: #{informer_forward.18} parent=55 // pred_region
        _
      $region60: #{informer_forward.18} parent=55 // pred_fallthru
        _
    $region56: #{informer_forward.18} parent=5 // pred_fallthru
      _
    %p1065 = scmp.le.s32.totalorder 2, %s15
    // Predicated region
    $region61: #{informer_forward.18} parent=5 // pred_check
      %p1066 = pneg %p1065
    $region62: #{informer_forward.18} parent=5 // pred_check_branch
      %1068 = sbr.rel (%p1066) target = $region64
    $region63: #{informer_forward.18} parent=5 // pred_region
      %s1069 = ssub.s32 %s15, 2
      // Predicated region
      $region65: #{informer_forward.18} parent=63 // pred_check
        %p1070 = pneg %p243
      $region66: #{informer_forward.18} parent=63 // pred_check_branch
        %1072 = sbr.rel (%p1070) target = $region68
      $region67: #{informer_forward.18} parent=63 // pred_region
        %p1073 = scmp.lt.s32.totalorder %s21, 1
        %s1074 = scalar_select %p1073, %s21, 1
        %s1075 = smul.addr %s1074, 2
        %s1076 = smul.addr %s1075, 8
        %s1077 = scalar_lea.vmem %s9, %s1076
      $region68: #{informer_forward.18} parent=63 // pred_fallthru
        _
    $region64: #{informer_forward.18} parent=5 // pred_fallthru
      _
  $region6: #{informer_forward.18} parent=0 // loop_footer
    %s19 = sadd.s32 1, %s15
  $region7: #{informer_forward.18} parent=0 // loop_footer_branch
    %14 = sbr.rel target = $region3
  $region8: #{informer_forward.18} parent=0 // loop_exit
    _

// kernel: informer_forward.13
$region0: #{informer_forward.13}
  #allocation0 [shape = 'u32[]', space=smem, size = 0x4, offset = 0x4, fixed_abs, tag = 'smem constant byte address 0x4 - core index']
  #allocation1 [shape = 'u32[144,128]{1,0:T(1,128)}', space=vmem, size = 0x12000, scoped, tag = 'internal scratch']
  %s0 = inlined_call_operand.vmem [shape: f32[2,16,32], index: 0, kind: input, shape index: {}]
  %s1 = inlined_call_operand.vmem [shape: f32[32,64], index: 1, kind: input, shape index: {}]
  %s2 = inlined_call_operand.vmem [shape: f32[1,64], index: 2, kind: input, shape index: {}]
  %s3 = inlined_call_operand.vmem [shape: f32[64,32], index: 3, kind: input, shape index: {}]
  %s4 = inlined_call_operand.vmem [shape: f32[1,32], index: 4, kind: input, shape index: {}]
  %s5 = inlined_call_operand.vmem [shape: f32[1,32], index: 5, kind: input, shape index: {}]
  %s6 = inlined_call_operand.vmem [shape: f32[1,32], index: 6, kind: input, shape index: {}]
  %s7 = inlined_call_operand.vmem [shape: f32[2,16,32], index: 7, kind: output, shape index: {}]
  %s8 = sld [smem:[#allocation0]]
  $region61: #{informer_forward.13} parent=0
    _
  %s10 = ssub.s32 1, %s8
  %s11 = scalar_select 0, %s10, %s8
  loop: start=0, step=1, limit=4
  $region2: #{informer_forward.13} parent=0 // loop_pre_header
    _
  $region3: #{informer_forward.13} parent=0 // loop_header
    %s13 = sphi 0, %s17
    %p14 = scmp.ge.s32.totalorder %s13, 4
    %s23 = sphi 0, %s25
    %s26 = sphi 0, %s23
    %s27 = sphi 0, %s26
    %s43 = sphi 0, %s27
    %s47 = sphi 0, %s47
    %s49 = sphi 0, %s47
    %s50 = sphi 0, %s49
    %s64 = sphi 0, %s50
    %s68 = sphi 0, %s68
    %s70 = sphi 0, %s68
    %s71 = sphi 0, %s70
    %s85 = sphi 0, %s71
    %s89 = sphi 0, %s89
    %s91 = sphi 0, %s89
    %s92 = sphi 0, %s91
    %s106 = sphi 0, %s92
    %s110 = sphi 0, %s110
    %s112 = sphi 0, %s110
    %s113 = sphi 0, %s112
    %s127 = sphi 0, %s113
    %s131 = sphi 0, %s131
    %s133 = sphi 0, %s131
    %s134 = sphi 0, %s133
    %s148 = sphi 0, %s134
    %s152 = sphi 0, %s152
    %s154 = sphi 0, %s152
    %s155 = sphi 0, %s154
    %s169 = sphi 0, %s155
    %s175 = sphi 0, %s177
    %s178 = sphi 0, %s175
    %s179 = sphi 0, %s178
    %s195 = sphi 0, %s179
  $region4: #{informer_forward.13} parent=0 // loop_header_branch
    %16 = sbr.rel (%p14) target = $region8
  $region5: #{informer_forward.13} parent=0 // loop_body
    %s18 = ssub.s32 %s13, 1
    %s19 = ssub.s32 %s13, 2
    %s20 = sadd.s32 %s13, 1
    %s21 = ssub.s32 %s13, %s20
    %p22 = scmp.eq.s32.totalorder %s21, 0
    %s24 = sadd.s32 %s23, 1
    %s25 = scalar_select %p22, %s23, %s24
    %p28 = pneg %p22
    %p29 = scmp.eq.s32.totalorder %s13, 1
    %p30 = por %p28, %p29
    %p31 = scmp.ne.s32.totalorder %s23, %s26
    %p32 = scmp.eq.s32.totalorder %s13, 0
    %p33 = por %p31, %p32
    %p34 = scmp.ne.s32.totalorder %s23, %s26
    %p35 = scmp.eq.s32.totalorder %s18, 1
    %p36 = por %p34, %p35
    %p37 = scmp.ne.s32.totalorder %s26, %s27
    %p38 = scmp.eq.s32.totalorder %s18, 0
    %p39 = por %p37, %p38
    %p40 = scmp.ne.s32.totalorder %s26, %s27
    %p41 = scmp.eq.s32.totalorder %s19, 1
    %p42 = por %p40, %p41
    %p44 = scmp.ne.s32.totalorder %s27, %s43
    %p45 = scmp.eq.s32.totalorder %s19, 0
    %p46 = por %p44, %p45
    %s48 = sadd.s32 %s47, 1
    %p51 = scmp.eq.s32.totalorder %s13, 1
    %p52 = scmp.ne.s32.totalorder %s47, %s49
    %p53 = scmp.eq.s32.totalorder %s13, 0
    %p54 = por %p52, %p53
    %p55 = scmp.ne.s32.totalorder %s47, %s49
    %p56 = scmp.eq.s32.totalorder %s18, 1
    %p57 = por %p55, %p56
    %p58 = scmp.ne.s32.totalorder %s49, %s50
    %p59 = scmp.eq.s32.totalorder %s18, 0
    %p60 = por %p58, %p59
    %p61 = scmp.ne.s32.totalorder %s49, %s50
    %p62 = scmp.eq.s32.totalorder %s19, 1
    %p63 = por %p61, %p62
    %p65 = scmp.ne.s32.totalorder %s50, %s64
    %p66 = scmp.eq.s32.totalorder %s19, 0
    %p67 = por %p65, %p66
    %s69 = sadd.s32 %s68, 1
    %p72 = scmp.eq.s32.totalorder %s13, 1
    %p73 = scmp.ne.s32.totalorder %s68, %s70
    %p74 = scmp.eq.s32.totalorder %s13, 0
    %p75 = por %p73, %p74
    %p76 = scmp.ne.s32.totalorder %s68, %s70
    %p77 = scmp.eq.s32.totalorder %s18, 1
    %p78 = por %p76, %p77
    %p79 = scmp.ne.s32.totalorder %s70, %s71
    %p80 = scmp.eq.s32.totalorder %s18, 0
    %p81 = por %p79, %p80
    %p82 = scmp.ne.s32.totalorder %s70, %s71
    %p83 = scmp.eq.s32.totalorder %s19, 1
    %p84 = por %p82, %p83
    %p86 = scmp.ne.s32.totalorder %s71, %s85
    %p87 = scmp.eq.s32.totalorder %s19, 0
    %p88 = por %p86, %p87
    %s90 = sadd.s32 %s89, 1
    %p93 = scmp.eq.s32.totalorder %s13, 1
    %p94 = scmp.ne.s32.totalorder %s89, %s91
    %p95 = scmp.eq.s32.totalorder %s13, 0
    %p96 = por %p94, %p95
    %p97 = scmp.ne.s32.totalorder %s89, %s91
    %p98 = scmp.eq.s32.totalorder %s18, 1
    %p99 = por %p97, %p98
    %p100 = scmp.ne.s32.totalorder %s91, %s92
    %p101 = scmp.eq.s32.totalorder %s18, 0
    %p102 = por %p100, %p101
    %p103 = scmp.ne.s32.totalorder %s91, %s92
    %p104 = scmp.eq.s32.totalorder %s19, 1
    %p105 = por %p103, %p104
    %p107 = scmp.ne.s32.totalorder %s92, %s106
    %p108 = scmp.eq.s32.totalorder %s19, 0
    %p109 = por %p107, %p108
    %s111 = sadd.s32 %s110, 1
    %p114 = scmp.eq.s32.totalorder %s13, 1
    %p115 = scmp.ne.s32.totalorder %s110, %s112
    %p116 = scmp.eq.s32.totalorder %s13, 0
    %p117 = por %p115, %p116
    %p118 = scmp.ne.s32.totalorder %s110, %s112
    %p119 = scmp.eq.s32.totalorder %s18, 1
    %p120 = por %p118, %p119
    %p121 = scmp.ne.s32.totalorder %s112, %s113
    %p122 = scmp.eq.s32.totalorder %s18, 0
    %p123 = por %p121, %p122
    %p124 = scmp.ne.s32.totalorder %s112, %s113
    %p125 = scmp.eq.s32.totalorder %s19, 1
    %p126 = por %p124, %p125
    %p128 = scmp.ne.s32.totalorder %s113, %s127
    %p129 = scmp.eq.s32.totalorder %s19, 0
    %p130 = por %p128, %p129
    %s132 = sadd.s32 %s131, 1
    %p135 = scmp.eq.s32.totalorder %s13, 1
    %p136 = scmp.ne.s32.totalorder %s131, %s133
    %p137 = scmp.eq.s32.totalorder %s13, 0
    %p138 = por %p136, %p137
    %p139 = scmp.ne.s32.totalorder %s131, %s133
    %p140 = scmp.eq.s32.totalorder %s18, 1
    %p141 = por %p139, %p140
    %p142 = scmp.ne.s32.totalorder %s133, %s134
    %p143 = scmp.eq.s32.totalorder %s18, 0
    %p144 = por %p142, %p143
    %p145 = scmp.ne.s32.totalorder %s133, %s134
    %p146 = scmp.eq.s32.totalorder %s19, 1
    %p147 = por %p145, %p146
    %p149 = scmp.ne.s32.totalorder %s134, %s148
    %p150 = scmp.eq.s32.totalorder %s19, 0
    %p151 = por %p149, %p150
    %s153 = sadd.s32 %s152, 1
    %p156 = scmp.eq.s32.totalorder %s13, 1
    %p157 = scmp.ne.s32.totalorder %s152, %s154
    %p158 = scmp.eq.s32.totalorder %s13, 0
    %p159 = por %p157, %p158
    %p160 = scmp.ne.s32.totalorder %s152, %s154
    %p161 = scmp.eq.s32.totalorder %s18, 1
    %p162 = por %p160, %p161
    %p163 = scmp.ne.s32.totalorder %s154, %s155
    %p164 = scmp.eq.s32.totalorder %s18, 0
    %p165 = por %p163, %p164
    %p166 = scmp.ne.s32.totalorder %s154, %s155
    %p167 = scmp.eq.s32.totalorder %s19, 1
    %p168 = por %p166, %p167
    %p170 = scmp.ne.s32.totalorder %s155, %s169
    %p171 = scmp.eq.s32.totalorder %s19, 0
    %p172 = por %p170, %p171
    %s173 = ssub.s32 %s13, %s20
    %p174 = scmp.eq.s32.totalorder %s173, 0
    %s176 = sadd.s32 %s175, 1
    %s177 = scalar_select %p174, %s175, %s176
    %p180 = pneg %p174
    %p181 = scmp.eq.s32.totalorder %s13, 1
    %p182 = por %p180, %p181
    %p183 = scmp.ne.s32.totalorder %s175, %s178
    %p184 = scmp.eq.s32.totalorder %s13, 0
    %p185 = por %p183, %p184
    %p186 = scmp.ne.s32.totalorder %s175, %s178
    %p187 = scmp.eq.s32.totalorder %s18, 1
    %p188 = por %p186, %p187
    %p189 = scmp.ne.s32.totalorder %s178, %s179
    %p190 = scmp.eq.s32.totalorder %s18, 0
    %p191 = por %p189, %p190
    %p192 = scmp.ne.s32.totalorder %s178, %s179
    %p193 = scmp.eq.s32.totalorder %s19, 1
    %p194 = por %p192, %p193
    %p196 = scmp.ne.s32.totalorder %s179, %s195
    %p197 = scmp.eq.s32.totalorder %s19, 0
    %p198 = por %p196, %p197
    %p199 = scmp.le.s32.totalorder 1, %s13
    %p200 = scmp.lt.s32.totalorder %s13, 3
    %p201 = pnand %p199, %p200
    %p202 = pneg %p201
    // Predicated region
    $region9: #{informer_forward.13} parent=5 // pred_check
      _
    $region10: #{informer_forward.13} parent=5 // pred_check_branch
      %204 = sbr.rel (%p201) target = $region12
    $region11: #{informer_forward.13} parent=5 // pred_region
      %s205 = ssub.s32 %s13, 1
      // Predicated region
      $region13: #{informer_forward.13} parent=11 // pred_check
        %p206 = pneg %p60
      $region14: #{informer_forward.13} parent=11 // pred_check_branch
        %208 = sbr.rel (%p206) target = $region16
      $region15: #{informer_forward.13} parent=11 // pred_region
        _
      $region16: #{informer_forward.13} parent=11 // pred_fallthru
        _
      // Predicated region
      $region17: #{informer_forward.13} parent=11 // pred_check
        %p209 = pneg %p81
      $region18: #{informer_forward.13} parent=11 // pred_check_branch
        %211 = sbr.rel (%p209) target = $region20
      $region19: #{informer_forward.13} parent=11 // pred_region
        _
      $region20: #{informer_forward.13} parent=11 // pred_fallthru
        _
      // Predicated region
      $region21: #{informer_forward.13} parent=11 // pred_check
        %p212 = pneg %p102
      $region22: #{informer_forward.13} parent=11 // pred_check_branch
        %214 = sbr.rel (%p212) target = $region24
      $region23: #{informer_forward.13} parent=11 // pred_region
        _
      $region24: #{informer_forward.13} parent=11 // pred_fallthru
        _
      // Predicated region
      $region25: #{informer_forward.13} parent=11 // pred_check
        %p215 = pneg %p123
      $region26: #{informer_forward.13} parent=11 // pred_check_branch
        %217 = sbr.rel (%p215) target = $region28
      $region27: #{informer_forward.13} parent=11 // pred_region
        _
      $region28: #{informer_forward.13} parent=11 // pred_fallthru
        _
      // Predicated region
      $region29: #{informer_forward.13} parent=11 // pred_check
        %p218 = pneg %p144
      $region30: #{informer_forward.13} parent=11 // pred_check_branch
        %220 = sbr.rel (%p218) target = $region32
      $region31: #{informer_forward.13} parent=11 // pred_region
        _
      $region32: #{informer_forward.13} parent=11 // pred_fallthru
        _
      // Predicated region
      $region33: #{informer_forward.13} parent=11 // pred_check
        %p221 = pneg %p165
      $region34: #{informer_forward.13} parent=11 // pred_check_branch
        %223 = sbr.rel (%p221) target = $region36
      $region35: #{informer_forward.13} parent=11 // pred_region
        _
      $region36: #{informer_forward.13} parent=11 // pred_fallthru
        _
    $region12: #{informer_forward.13} parent=5 // pred_fallthru
      _
    %p224 = scmp.lt.s32.totalorder %s13, 2
    // Predicated region
    $region37: #{informer_forward.13} parent=5 // pred_check
      %p225 = pneg %p224
    $region38: #{informer_forward.13} parent=5 // pred_check_branch
      %227 = sbr.rel (%p225) target = $region40
    $region39: #{informer_forward.13} parent=5 // pred_region
      // Predicated region
      $region41: #{informer_forward.13} parent=39 // pred_check
        %p228 = pneg %p33
      $region42: #{informer_forward.13} parent=39 // pred_check_branch
        %230 = sbr.rel (%p228) target = $region44
      $region43: #{informer_forward.13} parent=39 // pred_region
        %p231 = scmp.lt.s32.totalorder %s13, 1
        %s232 = scalar_select %p231, %s13, 1
        %s233 = smul.addr %s232, 2
        %s234 = smul.addr %s233, 8
        %s235 = scalar_lea.vmem %s0, %s234
      $region44: #{informer_forward.13} parent=39 // pred_fallthru
        _
    $region40: #{informer_forward.13} parent=5 // pred_fallthru
      _
    %p236 = scmp.le.s32.totalorder 1, %s13
    %p237 = scmp.lt.s32.totalorder %s13, 3
    %p238 = pnand %p236, %p237
    %p239 = pneg %p238
    // Predicated region
    $region45: #{informer_forward.13} parent=5 // pred_check
      _
    $region46: #{informer_forward.13} parent=5 // pred_check_branch
      %241 = sbr.rel (%p238) target = $region48
    $region47: #{informer_forward.13} parent=5 // pred_region
      %s242 = ssub.s32 %s13, 1
      %p243 = scmp.lt.s32.totalorder %s18, 1
      %s244 = scalar_select %p243, %s18, 1
      %s245 = smul.addr %s244, 2
      %s246 = smul.addr %s245, 8
      %s247 = scalar_lea.vmem %s0, %s246
      %p248 = pneg %p39
      %p249 = pneg %p36
      %p250 = pneg %p60
      %p251 = pneg %p57
      %p252 = pneg %p81
      %p253 = pneg %p78
      %p254 = pneg %p102
      %p255 = pneg %p99
      %p256 = pneg %p123
      %p257 = pneg %p120
      %p258 = pneg %p144
      %p259 = pneg %p141
      %p260 = pneg %p165
      %p261 = pneg %p162
      %p262 = pneg %p191
      %p263 = pneg %p188
      %p264 = scmp.lt.s32.totalorder %s18, 1
      %s265 = scalar_select %p264, %s18, 1
      %s266 = smul.addr %s265, 2
      %s267 = smul.addr %s266, 8
      %s268 = scalar_lea.vmem %s7, %s267
      %p269 = scmp.lt.s32.totalorder %s18, 1
      %s270 = scalar_select %p269, %s18, 1
      %s271 = smul.addr %s270, 2
      %s272 = smul.addr %s271, 8
      %s273 = scalar_lea.vmem %s0, %s272
      %p274 = scmp.lt.s32.totalorder %s18, 1
      %s275 = scalar_select %p274, %s18, 1
      %s276 = smul.addr %s275, 2
      %s277 = smul.addr %s276, 8
      %s278 = scalar_lea.vmem %s7, %s277
      %v280 = vld [vmem:[%s273] sm:$0xff]
      %v281 = vld [vmem:[%s273 + $0x8] sm:$0xff]
      %v282 = vpack.c.bf16 %v281, %v280
      %v283 = vld [vmem:[%s1] sm:$0xff]
      %v284 = vld [vmem:[%s1 + $0x8] sm:$0xff]
      %v285 = vld [vmem:[%s1 + $0x10] sm:$0xff]
      %v286 = vld [vmem:[%s1 + $0x18] sm:$0xff]
      %v287 = vpack.c.bf16 %v284, %v283
      %v288 = vpack.c.bf16 %v286, %v285
      %v289 = vld [vmem:[%s2] sm:$0x1]
      %v291 = vlaneseq
      %v292 = vshrl.u32 %v291, 7
      %v293 = vsub.s32 0, %v292
      %v294 = vrot.slane %v289, %v293
      %vm296 = vcmask 261120
      %v298 = vsel %vm296, %v282, 0
      %300 = vmatprep.subr.bf16.mxu0 0
      %301 = vmatpush1.bf16.msra.mxu0 %v287
      %302 = vmatprep.subr.bf16.mxu0 0
      %303 = vmatpush1.bf16.msra.mxu0 %v288
      %304 = vmatprep.subr.bf16.mxu0 0
      %305 = vmatpush1.bf16.msra.mxu0 0
      %306 = vmatprep.subr.bf16.mxu0 0
      %307 = vmatpush1.bf16.msra.mxu0 0
      %308 = vmatprep.subr.bf16.mxu0 0
      %309 = vmatpush1.bf16.msra.mxu0 0
      %310 = vmatprep.subr.bf16.mxu0 0
      %311 = vmatpush1.bf16.msra.mxu0 0
      %312 = vmatprep.subr.bf16.mxu0 0
      %313 = vmatpush1.bf16.msra.mxu0 0
      %314 = vmatprep.subr.bf16.mxu0 0
      %315 = vmatpush1.bf16.msra.mxu0 0
      %316 = vmatprep.subr.bf16.mxu0 0
      %317 = vmatpush1.bf16.msra.mxu0 0
      %318 = vmatprep.subr.bf16.mxu0 0
      %319 = vmatpush1.bf16.msra.mxu0 0
      %320 = vmatprep.subr.bf16.mxu0 0
      %321 = vmatpush1.bf16.msra.mxu0 0
      %322 = vmatprep.subr.bf16.mxu0 0
      %323 = vmatpush1.bf16.msra.mxu0 0
      %324 = vmatprep.subr.bf16.mxu0 0
      %325 = vmatpush1.bf16.msra.mxu0 0
      %326 = vmatprep.subr.bf16.mxu0 0
      %327 = vmatpush1.bf16.msra.mxu0 0
      %328 = vmatprep.subr.bf16.mxu0 0
      %329 = vmatpush1.bf16.msra.mxu0 0
      %330 = vmatprep.subr.bf16.mxu0 0
      %331 = vmatpush1.bf16.msra.mxu0 0
      %332 = vmatprep.mubr.bf16.mxu0 0
      %333 = vmatmul.mubr.bf16.gmra.mrb[0].mxu0 %v298
      %v334 = vpop.f32.mrb[0].mxu0
      %v335 = vadd.f32 %v294, %v334
      %v336 = vpop.f32.mrb[0].mxu0
      %v337 = vpop.f32.mrb[0].mxu0
      %v338 = vadd.f32 %v294, %v337
      %v339 = vpop.f32.mrb[0].mxu0
      %340 = vdwg.mxu0
      %v341 = vmul.f32 %v335, 0.5
      %v342 = vmul.f32 %v338, 0.5
      %v343 = vmul.f32 %v335, 0.70710677
      %v344 = vmul.f32 %v338, 0.70710677
      %v345 = verf.f32.pop %v343
      %v346 = verf.f32.pop %v344
      %v347 = vadd.f32 %v345, 1.0
      %v348 = vadd.f32 %v346, 1.0
      %v349 = vmul.f32 %v341, %v347
      %v350 = vmul.f32 %v342, %v348
      %v351 = vpack.c.bf16 %v350, %v349
      %v352 = vld [vmem:[%s3] sm:$0xff]
      %v353 = vld [vmem:[%s3 + $0x8] sm:$0xff]
      %v354 = vld [vmem:[%s3 + $0x10] sm:$0xff]
      %v355 = vld [vmem:[%s3 + $0x18] sm:$0xff]
      %v356 = vld [vmem:[%s3 + $0x20] sm:$0xff]
      %v357 = vld [vmem:[%s3 + $0x28] sm:$0xff]
      %v358 = vld [vmem:[%s3 + $0x30] sm:$0xff]
      %v359 = vld [vmem:[%s3 + $0x38] sm:$0xff]
      %v360 = vpack.c.bf16 %v353, %v352
      %v361 = vpack.c.bf16 %v355, %v354
      %v362 = vpack.c.bf16 %v357, %v356
      %v363 = vpack.c.bf16 %v359, %v358
      %v364 = vld [vmem:[%s4] sm:$0x1]
      %v366 = vlaneseq
      %v367 = vshrl.u32 %v366, 7
      %v368 = vsub.s32 0, %v367
      %v369 = vrot.slane %v364, %v368
      %vm371 = vcmask 523264
      %v373 = vsel %vm371, %v351, 0
      %375 = vmatprep.subr.bf16.mxu0 0
      %376 = vmatpush1.bf16.msra.mxu0 %v360
      %377 = vmatprep.subr.bf16.mxu0 0
      %378 = vmatpush1.bf16.msra.mxu0 %v361
      %379 = vmatprep.subr.bf16.mxu0 0
      %380 = vmatpush1.bf16.msra.mxu0 %v362
      %381 = vmatprep.subr.bf16.mxu0 0
      %382 = vmatpush1.bf16.msra.mxu0 %v363
      %383 = vmatprep.subr.bf16.mxu0 0
      %384 = vmatpush1.bf16.msra.mxu0 0
      %385 = vmatprep.subr.bf16.mxu0 0
      %386 = vmatpush1.bf16.msra.mxu0 0
      %387 = vmatprep.subr.bf16.mxu0 0
      %388 = vmatpush1.bf16.msra.mxu0 0
      %389 = vmatprep.subr.bf16.mxu0 0
      %390 = vmatpush1.bf16.msra.mxu0 0
      %391 = vmatprep.subr.bf16.mxu0 0
      %392 = vmatpush1.bf16.msra.mxu0 0
      %393 = vmatprep.subr.bf16.mxu0 0
      %394 = vmatpush1.bf16.msra.mxu0 0
      %395 = vmatprep.subr.bf16.mxu0 0
      %396 = vmatpush1.bf16.msra.mxu0 0
      %397 = vmatprep.subr.bf16.mxu0 0
      %398 = vmatpush1.bf16.msra.mxu0 0
      %399 = vmatprep.subr.bf16.mxu0 0
      %400 = vmatpush1.bf16.msra.mxu0 0
      %401 = vmatprep.subr.bf16.mxu0 0
      %402 = vmatpush1.bf16.msra.mxu0 0
      %403 = vmatprep.subr.bf16.mxu0 0
      %404 = vmatpush1.bf16.msra.mxu0 0
      %405 = vmatprep.subr.bf16.mxu0 0
      %406 = vmatpush1.bf16.msra.mxu0 0
      %407 = vmatprep.mubr.bf16.mxu0 0
      %408 = vmatmul.mubr.bf16.gmra.mrb[0].mxu0 %v373
      %v409 = vpop.f32.mrb[0].mxu0
      %v410 = vadd.f32 %v369, %v409
      %v411 = vpop.f32.mrb[0].mxu0
      %v412 = vpop.f32.mrb[0].mxu0
      %v413 = vadd.f32 %v369, %v412
      %v414 = vpop.f32.mrb[0].mxu0
      %415 = vdwg.mxu0
      %v416 = vadd.f32 %v280, %v410
      %v417 = vadd.f32 %v281, %v413
      %v418 = vld [vmem:[%s5] sm:$0x1]
      %v419 = vld [vmem:[%s6] sm:$0x1]
      %v420 = vsel %vm296, %v416, 0.0
      %421 = vadd.xlane.f32.xlu0 %v420
      %v422 = vpop.xlane.xlu0 %421
      %v423 = vsel %vm296, %v417, 0.0
      %424 = vadd.xlane.f32.xlu0 %v423
      %v425 = vpop.xlane.xlu0 %424
      %v426 = vrcp.pop 32.0
      %v427 = vmul.f32 %v422, %v426
      %v428 = vmul.f32 %v425, %v426
      %v429 = vsub.f32 %v416, %v427
      %v430 = vsub.f32 %v417, %v428
      %v431 = vmul.f32 %v429, %v429
      %v432 = vmul.f32 %v430, %v430
      %v433 = vsel %vm296, %v431, 0.0
      %434 = vadd.xlane.f32.xlu0 %v433
      %v435 = vpop.xlane.xlu0 %434
      %v436 = vsel %vm296, %v432, 0.0
      %437 = vadd.xlane.f32.xlu0 %v436
      %v438 = vpop.xlane.xlu0 %437
      %v439 = vmul.f32 %v435, %v426
      %v440 = vmul.f32 %v438, %v426
      %v441 = vadd.f32 %v439, 1e-05
      %v442 = vadd.f32 %v440, 1e-05
      %v443 = vrsqrt.pop %v441
      %v444 = vrsqrt.pop %v442
      %v445 = vmul.f32 %v429, %v443
      %v446 = vmul.f32 %v430, %v444
      %v448 = vlaneseq
      %v449 = vshrl.u32 %v448, 7
      %v450 = vsub.s32 0, %v449
      %v451 = vrot.slane %v418, %v450
      %v453 = vmul.f32 %v445, %v451
      %v454 = vmul.f32 %v446, %v451
      %v456 = vlaneseq
      %v457 = vshrl.u32 %v456, 7
      %v458 = vsub.s32 0, %v457
      %v459 = vrot.slane %v419, %v458
      %v461 = vadd.f32 %v453, %v459
      %v462 = vadd.f32 %v454, %v459
      %463 = vst.msk [vmem:[%s278] sm:$0xff] %vm296, %v461
      %464 = vst.msk [vmem:[%s278 + $0x8] sm:$0xff] %vm296, %v462
      %p465 = scmp.lt.s32.totalorder %s18, 1
      %s466 = scalar_select %p465, %s18, 1
      %s467 = smul.addr %s466, 2
      %s468 = smul.addr %s467, 8
      %s469 = scalar_lea.vmem %s7, %s468
      // Predicated region
      $region49: #{informer_forward.13} parent=47 // pred_check
        %p470 = pneg %p188
      $region50: #{informer_forward.13} parent=47 // pred_check_branch
        %472 = sbr.rel (%p470) target = $region52
      $region51: #{informer_forward.13} parent=47 // pred_region
        _
      $region52: #{informer_forward.13} parent=47 // pred_fallthru
        _
    $region48: #{informer_forward.13} parent=5 // pred_fallthru
      _
    %p473 = scmp.le.s32.totalorder 2, %s13
    // Predicated region
    $region53: #{informer_forward.13} parent=5 // pred_check
      %p474 = pneg %p473
    $region54: #{informer_forward.13} parent=5 // pred_check_branch
      %476 = sbr.rel (%p474) target = $region56
    $region55: #{informer_forward.13} parent=5 // pred_region
      %s477 = ssub.s32 %s13, 2
      // Predicated region
      $region57: #{informer_forward.13} parent=55 // pred_check
        %p478 = pneg %p194
      $region58: #{informer_forward.13} parent=55 // pred_check_branch
        %480 = sbr.rel (%p478) target = $region60
      $region59: #{informer_forward.13} parent=55 // pred_region
        %p481 = scmp.lt.s32.totalorder %s19, 1
        %s482 = scalar_select %p481, %s19, 1
        %s483 = smul.addr %s482, 2
        %s484 = smul.addr %s483, 8
        %s485 = scalar_lea.vmem %s7, %s484
      $region60: #{informer_forward.13} parent=55 // pred_fallthru
        _
    $region56: #{informer_forward.13} parent=5 // pred_fallthru
      _
  $region6: #{informer_forward.13} parent=0 // loop_footer
    %s17 = sadd.s32 1, %s13
  $region7: #{informer_forward.13} parent=0 // loop_footer_branch
    %12 = sbr.rel target = $region3
  $region8: #{informer_forward.13} parent=0 // loop_exit
    _

// kernel: informer_forward.21
$region0: #{informer_forward.21}
  #allocation0 [shape = 'u32[]', space=smem, size = 0x4, offset = 0x4, fixed_abs, tag = 'smem constant byte address 0x4 - core index']
  #allocation1 [shape = 'u32[144,128]{1,0:T(1,128)}', space=vmem, size = 0x12000, scoped, tag = 'internal scratch']
  %s0 = inlined_call_operand.vmem [shape: f32[2,16,32], index: 0, kind: input, shape index: {}]
  %s1 = inlined_call_operand.vmem [shape: f32[1,32], index: 1, kind: input, shape index: {}]
  %s2 = inlined_call_operand.vmem [shape: f32[1,32], index: 2, kind: input, shape index: {}]
  %s3 = inlined_call_operand.vmem [shape: f32[32,4], index: 3, kind: input, shape index: {}]
  %s4 = inlined_call_operand.vmem [shape: f32[1,4], index: 4, kind: input, shape index: {}]
  %s5 = inlined_call_operand.vmem [shape: f32[2,16,4], index: 5, kind: output, shape index: {}]
  %s6 = sld [smem:[#allocation0]]
  $region53: #{informer_forward.21} parent=0
    _
  %s8 = ssub.s32 1, %s6
  %s9 = scalar_select 0, %s8, %s6
  loop: start=0, step=1, limit=4
  $region2: #{informer_forward.21} parent=0 // loop_pre_header
    _
  $region3: #{informer_forward.21} parent=0 // loop_header
    %s11 = sphi 0, %s15
    %p12 = scmp.ge.s32.totalorder %s11, 4
    %s21 = sphi 0, %s23
    %s24 = sphi 0, %s21
    %s25 = sphi 0, %s24
    %s41 = sphi 0, %s25
    %s45 = sphi 0, %s45
    %s47 = sphi 0, %s45
    %s48 = sphi 0, %s47
    %s62 = sphi 0, %s48
    %s66 = sphi 0, %s66
    %s68 = sphi 0, %s66
    %s69 = sphi 0, %s68
    %s83 = sphi 0, %s69
    %s87 = sphi 0, %s87
    %s89 = sphi 0, %s87
    %s90 = sphi 0, %s89
    %s104 = sphi 0, %s90
    %s108 = sphi 0, %s108
    %s110 = sphi 0, %s108
    %s111 = sphi 0, %s110
    %s125 = sphi 0, %s111
    %s131 = sphi 0, %s133
    %s134 = sphi 0, %s131
    %s135 = sphi 0, %s134
    %s151 = sphi 0, %s135
  $region4: #{informer_forward.21} parent=0 // loop_header_branch
    %14 = sbr.rel (%p12) target = $region8
  $region5: #{informer_forward.21} parent=0 // loop_body
    %s16 = ssub.s32 %s11, 1
    %s17 = ssub.s32 %s11, 2
    %s18 = sadd.s32 %s11, 1
    %s19 = ssub.s32 %s11, %s18
    %p20 = scmp.eq.s32.totalorder %s19, 0
    %s22 = sadd.s32 %s21, 1
    %s23 = scalar_select %p20, %s21, %s22
    %p26 = pneg %p20
    %p27 = scmp.eq.s32.totalorder %s11, 1
    %p28 = por %p26, %p27
    %p29 = scmp.ne.s32.totalorder %s21, %s24
    %p30 = scmp.eq.s32.totalorder %s11, 0
    %p31 = por %p29, %p30
    %p32 = scmp.ne.s32.totalorder %s21, %s24
    %p33 = scmp.eq.s32.totalorder %s16, 1
    %p34 = por %p32, %p33
    %p35 = scmp.ne.s32.totalorder %s24, %s25
    %p36 = scmp.eq.s32.totalorder %s16, 0
    %p37 = por %p35, %p36
    %p38 = scmp.ne.s32.totalorder %s24, %s25
    %p39 = scmp.eq.s32.totalorder %s17, 1
    %p40 = por %p38, %p39
    %p42 = scmp.ne.s32.totalorder %s25, %s41
    %p43 = scmp.eq.s32.totalorder %s17, 0
    %p44 = por %p42, %p43
    %s46 = sadd.s32 %s45, 1
    %p49 = scmp.eq.s32.totalorder %s11, 1
    %p50 = scmp.ne.s32.totalorder %s45, %s47
    %p51 = scmp.eq.s32.totalorder %s11, 0
    %p52 = por %p50, %p51
    %p53 = scmp.ne.s32.totalorder %s45, %s47
    %p54 = scmp.eq.s32.totalorder %s16, 1
    %p55 = por %p53, %p54
    %p56 = scmp.ne.s32.totalorder %s47, %s48
    %p57 = scmp.eq.s32.totalorder %s16, 0
    %p58 = por %p56, %p57
    %p59 = scmp.ne.s32.totalorder %s47, %s48
    %p60 = scmp.eq.s32.totalorder %s17, 1
    %p61 = por %p59, %p60
    %p63 = scmp.ne.s32.totalorder %s48, %s62
    %p64 = scmp.eq.s32.totalorder %s17, 0
    %p65 = por %p63, %p64
    %s67 = sadd.s32 %s66, 1
    %p70 = scmp.eq.s32.totalorder %s11, 1
    %p71 = scmp.ne.s32.totalorder %s66, %s68
    %p72 = scmp.eq.s32.totalorder %s11, 0
    %p73 = por %p71, %p72
    %p74 = scmp.ne.s32.totalorder %s66, %s68
    %p75 = scmp.eq.s32.totalorder %s16, 1
    %p76 = por %p74, %p75
    %p77 = scmp.ne.s32.totalorder %s68, %s69
    %p78 = scmp.eq.s32.totalorder %s16, 0
    %p79 = por %p77, %p78
    %p80 = scmp.ne.s32.totalorder %s68, %s69
    %p81 = scmp.eq.s32.totalorder %s17, 1
    %p82 = por %p80, %p81
    %p84 = scmp.ne.s32.totalorder %s69, %s83
    %p85 = scmp.eq.s32.totalorder %s17, 0
    %p86 = por %p84, %p85
    %s88 = sadd.s32 %s87, 1
    %p91 = scmp.eq.s32.totalorder %s11, 1
    %p92 = scmp.ne.s32.totalorder %s87, %s89
    %p93 = scmp.eq.s32.totalorder %s11, 0
    %p94 = por %p92, %p93
    %p95 = scmp.ne.s32.totalorder %s87, %s89
    %p96 = scmp.eq.s32.totalorder %s16, 1
    %p97 = por %p95, %p96
    %p98 = scmp.ne.s32.totalorder %s89, %s90
    %p99 = scmp.eq.s32.totalorder %s16, 0
    %p100 = por %p98, %p99
    %p101 = scmp.ne.s32.totalorder %s89, %s90
    %p102 = scmp.eq.s32.totalorder %s17, 1
    %p103 = por %p101, %p102
    %p105 = scmp.ne.s32.totalorder %s90, %s104
    %p106 = scmp.eq.s32.totalorder %s17, 0
    %p107 = por %p105, %p106
    %s109 = sadd.s32 %s108, 1
    %p112 = scmp.eq.s32.totalorder %s11, 1
    %p113 = scmp.ne.s32.totalorder %s108, %s110
    %p114 = scmp.eq.s32.totalorder %s11, 0
    %p115 = por %p113, %p114
    %p116 = scmp.ne.s32.totalorder %s108, %s110
    %p117 = scmp.eq.s32.totalorder %s16, 1
    %p118 = por %p116, %p117
    %p119 = scmp.ne.s32.totalorder %s110, %s111
    %p120 = scmp.eq.s32.totalorder %s16, 0
    %p121 = por %p119, %p120
    %p122 = scmp.ne.s32.totalorder %s110, %s111
    %p123 = scmp.eq.s32.totalorder %s17, 1
    %p124 = por %p122, %p123
    %p126 = scmp.ne.s32.totalorder %s111, %s125
    %p127 = scmp.eq.s32.totalorder %s17, 0
    %p128 = por %p126, %p127
    %s129 = ssub.s32 %s11, %s18
    %p130 = scmp.eq.s32.totalorder %s129, 0
    %s132 = sadd.s32 %s131, 1
    %s133 = scalar_select %p130, %s131, %s132
    %p136 = pneg %p130
    %p137 = scmp.eq.s32.totalorder %s11, 1
    %p138 = por %p136, %p137
    %p139 = scmp.ne.s32.totalorder %s131, %s134
    %p140 = scmp.eq.s32.totalorder %s11, 0
    %p141 = por %p139, %p140
    %p142 = scmp.ne.s32.totalorder %s131, %s134
    %p143 = scmp.eq.s32.totalorder %s16, 1
    %p144 = por %p142, %p143
    %p145 = scmp.ne.s32.totalorder %s134, %s135
    %p146 = scmp.eq.s32.totalorder %s16, 0
    %p147 = por %p145, %p146
    %p148 = scmp.ne.s32.totalorder %s134, %s135
    %p149 = scmp.eq.s32.totalorder %s17, 1
    %p150 = por %p148, %p149
    %p152 = scmp.ne.s32.totalorder %s135, %s151
    %p153 = scmp.eq.s32.totalorder %s17, 0
    %p154 = por %p152, %p153
    %p155 = scmp.le.s32.totalorder 1, %s11
    %p156 = scmp.lt.s32.totalorder %s11, 3
    %p157 = pnand %p155, %p156
    %p158 = pneg %p157
    // Predicated region
    $region9: #{informer_forward.21} parent=5 // pred_check
      _
    $region10: #{informer_forward.21} parent=5 // pred_check_branch
      %160 = sbr.rel (%p157) target = $region12
    $region11: #{informer_forward.21} parent=5 // pred_region
      %s161 = ssub.s32 %s11, 1
      // Predicated region
      $region13: #{informer_forward.21} parent=11 // pred_check
        %p162 = pneg %p58
      $region14: #{informer_forward.21} parent=11 // pred_check_branch
        %164 = sbr.rel (%p162) target = $region16
      $region15: #{informer_forward.21} parent=11 // pred_region
        _
      $region16: #{informer_forward.21} parent=11 // pred_fallthru
        _
      // Predicated region
      $region17: #{informer_forward.21} parent=11 // pred_check
        %p165 = pneg %p79
      $region18: #{informer_forward.21} parent=11 // pred_check_branch
        %167 = sbr.rel (%p165) target = $region20
      $region19: #{informer_forward.21} parent=11 // pred_region
        _
      $region20: #{informer_forward.21} parent=11 // pred_fallthru
        _
      // Predicated region
      $region21: #{informer_forward.21} parent=11 // pred_check
        %p168 = pneg %p100
      $region22: #{informer_forward.21} parent=11 // pred_check_branch
        %170 = sbr.rel (%p168) target = $region24
      $region23: #{informer_forward.21} parent=11 // pred_region
        _
      $region24: #{informer_forward.21} parent=11 // pred_fallthru
        _
      // Predicated region
      $region25: #{informer_forward.21} parent=11 // pred_check
        %p171 = pneg %p121
      $region26: #{informer_forward.21} parent=11 // pred_check_branch
        %173 = sbr.rel (%p171) target = $region28
      $region27: #{informer_forward.21} parent=11 // pred_region
        _
      $region28: #{informer_forward.21} parent=11 // pred_fallthru
        _
    $region12: #{informer_forward.21} parent=5 // pred_fallthru
      _
    %p174 = scmp.lt.s32.totalorder %s11, 2
    // Predicated region
    $region29: #{informer_forward.21} parent=5 // pred_check
      %p175 = pneg %p174
    $region30: #{informer_forward.21} parent=5 // pred_check_branch
      %177 = sbr.rel (%p175) target = $region32
    $region31: #{informer_forward.21} parent=5 // pred_region
      // Predicated region
      $region33: #{informer_forward.21} parent=31 // pred_check
        %p178 = pneg %p31
      $region34: #{informer_forward.21} parent=31 // pred_check_branch
        %180 = sbr.rel (%p178) target = $region36
      $region35: #{informer_forward.21} parent=31 // pred_region
        %p181 = scmp.lt.s32.totalorder %s11, 1
        %s182 = scalar_select %p181, %s11, 1
        %s183 = smul.addr %s182, 2
        %s184 = smul.addr %s183, 8
        %s185 = scalar_lea.vmem %s0, %s184
      $region36: #{informer_forward.21} parent=31 // pred_fallthru
        _
    $region32: #{informer_forward.21} parent=5 // pred_fallthru
      _
    %p186 = scmp.le.s32.totalorder 1, %s11
    %p187 = scmp.lt.s32.totalorder %s11, 3
    %p188 = pnand %p186, %p187
    %p189 = pneg %p188
    // Predicated region
    $region37: #{informer_forward.21} parent=5 // pred_check
      _
    $region38: #{informer_forward.21} parent=5 // pred_check_branch
      %191 = sbr.rel (%p188) target = $region40
    $region39: #{informer_forward.21} parent=5 // pred_region
      %s192 = ssub.s32 %s11, 1
      %p193 = scmp.lt.s32.totalorder %s16, 1
      %s194 = scalar_select %p193, %s16, 1
      %s195 = smul.addr %s194, 2
      %s196 = smul.addr %s195, 8
      %s197 = scalar_lea.vmem %s0, %s196
      %p198 = pneg %p37
      %p199 = pneg %p34
      %p200 = pneg %p58
      %p201 = pneg %p55
      %p202 = pneg %p79
      %p203 = pneg %p76
      %p204 = pneg %p100
      %p205 = pneg %p97
      %p206 = pneg %p121
      %p207 = pneg %p118
      %p208 = pneg %p147
      %p209 = pneg %p144
      %p210 = scmp.lt.s32.totalorder %s16, 1
      %s211 = scalar_select %p210, %s16, 1
      %s212 = smul.addr %s211, 2
      %s213 = smul.addr %s212, 8
      %s214 = scalar_lea.vmem %s5, %s213
      %p215 = scmp.lt.s32.totalorder %s16, 1
      %s216 = scalar_select %p215, %s16, 1
      %s217 = smul.addr %s216, 2
      %s218 = smul.addr %s217, 8
      %s219 = scalar_lea.vmem %s0, %s218
      %p220 = scmp.lt.s32.totalorder %s16, 1
      %s221 = scalar_select %p220, %s16, 1
      %s222 = smul.addr %s221, 2
      %s223 = smul.addr %s222, 8
      %s224 = scalar_lea.vmem %s5, %s223
      %v226 = vld [vmem:[%s219] sm:$0xff]
      %v227 = vld [vmem:[%s219 + $0x8] sm:$0xff]
      %v228 = vld [vmem:[%s1] sm:$0x1]
      %v229 = vld [vmem:[%s2] sm:$0x1]
      %vm230 = vcmask 261120
      %v231 = vsel %vm230, %v226, 0.0
      %232 = vadd.xlane.f32.xlu0 %v231
      %v233 = vpop.xlane.xlu0 %232
      %v234 = vsel %vm230, %v227, 0.0
      %235 = vadd.xlane.f32.xlu0 %v234
      %v236 = vpop.xlane.xlu0 %235
      %v237 = vrcp.pop 32.0
      %v238 = vmul.f32 %v233, %v237
      %v239 = vmul.f32 %v236, %v237
      %v240 = vsub.f32 %v226, %v238
      %v241 = vsub.f32 %v227, %v239
      %v242 = vmul.f32 %v240, %v240
      %v243 = vmul.f32 %v241, %v241
      %v244 = vsel %vm230, %v242, 0.0
      %245 = vadd.xlane.f32.xlu0 %v244
      %v246 = vpop.xlane.xlu0 %245
      %v247 = vsel %vm230, %v243, 0.0
      %248 = vadd.xlane.f32.xlu0 %v247
      %v249 = vpop.xlane.xlu0 %248
      %v250 = vmul.f32 %v246, %v237
      %v251 = vmul.f32 %v249, %v237
      %v252 = vadd.f32 %v250, 1e-05
      %v253 = vadd.f32 %v251, 1e-05
      %v254 = vrsqrt.pop %v252
      %v255 = vrsqrt.pop %v253
      %v256 = vmul.f32 %v240, %v254
      %v257 = vmul.f32 %v241, %v255
      %v259 = vlaneseq
      %v260 = vshrl.u32 %v259, 7
      %v261 = vsub.s32 0, %v260
      %v262 = vrot.slane %v228, %v261
      %v264 = vmul.f32 %v256, %v262
      %v265 = vmul.f32 %v257, %v262
      %v267 = vlaneseq
      %v268 = vshrl.u32 %v267, 7
      %v269 = vsub.s32 0, %v268
      %v270 = vrot.slane %v229, %v269
      %v272 = vadd.f32 %v264, %v270
      %v273 = vadd.f32 %v265, %v270
      %v274 = vpack.c.bf16 %v273, %v272
      %v275 = vld [vmem:[%s3] sm:$0xff]
      %v276 = vld [vmem:[%s3 + $0x8] sm:$0xff]
      %v277 = vld [vmem:[%s3 + $0x10] sm:$0xff]
      %v278 = vld [vmem:[%s3 + $0x18] sm:$0xff]
      %v279 = vpack.c.bf16 %v276, %v275
      %v280 = vpack.c.bf16 %v278, %v277
      %v281 = vld [vmem:[%s4] sm:$0x1]
      %v283 = vlaneseq
      %v284 = vshrl.u32 %v283, 7
      %v285 = vsub.s32 0, %v284
      %v286 = vrot.slane %v281, %v285
      %v289 = vsel %vm230, %v274, 0
      %291 = vmatprep.subr.bf16.mxu0 0
      %292 = vmatpush1.bf16.msra.mxu0 %v279
      %293 = vmatprep.subr.bf16.mxu0 0
      %294 = vmatpush1.bf16.msra.mxu0 %v280
      %295 = vmatprep.subr.bf16.mxu0 0
      %296 = vmatpush1.bf16.msra.mxu0 0
      %297 = vmatprep.subr.bf16.mxu0 0
      %298 = vmatpush1.bf16.msra.mxu0 0
      %299 = vmatprep.subr.bf16.mxu0 0
      %300 = vmatpush1.bf16.msra.mxu0 0
      %301 = vmatprep.subr.bf16.mxu0 0
      %302 = vmatpush1.bf16.msra.mxu0 0
      %303 = vmatprep.subr.bf16.mxu0 0
      %304 = vmatpush1.bf16.msra.mxu0 0
      %305 = vmatprep.subr.bf16.mxu0 0
      %306 = vmatpush1.bf16.msra.mxu0 0
      %307 = vmatprep.subr.bf16.mxu0 0
      %308 = vmatpush1.bf16.msra.mxu0 0
      %309 = vmatprep.subr.bf16.mxu0 0
      %310 = vmatpush1.bf16.msra.mxu0 0
      %311 = vmatprep.subr.bf16.mxu0 0
      %312 = vmatpush1.bf16.msra.mxu0 0
      %313 = vmatprep.subr.bf16.mxu0 0
      %314 = vmatpush1.bf16.msra.mxu0 0
      %315 = vmatprep.subr.bf16.mxu0 0
      %316 = vmatpush1.bf16.msra.mxu0 0
      %317 = vmatprep.subr.bf16.mxu0 0
      %318 = vmatpush1.bf16.msra.mxu0 0
      %319 = vmatprep.subr.bf16.mxu0 0
      %320 = vmatpush1.bf16.msra.mxu0 0
      %321 = vmatprep.subr.bf16.mxu0 0
      %322 = vmatpush1.bf16.msra.mxu0 0
      %323 = vmatprep.mubr.bf16.mxu0 0
      %324 = vmatmul.mubr.bf16.gmra.mrb[0].mxu0 %v289
      %v325 = vpop.f32.mrb[0].mxu0
      %v326 = vadd.f32 %v286, %v325
      %v327 = vpop.f32.mrb[0].mxu0
      %v328 = vpop.f32.mrb[0].mxu0
      %v329 = vadd.f32 %v286, %v328
      %v330 = vpop.f32.mrb[0].mxu0
      %331 = vdwg.mxu0
      %vm332 = vcmask 31744
      %333 = vst.msk [vmem:[%s224] sm:$0xff] %vm332, %v326
      %334 = vst.msk [vmem:[%s224 + $0x8] sm:$0xff] %vm332, %v329
      %p335 = scmp.lt.s32.totalorder %s16, 1
      %s336 = scalar_select %p335, %s16, 1
      %s337 = smul.addr %s336, 2
      %s338 = smul.addr %s337, 8
      %s339 = scalar_lea.vmem %s5, %s338
      // Predicated region
      $region41: #{informer_forward.21} parent=39 // pred_check
        %p340 = pneg %p144
      $region42: #{informer_forward.21} parent=39 // pred_check_branch
        %342 = sbr.rel (%p340) target = $region44
      $region43: #{informer_forward.21} parent=39 // pred_region
        _
      $region44: #{informer_forward.21} parent=39 // pred_fallthru
        _
    $region40: #{informer_forward.21} parent=5 // pred_fallthru
      _
    %p343 = scmp.le.s32.totalorder 2, %s11
    // Predicated region
    $region45: #{informer_forward.21} parent=5 // pred_check
      %p344 = pneg %p343
    $region46: #{informer_forward.21} parent=5 // pred_check_branch
      %346 = sbr.rel (%p344) target = $region48
    $region47: #{informer_forward.21} parent=5 // pred_region
      %s347 = ssub.s32 %s11, 2
      // Predicated region
      $region49: #{informer_forward.21} parent=47 // pred_check
        %p348 = pneg %p150
      $region50: #{informer_forward.21} parent=47 // pred_check_branch
        %350 = sbr.rel (%p348) target = $region52
      $region51: #{informer_forward.21} parent=47 // pred_region
        %p351 = scmp.lt.s32.totalorder %s17, 1
        %s352 = scalar_select %p351, %s17, 1
        %s353 = smul.addr %s352, 2
        %s354 = smul.addr %s353, 8
        %s355 = scalar_lea.vmem %s5, %s354
      $region52: #{informer_forward.21} parent=47 // pred_fallthru
        _
    $region48: #{informer_forward.21} parent=5 // pred_fallthru
      _
  $region6: #{informer_forward.21} parent=0 // loop_footer
    %s15 = sadd.s32 1, %s11
  $region7: #{informer_forward.21} parent=0 // loop_footer_branch
    %10 = sbr.rel target = $region3
  $region8: #{informer_forward.21} parent=0 // loop_exit
    _

// kernel: informer_forward.19
$region0: #{informer_forward.19}
  #allocation0 [shape = 'u32[]', space=smem, size = 0x4, offset = 0x4, fixed_abs, tag = 'smem constant byte address 0x4 - core index']
  #allocation1 [shape = 'u32[144,128]{1,0:T(1,128)}', space=vmem, size = 0x12000, scoped, tag = 'internal scratch']
  %s0 = inlined_call_operand.vmem [shape: f32[2,16,32], index: 0, kind: input, shape index: {}]
  %s1 = inlined_call_operand.vmem [shape: f32[2,16,32], index: 1, kind: input, shape index: {}]
  %s2 = inlined_call_operand.vmem [shape: f32[16,16], index: 2, kind: input, shape index: {}]
  %s3 = inlined_call_operand.vmem [shape: f32[32,96], index: 3, kind: input, shape index: {}]
  %s4 = inlined_call_operand.vmem [shape: f32[1,96], index: 4, kind: input, shape index: {}]
  %s5 = inlined_call_operand.vmem [shape: f32[32,32], index: 5, kind: input, shape index: {}]
  %s6 = inlined_call_operand.vmem [shape: f32[1,32], index: 6, kind: input, shape index: {}]
  %s7 = inlined_call_operand.vmem [shape: f32[1,32], index: 7, kind: input, shape index: {}]
  %s8 = inlined_call_operand.vmem [shape: f32[1,32], index: 8, kind: input, shape index: {}]
  %s9 = inlined_call_operand.vmem [shape: f32[2,16,32], index: 9, kind: output, shape index: {}]
  %s10 = sld [smem:[#allocation0]]
  $region69: #{informer_forward.19} parent=0
    _
  %s12 = ssub.s32 1, %s10
  %s13 = scalar_select 0, %s12, %s10
  loop: start=0, step=1, limit=4
  $region2: #{informer_forward.19} parent=0 // loop_pre_header
    _
  $region3: #{informer_forward.19} parent=0 // loop_header
    %s15 = sphi 0, %s19
    %p16 = scmp.ge.s32.totalorder %s15, 4
    %s25 = sphi 0, %s27
    %s28 = sphi 0, %s25
    %s29 = sphi 0, %s28
    %s45 = sphi 0, %s29
    %s51 = sphi 0, %s53
    %s54 = sphi 0, %s51
    %s55 = sphi 0, %s54
    %s71 = sphi 0, %s55
    %s75 = sphi 0, %s75
    %s77 = sphi 0, %s75
    %s78 = sphi 0, %s77
    %s92 = sphi 0, %s78
    %s96 = sphi 0, %s96
    %s98 = sphi 0, %s96
    %s99 = sphi 0, %s98
    %s113 = sphi 0, %s99
    %s117 = sphi 0, %s117
    %s119 = sphi 0, %s117
    %s120 = sphi 0, %s119
    %s134 = sphi 0, %s120
    %s138 = sphi 0, %s138
    %s140 = sphi 0, %s138
    %s141 = sphi 0, %s140
    %s155 = sphi 0, %s141
    %s159 = sphi 0, %s159
    %s161 = sphi 0, %s159
    %s162 = sphi 0, %s161
    %s176 = sphi 0, %s162
    %s180 = sphi 0, %s180
    %s182 = sphi 0, %s180
    %s183 = sphi 0, %s182
    %s197 = sphi 0, %s183
    %s201 = sphi 0, %s201
    %s203 = sphi 0, %s201
    %s204 = sphi 0, %s203
    %s218 = sphi 0, %s204
    %s224 = sphi 0, %s226
    %s227 = sphi 0, %s224
    %s228 = sphi 0, %s227
    %s244 = sphi 0, %s228
  $region4: #{informer_forward.19} parent=0 // loop_header_branch
    %18 = sbr.rel (%p16) target = $region8
  $region5: #{informer_forward.19} parent=0 // loop_body
    %s20 = ssub.s32 %s15, 1
    %s21 = ssub.s32 %s15, 2
    %s22 = sadd.s32 %s15, 1
    %s23 = ssub.s32 %s15, %s22
    %p24 = scmp.eq.s32.totalorder %s23, 0
    %s26 = sadd.s32 %s25, 1
    %s27 = scalar_select %p24, %s25, %s26
    %p30 = pneg %p24
    %p31 = scmp.eq.s32.totalorder %s15, 1
    %p32 = por %p30, %p31
    %p33 = scmp.ne.s32.totalorder %s25, %s28
    %p34 = scmp.eq.s32.totalorder %s15, 0
    %p35 = por %p33, %p34
    %p36 = scmp.ne.s32.totalorder %s25, %s28
    %p37 = scmp.eq.s32.totalorder %s20, 1
    %p38 = por %p36, %p37
    %p39 = scmp.ne.s32.totalorder %s28, %s29
    %p40 = scmp.eq.s32.totalorder %s20, 0
    %p41 = por %p39, %p40
    %p42 = scmp.ne.s32.totalorder %s28, %s29
    %p43 = scmp.eq.s32.totalorder %s21, 1
    %p44 = por %p42, %p43
    %p46 = scmp.ne.s32.totalorder %s29, %s45
    %p47 = scmp.eq.s32.totalorder %s21, 0
    %p48 = por %p46, %p47
    %s49 = ssub.s32 %s15, %s22
    %p50 = scmp.eq.s32.totalorder %s49, 0
    %s52 = sadd.s32 %s51, 1
    %s53 = scalar_select %p50, %s51, %s52
    %p56 = pneg %p50
    %p57 = scmp.eq.s32.totalorder %s15, 1
    %p58 = por %p56, %p57
    %p59 = scmp.ne.s32.totalorder %s51, %s54
    %p60 = scmp.eq.s32.totalorder %s15, 0
    %p61 = por %p59, %p60
    %p62 = scmp.ne.s32.totalorder %s51, %s54
    %p63 = scmp.eq.s32.totalorder %s20, 1
    %p64 = por %p62, %p63
    %p65 = scmp.ne.s32.totalorder %s54, %s55
    %p66 = scmp.eq.s32.totalorder %s20, 0
    %p67 = por %p65, %p66
    %p68 = scmp.ne.s32.totalorder %s54, %s55
    %p69 = scmp.eq.s32.totalorder %s21, 1
    %p70 = por %p68, %p69
    %p72 = scmp.ne.s32.totalorder %s55, %s71
    %p73 = scmp.eq.s32.totalorder %s21, 0
    %p74 = por %p72, %p73
    %s76 = sadd.s32 %s75, 1
    %p79 = scmp.eq.s32.totalorder %s15, 1
    %p80 = scmp.ne.s32.totalorder %s75, %s77
    %p81 = scmp.eq.s32.totalorder %s15, 0
    %p82 = por %p80, %p81
    %p83 = scmp.ne.s32.totalorder %s75, %s77
    %p84 = scmp.eq.s32.totalorder %s20, 1
    %p85 = por %p83, %p84
    %p86 = scmp.ne.s32.totalorder %s77, %s78
    %p87 = scmp.eq.s32.totalorder %s20, 0
    %p88 = por %p86, %p87
    %p89 = scmp.ne.s32.totalorder %s77, %s78
    %p90 = scmp.eq.s32.totalorder %s21, 1
    %p91 = por %p89, %p90
    %p93 = scmp.ne.s32.totalorder %s78, %s92
    %p94 = scmp.eq.s32.totalorder %s21, 0
    %p95 = por %p93, %p94
    %s97 = sadd.s32 %s96, 1
    %p100 = scmp.eq.s32.totalorder %s15, 1
    %p101 = scmp.ne.s32.totalorder %s96, %s98
    %p102 = scmp.eq.s32.totalorder %s15, 0
    %p103 = por %p101, %p102
    %p104 = scmp.ne.s32.totalorder %s96, %s98
    %p105 = scmp.eq.s32.totalorder %s20, 1
    %p106 = por %p104, %p105
    %p107 = scmp.ne.s32.totalorder %s98, %s99
    %p108 = scmp.eq.s32.totalorder %s20, 0
    %p109 = por %p107, %p108
    %p110 = scmp.ne.s32.totalorder %s98, %s99
    %p111 = scmp.eq.s32.totalorder %s21, 1
    %p112 = por %p110, %p111
    %p114 = scmp.ne.s32.totalorder %s99, %s113
    %p115 = scmp.eq.s32.totalorder %s21, 0
    %p116 = por %p114, %p115
    %s118 = sadd.s32 %s117, 1
    %p121 = scmp.eq.s32.totalorder %s15, 1
    %p122 = scmp.ne.s32.totalorder %s117, %s119
    %p123 = scmp.eq.s32.totalorder %s15, 0
    %p124 = por %p122, %p123
    %p125 = scmp.ne.s32.totalorder %s117, %s119
    %p126 = scmp.eq.s32.totalorder %s20, 1
    %p127 = por %p125, %p126
    %p128 = scmp.ne.s32.totalorder %s119, %s120
    %p129 = scmp.eq.s32.totalorder %s20, 0
    %p130 = por %p128, %p129
    %p131 = scmp.ne.s32.totalorder %s119, %s120
    %p132 = scmp.eq.s32.totalorder %s21, 1
    %p133 = por %p131, %p132
    %p135 = scmp.ne.s32.totalorder %s120, %s134
    %p136 = scmp.eq.s32.totalorder %s21, 0
    %p137 = por %p135, %p136
    %s139 = sadd.s32 %s138, 1
    %p142 = scmp.eq.s32.totalorder %s15, 1
    %p143 = scmp.ne.s32.totalorder %s138, %s140
    %p144 = scmp.eq.s32.totalorder %s15, 0
    %p145 = por %p143, %p144
    %p146 = scmp.ne.s32.totalorder %s138, %s140
    %p147 = scmp.eq.s32.totalorder %s20, 1
    %p148 = por %p146, %p147
    %p149 = scmp.ne.s32.totalorder %s140, %s141
    %p150 = scmp.eq.s32.totalorder %s20, 0
    %p151 = por %p149, %p150
    %p152 = scmp.ne.s32.totalorder %s140, %s141
    %p153 = scmp.eq.s32.totalorder %s21, 1
    %p154 = por %p152, %p153
    %p156 = scmp.ne.s32.totalorder %s141, %s155
    %p157 = scmp.eq.s32.totalorder %s21, 0
    %p158 = por %p156, %p157
    %s160 = sadd.s32 %s159, 1
    %p163 = scmp.eq.s32.totalorder %s15, 1
    %p164 = scmp.ne.s32.totalorder %s159, %s161
    %p165 = scmp.eq.s32.totalorder %s15, 0
    %p166 = por %p164, %p165
    %p167 = scmp.ne.s32.totalorder %s159, %s161
    %p168 = scmp.eq.s32.totalorder %s20, 1
    %p169 = por %p167, %p168
    %p170 = scmp.ne.s32.totalorder %s161, %s162
    %p171 = scmp.eq.s32.totalorder %s20, 0
    %p172 = por %p170, %p171
    %p173 = scmp.ne.s32.totalorder %s161, %s162
    %p174 = scmp.eq.s32.totalorder %s21, 1
    %p175 = por %p173, %p174
    %p177 = scmp.ne.s32.totalorder %s162, %s176
    %p178 = scmp.eq.s32.totalorder %s21, 0
    %p179 = por %p177, %p178
    %s181 = sadd.s32 %s180, 1
    %p184 = scmp.eq.s32.totalorder %s15, 1
    %p185 = scmp.ne.s32.totalorder %s180, %s182
    %p186 = scmp.eq.s32.totalorder %s15, 0
    %p187 = por %p185, %p186
    %p188 = scmp.ne.s32.totalorder %s180, %s182
    %p189 = scmp.eq.s32.totalorder %s20, 1
    %p190 = por %p188, %p189
    %p191 = scmp.ne.s32.totalorder %s182, %s183
    %p192 = scmp.eq.s32.totalorder %s20, 0
    %p193 = por %p191, %p192
    %p194 = scmp.ne.s32.totalorder %s182, %s183
    %p195 = scmp.eq.s32.totalorder %s21, 1
    %p196 = por %p194, %p195
    %p198 = scmp.ne.s32.totalorder %s183, %s197
    %p199 = scmp.eq.s32.totalorder %s21, 0
    %p200 = por %p198, %p199
    %s202 = sadd.s32 %s201, 1
    %p205 = scmp.eq.s32.totalorder %s15, 1
    %p206 = scmp.ne.s32.totalorder %s201, %s203
    %p207 = scmp.eq.s32.totalorder %s15, 0
    %p208 = por %p206, %p207
    %p209 = scmp.ne.s32.totalorder %s201, %s203
    %p210 = scmp.eq.s32.totalorder %s20, 1
    %p211 = por %p209, %p210
    %p212 = scmp.ne.s32.totalorder %s203, %s204
    %p213 = scmp.eq.s32.totalorder %s20, 0
    %p214 = por %p212, %p213
    %p215 = scmp.ne.s32.totalorder %s203, %s204
    %p216 = scmp.eq.s32.totalorder %s21, 1
    %p217 = por %p215, %p216
    %p219 = scmp.ne.s32.totalorder %s204, %s218
    %p220 = scmp.eq.s32.totalorder %s21, 0
    %p221 = por %p219, %p220
    %s222 = ssub.s32 %s15, %s22
    %p223 = scmp.eq.s32.totalorder %s222, 0
    %s225 = sadd.s32 %s224, 1
    %s226 = scalar_select %p223, %s224, %s225
    %p229 = pneg %p223
    %p230 = scmp.eq.s32.totalorder %s15, 1
    %p231 = por %p229, %p230
    %p232 = scmp.ne.s32.totalorder %s224, %s227
    %p233 = scmp.eq.s32.totalorder %s15, 0
    %p234 = por %p232, %p233
    %p235 = scmp.ne.s32.totalorder %s224, %s227
    %p236 = scmp.eq.s32.totalorder %s20, 1
    %p237 = por %p235, %p236
    %p238 = scmp.ne.s32.totalorder %s227, %s228
    %p239 = scmp.eq.s32.totalorder %s20, 0
    %p240 = por %p238, %p239
    %p241 = scmp.ne.s32.totalorder %s227, %s228
    %p242 = scmp.eq.s32.totalorder %s21, 1
    %p243 = por %p241, %p242
    %p245 = scmp.ne.s32.totalorder %s228, %s244
    %p246 = scmp.eq.s32.totalorder %s21, 0
    %p247 = por %p245, %p246
    %p248 = scmp.le.s32.totalorder 1, %s15
    %p249 = scmp.lt.s32.totalorder %s15, 3
    %p250 = pnand %p248, %p249
    %p251 = pneg %p250
    // Predicated region
    $region9: #{informer_forward.19} parent=5 // pred_check
      _
    $region10: #{informer_forward.19} parent=5 // pred_check_branch
      %253 = sbr.rel (%p250) target = $region12
    $region11: #{informer_forward.19} parent=5 // pred_region
      %s254 = ssub.s32 %s15, 1
      // Predicated region
      $region13: #{informer_forward.19} parent=11 // pred_check
        %p255 = pneg %p88
      $region14: #{informer_forward.19} parent=11 // pred_check_branch
        %257 = sbr.rel (%p255) target = $region16
      $region15: #{informer_forward.19} parent=11 // pred_region
        _
      $region16: #{informer_forward.19} parent=11 // pred_fallthru
        _
      // Predicated region
      $region17: #{informer_forward.19} parent=11 // pred_check
        %p258 = pneg %p109
      $region18: #{informer_forward.19} parent=11 // pred_check_branch
        %260 = sbr.rel (%p258) target = $region20
      $region19: #{informer_forward.19} parent=11 // pred_region
        _
      $region20: #{informer_forward.19} parent=11 // pred_fallthru
        _
      // Predicated region
      $region21: #{informer_forward.19} parent=11 // pred_check
        %p261 = pneg %p130
      $region22: #{informer_forward.19} parent=11 // pred_check_branch
        %263 = sbr.rel (%p261) target = $region24
      $region23: #{informer_forward.19} parent=11 // pred_region
        _
      $region24: #{informer_forward.19} parent=11 // pred_fallthru
        _
      // Predicated region
      $region25: #{informer_forward.19} parent=11 // pred_check
        %p264 = pneg %p151
      $region26: #{informer_forward.19} parent=11 // pred_check_branch
        %266 = sbr.rel (%p264) target = $region28
      $region27: #{informer_forward.19} parent=11 // pred_region
        _
      $region28: #{informer_forward.19} parent=11 // pred_fallthru
        _
      // Predicated region
      $region29: #{informer_forward.19} parent=11 // pred_check
        %p267 = pneg %p172
      $region30: #{informer_forward.19} parent=11 // pred_check_branch
        %269 = sbr.rel (%p267) target = $region32
      $region31: #{informer_forward.19} parent=11 // pred_region
        _
      $region32: #{informer_forward.19} parent=11 // pred_fallthru
        _
      // Predicated region
      $region33: #{informer_forward.19} parent=11 // pred_check
        %p270 = pneg %p193
      $region34: #{informer_forward.19} parent=11 // pred_check_branch
        %272 = sbr.rel (%p270) target = $region36
      $region35: #{informer_forward.19} parent=11 // pred_region
        _
      $region36: #{informer_forward.19} parent=11 // pred_fallthru
        _
      // Predicated region
      $region37: #{informer_forward.19} parent=11 // pred_check
        %p273 = pneg %p214
      $region38: #{informer_forward.19} parent=11 // pred_check_branch
        %275 = sbr.rel (%p273) target = $region40
      $region39: #{informer_forward.19} parent=11 // pred_region
        _
      $region40: #{informer_forward.19} parent=11 // pred_fallthru
        _
    $region12: #{informer_forward.19} parent=5 // pred_fallthru
      _
    %p276 = scmp.lt.s32.totalorder %s15, 2
    // Predicated region
    $region41: #{informer_forward.19} parent=5 // pred_check
      %p277 = pneg %p276
    $region42: #{informer_forward.19} parent=5 // pred_check_branch
      %279 = sbr.rel (%p277) target = $region44
    $region43: #{informer_forward.19} parent=5 // pred_region
      // Predicated region
      $region45: #{informer_forward.19} parent=43 // pred_check
        %p280 = pneg %p35
      $region46: #{informer_forward.19} parent=43 // pred_check_branch
        %282 = sbr.rel (%p280) target = $region48
      $region47: #{informer_forward.19} parent=43 // pred_region
        %p283 = scmp.lt.s32.totalorder %s15, 1
        %s284 = scalar_select %p283, %s15, 1
        %s285 = smul.addr %s284, 2
        %s286 = smul.addr %s285, 8
        %s287 = scalar_lea.vmem %s0, %s286
      $region48: #{informer_forward.19} parent=43 // pred_fallthru
        _
      // Predicated region
      $region49: #{informer_forward.19} parent=43 // pred_check
        %p288 = pneg %p61
      $region50: #{informer_forward.19} parent=43 // pred_check_branch
        %290 = sbr.rel (%p288) target = $region52
      $region51: #{informer_forward.19} parent=43 // pred_region
        %p291 = scmp.lt.s32.totalorder %s15, 1
        %s292 = scalar_select %p291, %s15, 1
        %s293 = smul.addr %s292, 2
        %s294 = smul.addr %s293, 8
        %s295 = scalar_lea.vmem %s1, %s294
      $region52: #{informer_forward.19} parent=43 // pred_fallthru
        _
    $region44: #{informer_forward.19} parent=5 // pred_fallthru
      _
    %p296 = scmp.le.s32.totalorder 1, %s15
    %p297 = scmp.lt.s32.totalorder %s15, 3
    %p298 = pnand %p296, %p297
    %p299 = pneg %p298
    // Predicated region
    $region53: #{informer_forward.19} parent=5 // pred_check
      _
    $region54: #{informer_forward.19} parent=5 // pred_check_branch
      %301 = sbr.rel (%p298) target = $region56
    $region55: #{informer_forward.19} parent=5 // pred_region
      %s302 = ssub.s32 %s15, 1
      %p303 = scmp.lt.s32.totalorder %s20, 1
      %s304 = scalar_select %p303, %s20, 1
      %s305 = smul.addr %s304, 2
      %s306 = smul.addr %s305, 8
      %s307 = scalar_lea.vmem %s0, %s306
      %p308 = pneg %p41
      %p309 = pneg %p38
      %p310 = scmp.lt.s32.totalorder %s20, 1
      %s311 = scalar_select %p310, %s20, 1
      %s312 = smul.addr %s311, 2
      %s313 = smul.addr %s312, 8
      %s314 = scalar_lea.vmem %s1, %s313
      %p315 = pneg %p67
      %p316 = pneg %p64
      %p317 = pneg %p88
      %p318 = pneg %p85
      %p319 = pneg %p109
      %p320 = pneg %p106
      %p321 = pneg %p130
      %p322 = pneg %p127
      %p323 = pneg %p151
      %p324 = pneg %p148
      %p325 = pneg %p172
      %p326 = pneg %p169
      %p327 = pneg %p193
      %p328 = pneg %p190
      %p329 = pneg %p214
      %p330 = pneg %p211
      %p331 = pneg %p240
      %p332 = pneg %p237
      %p333 = scmp.lt.s32.totalorder %s20, 1
      %s334 = scalar_select %p333, %s20, 1
      %s335 = smul.addr %s334, 2
      %s336 = smul.addr %s335, 8
      %s337 = scalar_lea.vmem %s9, %s336
      %p338 = scmp.lt.s32.totalorder %s20, 1
      %s339 = scalar_select %p338, %s20, 1
      %s340 = smul.addr %s339, 2
      %s341 = smul.addr %s340, 8
      %s342 = scalar_lea.vmem %s0, %s341
      %p343 = scmp.lt.s32.totalorder %s20, 1
      %s344 = scalar_select %p343, %s20, 1
      %s345 = smul.addr %s344, 2
      %s346 = smul.addr %s345, 8
      %s347 = scalar_lea.vmem %s1, %s346
      %p348 = scmp.lt.s32.totalorder %s20, 1
      %s349 = scalar_select %p348, %s20, 1
      %s350 = smul.addr %s349, 2
      %s351 = smul.addr %s350, 8
      %s352 = scalar_lea.vmem %s9, %s351
      %v354 = vld [vmem:[%s342] sm:$0xff]
      %v355 = vld [vmem:[%s342 + $0x8] sm:$0xff]
      %v356 = vpack.c.bf16 %v355, %v354
      %v357 = vld [vmem:[%s3] sm:$0xff]
      %v358 = vld [vmem:[%s3 + $0x8] sm:$0xff]
      %v359 = vld [vmem:[%s3 + $0x10] sm:$0xff]
      %v360 = vld [vmem:[%s3 + $0x18] sm:$0xff]
      %v361 = vpack.c.bf16 %v358, %v357
      %v362 = vpack.c.bf16 %v360, %v359
      %v363 = vld [vmem:[%s4] sm:$0x1]
      %v364 = vld [vmem:[%s347] sm:$0xff]
      %v365 = vld [vmem:[%s347 + $0x8] sm:$0xff]
      %v366 = vpack.c.bf16 %v365, %v364
      %v368 = vlaneseq
      %v369 = vshrl.u32 %v368, 7
      %v370 = vsub.s32 0, %v369
      %v371 = vrot.slane %v363, %v370
      %vm373 = vcmask 261120
      %v375 = vsel %vm373, %v356, 0
      %377 = vmatprep.subr.bf16.mxu0 0
      %378 = vmatpush1.bf16.msra.mxu0 %v361
      %379 = vmatprep.subr.bf16.mxu0 0
      %380 = vmatpush1.bf16.msra.mxu0 %v362
      %381 = vmatprep.subr.bf16.mxu0 0
      %382 = vmatpush1.bf16.msra.mxu0 0
      %383 = vmatprep.subr.bf16.mxu0 0
      %384 = vmatpush1.bf16.msra.mxu0 0
      %385 = vmatprep.subr.bf16.mxu0 0
      %386 = vmatpush1.bf16.msra.mxu0 0
      %387 = vmatprep.subr.bf16.mxu0 0
      %388 = vmatpush1.bf16.msra.mxu0 0
      %389 = vmatprep.subr.bf16.mxu0 0
      %390 = vmatpush1.bf16.msra.mxu0 0
      %391 = vmatprep.subr.bf16.mxu0 0
      %392 = vmatpush1.bf16.msra.mxu0 0
      %393 = vmatprep.subr.bf16.mxu0 0
      %394 = vmatpush1.bf16.msra.mxu0 0
      %395 = vmatprep.subr.bf16.mxu0 0
      %396 = vmatpush1.bf16.msra.mxu0 0
      %397 = vmatprep.subr.bf16.mxu0 0
      %398 = vmatpush1.bf16.msra.mxu0 0
      %399 = vmatprep.subr.bf16.mxu0 0
      %400 = vmatpush1.bf16.msra.mxu0 0
      %401 = vmatprep.subr.bf16.mxu0 0
      %402 = vmatpush1.bf16.msra.mxu0 0
      %403 = vmatprep.subr.bf16.mxu0 0
      %404 = vmatpush1.bf16.msra.mxu0 0
      %405 = vmatprep.subr.bf16.mxu0 0
      %406 = vmatpush1.bf16.msra.mxu0 0
      %407 = vmatprep.subr.bf16.mxu0 0
      %408 = vmatpush1.bf16.msra.mxu0 0
      %409 = vmatprep.mubr.bf16.mxu0 0
      %410 = vmatmul.mubr.bf16.gmra.mrb[0].mxu0 %v375
      %v411 = vpop.f32.mrb[0].mxu0
      %v412 = vadd.f32 %v371, %v411
      %v413 = vpop.f32.mrb[0].mxu0
      %v414 = vpop.f32.mrb[0].mxu0
      %v415 = vadd.f32 %v371, %v414
      %v416 = vpop.f32.mrb[0].mxu0
      %417 = vdwg.mxu0
      %420 = vrot.lane.b32.xlu0 %v361, 96
      %v421 = vpop.permute.xlu0 %420
      %422 = vrot.lane.b32.xlu0 %v362, 96
      %v423 = vpop.permute.xlu0 %422
      %426 = vrot.lane.b32.xlu0 %v371, 96
      %v427 = vpop.permute.xlu0 %426
      %v430 = vsel %vm373, %v366, 0
      %432 = vmatprep.subr.bf16.mxu0 0
      %433 = vmatpush1.bf16.msra.mxu0 %v421
      %434 = vmatprep.subr.bf16.mxu0 0
      %435 = vmatpush1.bf16.msra.mxu0 %v423
      %436 = vmatprep.subr.bf16.mxu0 0
      %437 = vmatpush1.bf16.msra.mxu0 0
      %438 = vmatprep.subr.bf16.mxu0 0
      %439 = vmatpush1.bf16.msra.mxu0 0
      %440 = vmatprep.subr.bf16.mxu0 0
      %441 = vmatpush1.bf16.msra.mxu0 0
      %442 = vmatprep.subr.bf16.mxu0 0
      %443 = vmatpush1.bf16.msra.mxu0 0
      %444 = vmatprep.subr.bf16.mxu0 0
      %445 = vmatpush1.bf16.msra.mxu0 0
      %446 = vmatprep.subr.bf16.mxu0 0
      %447 = vmatpush1.bf16.msra.mxu0 0
      %448 = vmatprep.subr.bf16.mxu0 0
      %449 = vmatpush1.bf16.msra.mxu0 0
      %450 = vmatprep.subr.bf16.mxu0 0
      %451 = vmatpush1.bf16.msra.mxu0 0
      %452 = vmatprep.subr.bf16.mxu0 0
      %453 = vmatpush1.bf16.msra.mxu0 0
      %454 = vmatprep.subr.bf16.mxu0 0
      %455 = vmatpush1.bf16.msra.mxu0 0
      %456 = vmatprep.subr.bf16.mxu0 0
      %457 = vmatpush1.bf16.msra.mxu0 0
      %458 = vmatprep.subr.bf16.mxu0 0
      %459 = vmatpush1.bf16.msra.mxu0 0
      %460 = vmatprep.subr.bf16.mxu0 0
      %461 = vmatpush1.bf16.msra.mxu0 0
      %462 = vmatprep.subr.bf16.mxu0 0
      %463 = vmatpush1.bf16.msra.mxu0 0
      %464 = vmatprep.mubr.bf16.mxu0 0
      %465 = vmatmul.mubr.bf16.gmra.mrb[0].mxu0 %v430
      %v466 = vpop.f32.mrb[0].mxu0
      %v467 = vadd.f32 %v427, %v466
      %v468 = vpop.f32.mrb[0].mxu0
      %v469 = vpop.f32.mrb[0].mxu0
      %v470 = vadd.f32 %v427, %v469
      %v471 = vpop.f32.mrb[0].mxu0
      %472 = vdwg.mxu0
      %v473 = vld [vmem:[%s2] sm:$0xff]
      %v474 = vld [vmem:[%s2 + $0x8] sm:$0xff]
      %v475 = vpack.c.bf16 %v415, %v412
      %v476 = vpack.c.bf16 %v470, %v467
      %vm477 = vcmask 64512
      %v479 = vsel %vm477, %v475, 0
      %v482 = vsel %vm477, %v476, 0
      %484 = vmatprep.subr.bf16.mxu0 0
      %485 = vmatpush1.bf16.xpose.msra.mxu0 %v482
      %486 = vmatprep.subr.bf16.mxu0 0
      %487 = vmatpush1.bf16.xpose.msra.mxu0 0
      %488 = vmatprep.subr.bf16.mxu0 0
      %489 = vmatpush1.bf16.xpose.msra.mxu0 0
      %490 = vmatprep.subr.bf16.mxu0 0
      %491 = vmatpush1.bf16.xpose.msra.mxu0 0
      %492 = vmatprep.subr.bf16.mxu0 0
      %493 = vmatpush1.bf16.xpose.msra.mxu0 0
      %494 = vmatprep.subr.bf16.mxu0 0
      %495 = vmatpush1.bf16.xpose.msra.mxu0 0
      %496 = vmatprep.subr.bf16.mxu0 0
      %497 = vmatpush1.bf16.xpose.msra.mxu0 0
      %498 = vmatprep.subr.bf16.mxu0 0
      %499 = vmatpush1.bf16.xpose.msra.mxu0 0
      %500 = vmatprep.subr.bf16.mxu0 0
      %501 = vmatpush1.bf16.xpose.msra.mxu0 0
      %502 = vmatprep.subr.bf16.mxu0 0
      %503 = vmatpush1.bf16.xpose.msra.mxu0 0
      %504 = vmatprep.subr.bf16.mxu0 0
      %505 = vmatpush1.bf16.xpose.msra.mxu0 0
      %506 = vmatprep.subr.bf16.mxu0 0
      %507 = vmatpush1.bf16.xpose.msra.mxu0 0
      %508 = vmatprep.subr.bf16.mxu0 0
      %509 = vmatpush1.bf16.xpose.msra.mxu0 0
      %510 = vmatprep.subr.bf16.mxu0 0
      %511 = vmatpush1.bf16.xpose.msra.mxu0 0
      %512 = vmatprep.subr.bf16.mxu0 0
      %513 = vmatpush1.bf16.xpose.msra.mxu0 0
      %514 = vmatprep.subr.bf16.mxu0 0
      %515 = vmatpush1.bf16.xpose.msra.mxu0 0
      %516 = vmatprep.mubr.bf16.mxu0 0
      %517 = vmatmul.mubr.bf16.gmra.mrb[0].mxu0 %v479
      %v518 = vpop.f32.mrb[0].mxu0
      %v519 = vadd.f32 0.0, %v518
      %v520 = vpop.f32.mrb[0].mxu0
      %v521 = vpop.f32.mrb[0].mxu0
      %v522 = vadd.f32 0.0, %v521
      %v523 = vpop.f32.mrb[0].mxu0
      %524 = vdwg.mxu0
      %v525 = vmul.f32 %v519, 0.35355338
      %v526 = vmul.f32 %v522, 0.35355338
      %v527 = vadd.f32 %v525, %v473
      %v528 = vadd.f32 %v526, %v474
      %vm529 = vcmask 130048
      %v530 = vsel %vm529, %v527, -inf
      %531 = vmax.xlane.f32.xlu0 %v530
      %v532 = vpop.xlane.xlu0 %531
      %v533 = vsel %vm529, %v528, -inf
      %534 = vmax.xlane.f32.xlu0 %v533
      %v535 = vpop.xlane.xlu0 %534
      %v536 = vsub.f32 %v527, %v532
      %v537 = vsub.f32 %v528, %v535
      %v538 = vmul.f32 %v536, 1.442695
      %v539 = vpow.pop %v538
      %v540 = vmul.f32 %v537, 1.442695
      %v541 = vpow.pop %v540
      %v542 = vsel %vm529, %v539, 0.0
      %543 = vadd.xlane.f32.xlu0 %v542
      %v544 = vpop.xlane.xlu0 %543
      %v545 = vsel %vm529, %v541, 0.0
      %546 = vadd.xlane.f32.xlu0 %v545
      %v547 = vpop.xlane.xlu0 %546
      %v548 = vrcp.pop %v544
      %v549 = vrcp.pop %v547
      %v550 = vmul.f32 %v539, %v548
      %v551 = vmul.f32 %v541, %v549
      %v552 = vpack.c.bf16 %v551, %v550
      %554 = vrot.lane.b32.xlu0 %v476, 96
      %v555 = vpop.permute.xlu0 %554
      %v558 = vsel %vm529, %v552, 0
      %560 = vmatprep.subr.bf16.mxu0 0
      %561 = vmatpush1.bf16.msra.mxu0 %v555
      %562 = vmatprep.subr.bf16.mxu0 0
      %563 = vmatpush1.bf16.msra.mxu0 0
      %564 = vmatprep.subr.bf16.mxu0 0
      %565 = vmatpush1.bf16.msra.mxu0 0
      %566 = vmatprep.subr.bf16.mxu0 0
      %567 = vmatpush1.bf16.msra.mxu0 0
      %568 = vmatprep.subr.bf16.mxu0 0
      %569 = vmatpush1.bf16.msra.mxu0 0
      %570 = vmatprep.subr.bf16.mxu0 0
      %571 = vmatpush1.bf16.msra.mxu0 0
      %572 = vmatprep.subr.bf16.mxu0 0
      %573 = vmatpush1.bf16.msra.mxu0 0
      %574 = vmatprep.subr.bf16.mxu0 0
      %575 = vmatpush1.bf16.msra.mxu0 0
      %576 = vmatprep.subr.bf16.mxu0 0
      %577 = vmatpush1.bf16.msra.mxu0 0
      %578 = vmatprep.subr.bf16.mxu0 0
      %579 = vmatpush1.bf16.msra.mxu0 0
      %580 = vmatprep.subr.bf16.mxu0 0
      %581 = vmatpush1.bf16.msra.mxu0 0
      %582 = vmatprep.subr.bf16.mxu0 0
      %583 = vmatpush1.bf16.msra.mxu0 0
      %584 = vmatprep.subr.bf16.mxu0 0
      %585 = vmatpush1.bf16.msra.mxu0 0
      %586 = vmatprep.subr.bf16.mxu0 0
      %587 = vmatpush1.bf16.msra.mxu0 0
      %588 = vmatprep.subr.bf16.mxu0 0
      %589 = vmatpush1.bf16.msra.mxu0 0
      %590 = vmatprep.subr.bf16.mxu0 0
      %591 = vmatpush1.bf16.msra.mxu0 0
      %592 = vmatprep.mubr.bf16.mxu0 0
      %593 = vmatmul.mubr.bf16.gmra.mrb[0].mxu0 %v558
      %v594 = vpop.f32.mrb[0].mxu0
      %v595 = vadd.f32 0.0, %v594
      %v596 = vpop.f32.mrb[0].mxu0
      %v597 = vpop.f32.mrb[0].mxu0
      %v598 = vadd.f32 0.0, %v597
      %v599 = vpop.f32.mrb[0].mxu0
      %600 = vdwg.mxu0
      %602 = vrot.lane.b32.xlu0 %v475, 120
      %v603 = vpop.permute.xlu0 %602
      %604 = vrot.lane.b32.xlu0 %v476, 120
      %v605 = vpop.permute.xlu0 %604
      %v607 = vsel %vm477, %v603, 0
      %v610 = vsel %vm477, %v605, 0
      %612 = vmatprep.subr.bf16.mxu0 0
      %613 = vmatpush1.bf16.xpose.msra.mxu0 %v610
      %614 = vmatprep.subr.bf16.mxu0 0
      %615 = vmatpush1.bf16.xpose.msra.mxu0 0
      %616 = vmatprep.subr.bf16.mxu0 0
      %617 = vmatpush1.bf16.xpose.msra.mxu0 0
      %618 = vmatprep.subr.bf16.mxu0 0
      %619 = vmatpush1.bf16.xpose.msra.mxu0 0
      %620 = vmatprep.subr.bf16.mxu0 0
      %621 = vmatpush1.bf16.xpose.msra.mxu0 0
      %622 = vmatprep.subr.bf16.mxu0 0
      %623 = vmatpush1.bf16.xpose.msra.mxu0 0
      %624 = vmatprep.subr.bf16.mxu0 0
      %625 = vmatpush1.bf16.xpose.msra.mxu0 0
      %626 = vmatprep.subr.bf16.mxu0 0
      %627 = vmatpush1.bf16.xpose.msra.mxu0 0
      %628 = vmatprep.subr.bf16.mxu0 0
      %629 = vmatpush1.bf16.xpose.msra.mxu0 0
      %630 = vmatprep.subr.bf16.mxu0 0
      %631 = vmatpush1.bf16.xpose.msra.mxu0 0
      %632 = vmatprep.subr.bf16.mxu0 0
      %633 = vmatpush1.bf16.xpose.msra.mxu0 0
      %634 = vmatprep.subr.bf16.mxu0 0
      %635 = vmatpush1.bf16.xpose.msra.mxu0 0
      %636 = vmatprep.subr.bf16.mxu0 0
      %637 = vmatpush1.bf16.xpose.msra.mxu0 0
      %638 = vmatprep.subr.bf16.mxu0 0
      %639 = vmatpush1.bf16.xpose.msra.mxu0 0
      %640 = vmatprep.subr.bf16.mxu0 0
      %641 = vmatpush1.bf16.xpose.msra.mxu0 0
      %642 = vmatprep.subr.bf16.mxu0 0
      %643 = vmatpush1.bf16.xpose.msra.mxu0 0
      %644 = vmatprep.mubr.bf16.mxu0 0
      %645 = vmatmul.mubr.bf16.gmra.mrb[0].mxu0 %v607
      %v646 = vpop.f32.mrb[0].mxu0
      %v647 = vadd.f32 0.0, %v646
      %v648 = vpop.f32.mrb[0].mxu0
      %v649 = vpop.f32.mrb[0].mxu0
      %v650 = vadd.f32 0.0, %v649
      %v651 = vpop.f32.mrb[0].mxu0
      %652 = vdwg.mxu0
      %v653 = vmul.f32 %v647, 0.35355338
      %v654 = vmul.f32 %v650, 0.35355338
      %v655 = vadd.f32 %v653, %v473
      %v656 = vadd.f32 %v654, %v474
      %v657 = vsel %vm529, %v655, -inf
      %658 = vmax.xlane.f32.xlu0 %v657
      %v659 = vpop.xlane.xlu0 %658
      %v660 = vsel %vm529, %v656, -inf
      %661 = vmax.xlane.f32.xlu0 %v660
      %v662 = vpop.xlane.xlu0 %661
      %v663 = vsub.f32 %v655, %v659
      %v664 = vsub.f32 %v656, %v662
      %v665 = vmul.f32 %v663, 1.442695
      %v666 = vpow.pop %v665
      %v667 = vmul.f32 %v664, 1.442695
      %v668 = vpow.pop %v667
      %v669 = vsel %vm529, %v666, 0.0
      %670 = vadd.xlane.f32.xlu0 %v669
      %v671 = vpop.xlane.xlu0 %670
      %v672 = vsel %vm529, %v668, 0.0
      %673 = vadd.xlane.f32.xlu0 %v672
      %v674 = vpop.xlane.xlu0 %673
      %v675 = vrcp.pop %v671
      %v676 = vrcp.pop %v674
      %v677 = vmul.f32 %v666, %v675
      %v678 = vmul.f32 %v668, %v676
      %v679 = vpack.c.bf16 %v678, %v677
      %680 = vrot.lane.b32.xlu0 %v476, 88
      %v681 = vpop.permute.xlu0 %680
      %v684 = vsel %vm529, %v679, 0
      %686 = vmatprep.subr.bf16.mxu0 0
      %687 = vmatpush1.bf16.msra.mxu0 %v681
      %688 = vmatprep.subr.bf16.mxu0 0
      %689 = vmatpush1.bf16.msra.mxu0 0
      %690 = vmatprep.subr.bf16.mxu0 0
      %691 = vmatpush1.bf16.msra.mxu0 0
      %692 = vmatprep.subr.bf16.mxu0 0
      %693 = vmatpush1.bf16.msra.mxu0 0
      %694 = vmatprep.subr.bf16.mxu0 0
      %695 = vmatpush1.bf16.msra.mxu0 0
      %696 = vmatprep.subr.bf16.mxu0 0
      %697 = vmatpush1.bf16.msra.mxu0 0
      %698 = vmatprep.subr.bf16.mxu0 0
      %699 = vmatpush1.bf16.msra.mxu0 0
      %700 = vmatprep.subr.bf16.mxu0 0
      %701 = vmatpush1.bf16.msra.mxu0 0
      %702 = vmatprep.subr.bf16.mxu0 0
      %703 = vmatpush1.bf16.msra.mxu0 0
      %704 = vmatprep.subr.bf16.mxu0 0
      %705 = vmatpush1.bf16.msra.mxu0 0
      %706 = vmatprep.subr.bf16.mxu0 0
      %707 = vmatpush1.bf16.msra.mxu0 0
      %708 = vmatprep.subr.bf16.mxu0 0
      %709 = vmatpush1.bf16.msra.mxu0 0
      %710 = vmatprep.subr.bf16.mxu0 0
      %711 = vmatpush1.bf16.msra.mxu0 0
      %712 = vmatprep.subr.bf16.mxu0 0
      %713 = vmatpush1.bf16.msra.mxu0 0
      %714 = vmatprep.subr.bf16.mxu0 0
      %715 = vmatpush1.bf16.msra.mxu0 0
      %716 = vmatprep.subr.bf16.mxu0 0
      %717 = vmatpush1.bf16.msra.mxu0 0
      %718 = vmatprep.mubr.bf16.mxu0 0
      %719 = vmatmul.mubr.bf16.gmra.mrb[0].mxu0 %v684
      %v720 = vpop.f32.mrb[0].mxu0
      %v721 = vadd.f32 0.0, %v720
      %v722 = vpop.f32.mrb[0].mxu0
      %v723 = vpop.f32.mrb[0].mxu0
      %v724 = vadd.f32 0.0, %v723
      %v725 = vpop.f32.mrb[0].mxu0
      %726 = vdwg.mxu0
      %727 = vrot.lane.b32.xlu0 %v475, 112
      %v728 = vpop.permute.xlu0 %727
      %729 = vrot.lane.b32.xlu0 %v476, 112
      %v730 = vpop.permute.xlu0 %729
      %v732 = vsel %vm477, %v728, 0
      %v735 = vsel %vm477, %v730, 0
      %737 = vmatprep.subr.bf16.mxu0 0
      %738 = vmatpush1.bf16.xpose.msra.mxu0 %v735
      %739 = vmatprep.subr.bf16.mxu0 0
      %740 = vmatpush1.bf16.xpose.msra.mxu0 0
      %741 = vmatprep.subr.bf16.mxu0 0
      %742 = vmatpush1.bf16.xpose.msra.mxu0 0
      %743 = vmatprep.subr.bf16.mxu0 0
      %744 = vmatpush1.bf16.xpose.msra.mxu0 0
      %745 = vmatprep.subr.bf16.mxu0 0
      %746 = vmatpush1.bf16.xpose.msra.mxu0 0
      %747 = vmatprep.subr.bf16.mxu0 0
      %748 = vmatpush1.bf16.xpose.msra.mxu0 0
      %749 = vmatprep.subr.bf16.mxu0 0
      %750 = vmatpush1.bf16.xpose.msra.mxu0 0
      %751 = vmatprep.subr.bf16.mxu0 0
      %752 = vmatpush1.bf16.xpose.msra.mxu0 0
      %753 = vmatprep.subr.bf16.mxu0 0
      %754 = vmatpush1.bf16.xpose.msra.mxu0 0
      %755 = vmatprep.subr.bf16.mxu0 0
      %756 = vmatpush1.bf16.xpose.msra.mxu0 0
      %757 = vmatprep.subr.bf16.mxu0 0
      %758 = vmatpush1.bf16.xpose.msra.mxu0 0
      %759 = vmatprep.subr.bf16.mxu0 0
      %760 = vmatpush1.bf16.xpose.msra.mxu0 0
      %761 = vmatprep.subr.bf16.mxu0 0
      %762 = vmatpush1.bf16.xpose.msra.mxu0 0
      %763 = vmatprep.subr.bf16.mxu0 0
      %764 = vmatpush1.bf16.xpose.msra.mxu0 0
      %765 = vmatprep.subr.bf16.mxu0 0
      %766 = vmatpush1.bf16.xpose.msra.mxu0 0
      %767 = vmatprep.subr.bf16.mxu0 0
      %768 = vmatpush1.bf16.xpose.msra.mxu0 0
      %769 = vmatprep.mubr.bf16.mxu0 0
      %770 = vmatmul.mubr.bf16.gmra.mrb[0].mxu0 %v732
      %v771 = vpop.f32.mrb[0].mxu0
      %v772 = vadd.f32 0.0, %v771
      %v773 = vpop.f32.mrb[0].mxu0
      %v774 = vpop.f32.mrb[0].mxu0
      %v775 = vadd.f32 0.0, %v774
      %v776 = vpop.f32.mrb[0].mxu0
      %777 = vdwg.mxu0
      %v778 = vmul.f32 %v772, 0.35355338
      %v779 = vmul.f32 %v775, 0.35355338
      %v780 = vadd.f32 %v778, %v473
      %v781 = vadd.f32 %v779, %v474
      %v782 = vsel %vm529, %v780, -inf
      %783 = vmax.xlane.f32.xlu0 %v782
      %v784 = vpop.xlane.xlu0 %783
      %v785 = vsel %vm529, %v781, -inf
      %786 = vmax.xlane.f32.xlu0 %v785
      %v787 = vpop.xlane.xlu0 %786
      %v788 = vsub.f32 %v780, %v784
      %v789 = vsub.f32 %v781, %v787
      %v790 = vmul.f32 %v788, 1.442695
      %v791 = vpow.pop %v790
      %v792 = vmul.f32 %v789, 1.442695
      %v793 = vpow.pop %v792
      %v794 = vsel %vm529, %v791, 0.0
      %795 = vadd.xlane.f32.xlu0 %v794
      %v796 = vpop.xlane.xlu0 %795
      %v797 = vsel %vm529, %v793, 0.0
      %798 = vadd.xlane.f32.xlu0 %v797
      %v799 = vpop.xlane.xlu0 %798
      %v800 = vrcp.pop %v796
      %v801 = vrcp.pop %v799
      %v802 = vmul.f32 %v791, %v800
      %v803 = vmul.f32 %v793, %v801
      %v804 = vpack.c.bf16 %v803, %v802
      %805 = vrot.lane.b32.xlu0 %v476, 80
      %v806 = vpop.permute.xlu0 %805
      %v809 = vsel %vm529, %v804, 0
      %811 = vmatprep.subr.bf16.mxu0 0
      %812 = vmatpush1.bf16.msra.mxu0 %v806
      %813 = vmatprep.subr.bf16.mxu0 0
      %814 = vmatpush1.bf16.msra.mxu0 0
      %815 = vmatprep.subr.bf16.mxu0 0
      %816 = vmatpush1.bf16.msra.mxu0 0
      %817 = vmatprep.subr.bf16.mxu0 0
      %818 = vmatpush1.bf16.msra.mxu0 0
      %819 = vmatprep.subr.bf16.mxu0 0
      %820 = vmatpush1.bf16.msra.mxu0 0
      %821 = vmatprep.subr.bf16.mxu0 0
      %822 = vmatpush1.bf16.msra.mxu0 0
      %823 = vmatprep.subr.bf16.mxu0 0
      %824 = vmatpush1.bf16.msra.mxu0 0
      %825 = vmatprep.subr.bf16.mxu0 0
      %826 = vmatpush1.bf16.msra.mxu0 0
      %827 = vmatprep.subr.bf16.mxu0 0
      %828 = vmatpush1.bf16.msra.mxu0 0
      %829 = vmatprep.subr.bf16.mxu0 0
      %830 = vmatpush1.bf16.msra.mxu0 0
      %831 = vmatprep.subr.bf16.mxu0 0
      %832 = vmatpush1.bf16.msra.mxu0 0
      %833 = vmatprep.subr.bf16.mxu0 0
      %834 = vmatpush1.bf16.msra.mxu0 0
      %835 = vmatprep.subr.bf16.mxu0 0
      %836 = vmatpush1.bf16.msra.mxu0 0
      %837 = vmatprep.subr.bf16.mxu0 0
      %838 = vmatpush1.bf16.msra.mxu0 0
      %839 = vmatprep.subr.bf16.mxu0 0
      %840 = vmatpush1.bf16.msra.mxu0 0
      %841 = vmatprep.subr.bf16.mxu0 0
      %842 = vmatpush1.bf16.msra.mxu0 0
      %843 = vmatprep.mubr.bf16.mxu0 0
      %844 = vmatmul.mubr.bf16.gmra.mrb[0].mxu0 %v809
      %v845 = vpop.f32.mrb[0].mxu0
      %v846 = vadd.f32 0.0, %v845
      %v847 = vpop.f32.mrb[0].mxu0
      %v848 = vpop.f32.mrb[0].mxu0
      %v849 = vadd.f32 0.0, %v848
      %v850 = vpop.f32.mrb[0].mxu0
      %851 = vdwg.mxu0
      %852 = vrot.lane.b32.xlu0 %v475, 104
      %v853 = vpop.permute.xlu0 %852
      %854 = vrot.lane.b32.xlu0 %v476, 104
      %v855 = vpop.permute.xlu0 %854
      %v857 = vsel %vm477, %v853, 0
      %v860 = vsel %vm477, %v855, 0
      %862 = vmatprep.subr.bf16.mxu0 0
      %863 = vmatpush1.bf16.xpose.msra.mxu0 %v860
      %864 = vmatprep.subr.bf16.mxu0 0
      %865 = vmatpush1.bf16.xpose.msra.mxu0 0
      %866 = vmatprep.subr.bf16.mxu0 0
      %867 = vmatpush1.bf16.xpose.msra.mxu0 0
      %868 = vmatprep.subr.bf16.mxu0 0
      %869 = vmatpush1.bf16.xpose.msra.mxu0 0
      %870 = vmatprep.subr.bf16.mxu0 0
      %871 = vmatpush1.bf16.xpose.msra.mxu0 0
      %872 = vmatprep.subr.bf16.mxu0 0
      %873 = vmatpush1.bf16.xpose.msra.mxu0 0
      %874 = vmatprep.subr.bf16.mxu0 0
      %875 = vmatpush1.bf16.xpose.msra.mxu0 0
      %876 = vmatprep.subr.bf16.mxu0 0
      %877 = vmatpush1.bf16.xpose.msra.mxu0 0
      %878 = vmatprep.subr.bf16.mxu0 0
      %879 = vmatpush1.bf16.xpose.msra.mxu0 0
      %880 = vmatprep.subr.bf16.mxu0 0
      %881 = vmatpush1.bf16.xpose.msra.mxu0 0
      %882 = vmatprep.subr.bf16.mxu0 0
      %883 = vmatpush1.bf16.xpose.msra.mxu0 0
      %884 = vmatprep.subr.bf16.mxu0 0
      %885 = vmatpush1.bf16.xpose.msra.mxu0 0
      %886 = vmatprep.subr.bf16.mxu0 0
      %887 = vmatpush1.bf16.xpose.msra.mxu0 0
      %888 = vmatprep.subr.bf16.mxu0 0
      %889 = vmatpush1.bf16.xpose.msra.mxu0 0
      %890 = vmatprep.subr.bf16.mxu0 0
      %891 = vmatpush1.bf16.xpose.msra.mxu0 0
      %892 = vmatprep.subr.bf16.mxu0 0
      %893 = vmatpush1.bf16.xpose.msra.mxu0 0
      %894 = vmatprep.mubr.bf16.mxu0 0
      %895 = vmatmul.mubr.bf16.gmra.mrb[0].mxu0 %v857
      %v896 = vpop.f32.mrb[0].mxu0
      %v897 = vadd.f32 0.0, %v896
      %v898 = vpop.f32.mrb[0].mxu0
      %v899 = vpop.f32.mrb[0].mxu0
      %v900 = vadd.f32 0.0, %v899
      %v901 = vpop.f32.mrb[0].mxu0
      %902 = vdwg.mxu0
      %v903 = vmul.f32 %v897, 0.35355338
      %v904 = vmul.f32 %v900, 0.35355338
      %v905 = vadd.f32 %v903, %v473
      %v906 = vadd.f32 %v904, %v474
      %v907 = vsel %vm529, %v905, -inf
      %908 = vmax.xlane.f32.xlu0 %v907
      %v909 = vpop.xlane.xlu0 %908
      %v910 = vsel %vm529, %v906, -inf
      %911 = vmax.xlane.f32.xlu0 %v910
      %v912 = vpop.xlane.xlu0 %911
      %v913 = vsub.f32 %v905, %v909
      %v914 = vsub.f32 %v906, %v912
      %v915 = vmul.f32 %v913, 1.442695
      %v916 = vpow.pop %v915
      %v917 = vmul.f32 %v914, 1.442695
      %v918 = vpow.pop %v917
      %v919 = vsel %vm529, %v916, 0.0
      %920 = vadd.xlane.f32.xlu0 %v919
      %v921 = vpop.xlane.xlu0 %920
      %v922 = vsel %vm529, %v918, 0.0
      %923 = vadd.xlane.f32.xlu0 %v922
      %v924 = vpop.xlane.xlu0 %923
      %v925 = vrcp.pop %v921
      %v926 = vrcp.pop %v924
      %v927 = vmul.f32 %v916, %v925
      %v928 = vmul.f32 %v918, %v926
      %v929 = vpack.c.bf16 %v928, %v927
      %930 = vrot.lane.b32.xlu0 %v476, 72
      %v931 = vpop.permute.xlu0 %930
      %v934 = vsel %vm529, %v929, 0
      %936 = vmatprep.subr.bf16.mxu0 0
      %937 = vmatpush1.bf16.msra.mxu0 %v931
      %938 = vmatprep.subr.bf16.mxu0 0
      %939 = vmatpush1.bf16.msra.mxu0 0
      %940 = vmatprep.subr.bf16.mxu0 0
      %941 = vmatpush1.bf16.msra.mxu0 0
      %942 = vmatprep.subr.bf16.mxu0 0
      %943 = vmatpush1.bf16.msra.mxu0 0
      %944 = vmatprep.subr.bf16.mxu0 0
      %945 = vmatpush1.bf16.msra.mxu0 0
      %946 = vmatprep.subr.bf16.mxu0 0
      %947 = vmatpush1.bf16.msra.mxu0 0
      %948 = vmatprep.subr.bf16.mxu0 0
      %949 = vmatpush1.bf16.msra.mxu0 0
      %950 = vmatprep.subr.bf16.mxu0 0
      %951 = vmatpush1.bf16.msra.mxu0 0
      %952 = vmatprep.subr.bf16.mxu0 0
      %953 = vmatpush1.bf16.msra.mxu0 0
      %954 = vmatprep.subr.bf16.mxu0 0
      %955 = vmatpush1.bf16.msra.mxu0 0
      %956 = vmatprep.subr.bf16.mxu0 0
      %957 = vmatpush1.bf16.msra.mxu0 0
      %958 = vmatprep.subr.bf16.mxu0 0
      %959 = vmatpush1.bf16.msra.mxu0 0
      %960 = vmatprep.subr.bf16.mxu0 0
      %961 = vmatpush1.bf16.msra.mxu0 0
      %962 = vmatprep.subr.bf16.mxu0 0
      %963 = vmatpush1.bf16.msra.mxu0 0
      %964 = vmatprep.subr.bf16.mxu0 0
      %965 = vmatpush1.bf16.msra.mxu0 0
      %966 = vmatprep.subr.bf16.mxu0 0
      %967 = vmatpush1.bf16.msra.mxu0 0
      %968 = vmatprep.mubr.bf16.mxu0 0
      %969 = vmatmul.mubr.bf16.gmra.mrb[0].mxu0 %v934
      %v970 = vpop.f32.mrb[0].mxu0
      %v971 = vadd.f32 0.0, %v970
      %v972 = vpop.f32.mrb[0].mxu0
      %v973 = vpop.f32.mrb[0].mxu0
      %v974 = vadd.f32 0.0, %v973
      %v975 = vpop.f32.mrb[0].mxu0
      %976 = vdwg.mxu0
      %979 = vrot.lane.b32.xlu0 %v721, 8
      %v980 = vpop.permute.xlu0 %979
      %981 = vrot.lane.b32.xlu0 %v724, 8
      %v982 = vpop.permute.xlu0 %981
      %987 = vrot.lane.b32.xlu0 %v846, 16
      %v988 = vpop.permute.xlu0 %987
      %989 = vrot.lane.b32.xlu0 %v849, 16
      %v990 = vpop.permute.xlu0 %989
      %995 = vrot.lane.b32.xlu0 %v971, 24
      %v996 = vpop.permute.xlu0 %995
      %997 = vrot.lane.b32.xlu0 %v974, 24
      %v998 = vpop.permute.xlu0 %997
      %v1001 = vsel %vm477, %v595, %v980
      %v1002 = vsel %vm477, %v598, %v982
      %v1003 = vsel %vm529, %v1001, %v988
      %v1004 = vsel %vm529, %v1002, %v990
      %vm1005 = vcmask 195584
      %v1006 = vsel %vm1005, %v1003, %v996
      %v1007 = vsel %vm1005, %v1004, %v998
      %v1008 = vpack.c.bf16 %v1007, %v1006
      %v1009 = vld [vmem:[%s5] sm:$0xff]
      %v1010 = vld [vmem:[%s5 + $0x8] sm:$0xff]
      %v1011 = vld [vmem:[%s5 + $0x10] sm:$0xff]
      %v1012 = vld [vmem:[%s5 + $0x18] sm:$0xff]
      %v1013 = vpack.c.bf16 %v1010, %v1009
      %v1014 = vpack.c.bf16 %v1012, %v1011
      %v1015 = vld [vmem:[%s6] sm:$0x1]
      %v1017 = vlaneseq
      %v1018 = vshrl.u32 %v1017, 7
      %v1019 = vsub.s32 0, %v1018
      %v1020 = vrot.slane %v1015, %v1019
      %v1023 = vsel %vm373, %v1008, 0
      %1025 = vmatprep.subr.bf16.mxu0 0
      %1026 = vmatpush1.bf16.msra.mxu0 %v1013
      %1027 = vmatprep.subr.bf16.mxu0 0
      %1028 = vmatpush1.bf16.msra.mxu0 %v1014
      %1029 = vmatprep.subr.bf16.mxu0 0
      %1030 = vmatpush1.bf16.msra.mxu0 0
      %1031 = vmatprep.subr.bf16.mxu0 0
      %1032 = vmatpush1.bf16.msra.mxu0 0
      %1033 = vmatprep.subr.bf16.mxu0 0
      %1034 = vmatpush1.bf16.msra.mxu0 0
      %1035 = vmatprep.subr.bf16.mxu0 0
      %1036 = vmatpush1.bf16.msra.mxu0 0
      %1037 = vmatprep.subr.bf16.mxu0 0
      %1038 = vmatpush1.bf16.msra.mxu0 0
      %1039 = vmatprep.subr.bf16.mxu0 0
      %1040 = vmatpush1.bf16.msra.mxu0 0
      %1041 = vmatprep.subr.bf16.mxu0 0
      %1042 = vmatpush1.bf16.msra.mxu0 0
      %1043 = vmatprep.subr.bf16.mxu0 0
      %1044 = vmatpush1.bf16.msra.mxu0 0
      %1045 = vmatprep.subr.bf16.mxu0 0
      %1046 = vmatpush1.bf16.msra.mxu0 0
      %1047 = vmatprep.subr.bf16.mxu0 0
      %1048 = vmatpush1.bf16.msra.mxu0 0
      %1049 = vmatprep.subr.bf16.mxu0 0
      %1050 = vmatpush1.bf16.msra.mxu0 0
      %1051 = vmatprep.subr.bf16.mxu0 0
      %1052 = vmatpush1.bf16.msra.mxu0 0
      %1053 = vmatprep.subr.bf16.mxu0 0
      %1054 = vmatpush1.bf16.msra.mxu0 0
      %1055 = vmatprep.subr.bf16.mxu0 0
      %1056 = vmatpush1.bf16.msra.mxu0 0
      %1057 = vmatprep.mubr.bf16.mxu0 0
      %1058 = vmatmul.mubr.bf16.gmra.mrb[0].mxu0 %v1023
      %v1059 = vpop.f32.mrb[0].mxu0
      %v1060 = vadd.f32 %v1020, %v1059
      %v1061 = vpop.f32.mrb[0].mxu0
      %v1062 = vpop.f32.mrb[0].mxu0
      %v1063 = vadd.f32 %v1020, %v1062
      %v1064 = vpop.f32.mrb[0].mxu0
      %1065 = vdwg.mxu0
      %v1066 = vadd.f32 %v354, %v1060
      %v1067 = vadd.f32 %v355, %v1063
      %v1068 = vld [vmem:[%s7] sm:$0x1]
      %v1069 = vld [vmem:[%s8] sm:$0x1]
      %v1070 = vsel %vm373, %v1066, 0.0
      %1071 = vadd.xlane.f32.xlu0 %v1070
      %v1072 = vpop.xlane.xlu0 %1071
      %v1073 = vsel %vm373, %v1067, 0.0
      %1074 = vadd.xlane.f32.xlu0 %v1073
      %v1075 = vpop.xlane.xlu0 %1074
      %v1076 = vrcp.pop 32.0
      %v1077 = vmul.f32 %v1072, %v1076
      %v1078 = vmul.f32 %v1075, %v1076
      %v1079 = vsub.f32 %v1066, %v1077
      %v1080 = vsub.f32 %v1067, %v1078
      %v1081 = vmul.f32 %v1079, %v1079
      %v1082 = vmul.f32 %v1080, %v1080
      %v1083 = vsel %vm373, %v1081, 0.0
      %1084 = vadd.xlane.f32.xlu0 %v1083
      %v1085 = vpop.xlane.xlu0 %1084
      %v1086 = vsel %vm373, %v1082, 0.0
      %1087 = vadd.xlane.f32.xlu0 %v1086
      %v1088 = vpop.xlane.xlu0 %1087
      %v1089 = vmul.f32 %v1085, %v1076
      %v1090 = vmul.f32 %v1088, %v1076
      %v1091 = vadd.f32 %v1089, 1e-05
      %v1092 = vadd.f32 %v1090, 1e-05
      %v1093 = vrsqrt.pop %v1091
      %v1094 = vrsqrt.pop %v1092
      %v1095 = vmul.f32 %v1079, %v1093
      %v1096 = vmul.f32 %v1080, %v1094
      %v1098 = vlaneseq
      %v1099 = vshrl.u32 %v1098, 7
      %v1100 = vsub.s32 0, %v1099
      %v1101 = vrot.slane %v1068, %v1100
      %v1103 = vmul.f32 %v1095, %v1101
      %v1104 = vmul.f32 %v1096, %v1101
      %v1106 = vlaneseq
      %v1107 = vshrl.u32 %v1106, 7
      %v1108 = vsub.s32 0, %v1107
      %v1109 = vrot.slane %v1069, %v1108
      %v1111 = vadd.f32 %v1103, %v1109
      %v1112 = vadd.f32 %v1104, %v1109
      %1113 = vst.msk [vmem:[%s352] sm:$0xff] %vm373, %v1111
      %1114 = vst.msk [vmem:[%s352 + $0x8] sm:$0xff] %vm373, %v1112
      %p1115 = scmp.lt.s32.totalorder %s20, 1
      %s1116 = scalar_select %p1115, %s20, 1
      %s1117 = smul.addr %s1116, 2
      %s1118 = smul.addr %s1117, 8
      %s1119 = scalar_lea.vmem %s9, %s1118
      // Predicated region
      $region57: #{informer_forward.19} parent=55 // pred_check
        %p1120 = pneg %p237
      $region58: #{informer_forward.19} parent=55 // pred_check_branch
        %1122 = sbr.rel (%p1120) target = $region60
      $region59: #{informer_forward.19} parent=55 // pred_region
        _
      $region60: #{informer_forward.19} parent=55 // pred_fallthru
        _
    $region56: #{informer_forward.19} parent=5 // pred_fallthru
      _
    %p1123 = scmp.le.s32.totalorder 2, %s15
    // Predicated region
    $region61: #{informer_forward.19} parent=5 // pred_check
      %p1124 = pneg %p1123
    $region62: #{informer_forward.19} parent=5 // pred_check_branch
      %1126 = sbr.rel (%p1124) target = $region64
    $region63: #{informer_forward.19} parent=5 // pred_region
      %s1127 = ssub.s32 %s15, 2
      // Predicated region
      $region65: #{informer_forward.19} parent=63 // pred_check
        %p1128 = pneg %p243
      $region66: #{informer_forward.19} parent=63 // pred_check_branch
        %1130 = sbr.rel (%p1128) target = $region68
      $region67: #{informer_forward.19} parent=63 // pred_region
        %p1131 = scmp.lt.s32.totalorder %s21, 1
        %s1132 = scalar_select %p1131, %s21, 1
        %s1133 = smul.addr %s1132, 2
        %s1134 = smul.addr %s1133, 8
        %s1135 = scalar_lea.vmem %s9, %s1134
      $region68: #{informer_forward.19} parent=63 // pred_fallthru
        _
    $region64: #{informer_forward.19} parent=5 // pred_fallthru
      _
  $region6: #{informer_forward.19} parent=0 // loop_footer
    %s19 = sadd.s32 1, %s15
  $region7: #{informer_forward.19} parent=0 // loop_footer_branch
    %14 = sbr.rel target = $region3
  $region8: #{informer_forward.19} parent=0 // loop_exit
    _

</llo_original>
